<compile_context>
chip_gen: v6e
topology: v6e:2x2x1
jax: 0.10.0
libtpu: 0.0.40
codegen_flags: <defaults>
</compile_context>

<pallas_src>
import functools

import jax
import jax.numpy as jnp
from jax.experimental import pallas as pl
from jax.experimental.pallas import tpu as pltpu


# --------------------------------------------------------------------------
# Tile selection helpers
# --------------------------------------------------------------------------

_ROW_TILES = (512, 256, 128, 64, 32, 16, 8)     # second-minor (sublane) dims
_LANE_TILES = (512, 256, 128)                   # minor (lane) dims


def _pick_tile(dim, candidates):
    for c in candidates:
        if c <= dim and dim % c == 0:
            return c
    return dim                                   # full dim is always legal


# --------------------------------------------------------------------------
# Pallas kernels
# --------------------------------------------------------------------------

def _layernorm_kernel(x_ref, g_ref, b_ref, o_ref, *, eps):
    x = x_ref[...].astype(jnp.float32)
    mu = jnp.mean(x, axis=-1, keepdims=True)
    var = jnp.mean(jnp.square(x - mu), axis=-1, keepdims=True)
    xn = (x - mu) * jax.lax.rsqrt(var + eps)
    o_ref[...] = (xn * g_ref[...].astype(jnp.float32)
                  + b_ref[...].astype(jnp.float32)).astype(o_ref.dtype)


def _linear_kernel(x_ref, w_ref, b_ref, *refs, act, has_residual):
    # refs = (r_ref?, o_ref, acc_ref)
    if has_residual:
        r_ref, o_ref, acc_ref = refs
    else:
        r_ref = None
        o_ref, acc_ref = refs

    @pl.when(pl.program_id(2) == 0)
    def _():
        acc_ref[...] = jnp.zeros_like(acc_ref)

    acc_ref[...] += jnp.dot(x_ref[...], w_ref[...],
                            preferred_element_type=jnp.float32)

    @pl.when(pl.program_id(2) == pl.num_programs(2) - 1)
    def _():
        y = acc_ref[...] + b_ref[...].astype(jnp.float32)
        if act == "gelu":
            y = jax.nn.gelu(y, approximate=True)
        if has_residual:
            y = y + r_ref[...].astype(jnp.float32)
        o_ref[...] = y.astype(o_ref.dtype)


def _attention_kernel(q_ref, k_ref, v_ref, bias_ref, o_ref, *,
                      scale, n_head, d_k, d_v):
    # One batch element per grid step; all heads handled here.
    q = q_ref[0].astype(jnp.float32) * scale      # (Nq, H*Dk)
    k = k_ref[0].astype(jnp.float32)              # (Nk, H*Dk)
    v = v_ref[0].astype(jnp.float32)              # (Nk, H*Dv)
    bias = bias_ref[0].astype(jnp.float32)        # (H, Nq, Nk)

    outs = []
    for h in range(n_head):                       # static unroll over heads
        qh = q[:, h * d_k:(h + 1) * d_k]          # (Nq, Dk)
        kh = k[:, h * d_k:(h + 1) * d_k]          # (Nk, Dk)
        vh = v[:, h * d_v:(h + 1) * d_v]          # (Nk, Dv)
        # contract on the last axes -> no k.T materialisation
        s = jax.lax.dot_general(qh, kh, (((1,), (1,)), ((), ())),
                                preferred_element_type=jnp.float32) + bias[h]
        mx = jnp.max(s, axis=-1, keepdims=True)
        e = jnp.exp(s - mx)
        denom = jnp.sum(e, axis=-1, keepdims=True)
        wgt = e * pl.reciprocal(denom, approx=True)
        outs.append(jnp.dot(wgt, vh, preferred_element_type=jnp.float32))

    # lane-dense combined-heads output: (Nq, H*Dv), already in the layout
    # expected by the output projection (no host-side transpose needed).
    o_ref[0] = jnp.concatenate(outs, axis=-1).astype(o_ref.dtype)


# --------------------------------------------------------------------------
# Wrappers
# --------------------------------------------------------------------------

def pallas_layernorm(x, gamma, beta, eps=1e-5):
    b, n, d = x.shape
    m = b * n
    tm = _pick_tile(m, _ROW_TILES)
    out = pl.pallas_call(
        functools.partial(_layernorm_kernel, eps=eps),
        out_shape=jax.ShapeDtypeStruct((m, d), x.dtype),
        grid=(m // tm,),
        in_specs=[pl.BlockSpec((tm, d), lambda i: (i, 0)),
                  pl.BlockSpec((1, d), lambda i: (0, 0)),
                  pl.BlockSpec((1, d), lambda i: (0, 0))],
        out_specs=pl.BlockSpec((tm, d), lambda i: (i, 0)),
        compiler_params=pltpu.CompilerParams(
            dimension_semantics=("parallel",)),
    )(x.reshape(m, d), gamma.reshape(1, d), beta.reshape(1, d))
    return out.reshape(b, n, d)


def pallas_linear(x2d, w, bvec, act=None, residual=None):
    """y = act(x @ w + b) [+ residual], tiled over (M, N, K)."""
    m, kdim = x2d.shape
    k2, n = w.shape
    assert kdim == k2
    tm = _pick_tile(m, _ROW_TILES)
    tn = _pick_tile(n, _LANE_TILES)
    tk = _pick_tile(kdim, _LANE_TILES)
    grid = (m // tm, n // tn, kdim // tk)

    in_specs = [pl.BlockSpec((tm, tk), lambda i, j, kk: (i, kk)),
                pl.BlockSpec((tk, tn), lambda i, j, kk: (kk, j)),
                pl.BlockSpec((1, tn), lambda i, j, kk: (0, j))]
    args = [x2d, w, bvec.reshape(1, n)]
    if residual is not None:
        in_specs.append(pl.BlockSpec((tm, tn), lambda i, j, kk: (i, j)))
        args.append(residual)

    return pl.pallas_call(
        functools.partial(_linear_kernel, act=act,
                          has_residual=residual is not None),
        out_shape=jax.ShapeDtypeStruct((m, n), x2d.dtype),
        grid=grid,
        in_specs=in_specs,
        out_specs=pl.BlockSpec((tm, tn), lambda i, j, kk: (i, j)),
        scratch_shapes=[pltpu.VMEM((tm, tn), jnp.float32)],
        compiler_params=pltpu.CompilerParams(
            dimension_semantics=("parallel", "parallel", "arbitrary")),
    )(*args)


def pallas_attention(q, k, v, bias, scale, n_head):
    """q: (B,Nq,H*Dk), k: (B,Nk,H*Dk), v: (B,Nk,H*Dv), bias: (B,H,Nq,Nk).
    Returns combined-heads context (B, Nq, H*Dv)."""
    B, Nq, qd = q.shape
    _, Nk, kd = k.shape
    _, _, vd = v.shape
    assert qd == kd and qd % n_head == 0 and vd % n_head == 0
    assert bias.shape == (B, n_head, Nq, Nk)
    d_k = qd // n_head
    d_v = vd // n_head
    return pl.pallas_call(
        functools.partial(_attention_kernel, scale=scale, n_head=n_head,
                          d_k=d_k, d_v=d_v),
        out_shape=jax.ShapeDtypeStruct((B, Nq, vd), q.dtype),
        grid=(B,),
        in_specs=[pl.BlockSpec((1, Nq, qd), lambda b: (b, 0, 0)),
                  pl.BlockSpec((1, Nk, kd), lambda b: (b, 0, 0)),
                  pl.BlockSpec((1, Nk, vd), lambda b: (b, 0, 0)),
                  pl.BlockSpec((1, n_head, Nq, Nk), lambda b: (b, 0, 0, 0))],
        out_specs=pl.BlockSpec((1, Nq, vd), lambda b: (b, 0, 0)),
        compiler_params=pltpu.CompilerParams(
            dimension_semantics=("parallel",)),
    )(q, k, v, bias)


# --------------------------------------------------------------------------
# Module forward (mirrors encoder_co_layer.forward, eval mode)
# --------------------------------------------------------------------------

def multi_head_attention_fwd(p, queries, keys, values, attn_bias, n_head,
                             residual):
    B, Nq, Cq = queries.shape
    _, Nk, Ck = keys.shape
    q = pallas_linear(queries.reshape(B * Nq, Cq), p["q_w"], p["q_b"])
    k = pallas_linear(keys.reshape(B * Nk, Ck), p["k_w"], p["k_b"])
    v = pallas_linear(values.reshape(B * Nk, Ck), p["v_w"], p["v_b"])
    hdk = p["q_w"].shape[1]
    hdv = p["v_w"].shape[1]
    d_key = hdk // n_head
    ctx = pallas_attention(q.reshape(B, Nq, hdk), k.reshape(B, Nk, hdk),
                           v.reshape(B, Nk, hdv), attn_bias,
                           float(d_key) ** -0.5, n_head)
    d_out = p["o_w"].shape[1]
    # output projection with the post_att residual fused into the epilogue
    proj = pallas_linear(ctx.reshape(B * Nq, hdv), p["o_w"], p["o_b"],
                         residual=residual.reshape(B * Nq, d_out))
    return proj.reshape(B, Nq, d_out)


def ffn_fwd(p, x, residual):
    B, N, C = x.shape
    h = pallas_linear(x.reshape(B * N, C), p["fc0_w"], p["fc0_b"], act="gelu")
    # fc1 with the post_ffn residual fused into the epilogue
    o = pallas_linear(h, p["fc1_w"], p["fc1_b"],
                      residual=residual.reshape(B * N, -1))
    return o.reshape(B, N, -1)


def encoder_co_layer_fwd(params, enc_input, enc_vl_input, attn_vl_bias,
                         co_head):
    # preprocess_cmd = 'n' -> LayerNorm only (dropout rate 0)
    enc_input_pre = pallas_layernorm(enc_input,
                                     params["pre_att_g"], params["pre_att_b"])
    enc_input_vl_pre = pallas_layernorm(enc_vl_input,
                                        params["vl_pre_att_g"],
                                        params["vl_pre_att_b"])

    # TODO(synk): bias transpose for the text->vision attention is a small
    # host-side swapaxes; could be folded into the kernel with an in-kernel
    # minor-dim transpose of the per-head bias tile.
    attn_output = multi_head_attention_fwd(
        params["mha"], enc_input_pre, enc_input_vl_pre, enc_input_vl_pre,
        jnp.swapaxes(attn_vl_bias, -1, -2), co_head, residual=enc_input)
    attn_vl_output = multi_head_attention_fwd(
        params["vl_mha"], enc_input_vl_pre, enc_input_pre, enc_input_pre,
        attn_vl_bias, co_head, residual=enc_vl_input)

    pre_attn_output = pallas_layernorm(attn_output,
                                       params["pre_ffn_g"], params["pre_ffn_b"])
    pre_attn_vl_output = pallas_layernorm(attn_vl_output,
                                          params["vl_pre_ffn_g"],
                                          params["vl_pre_ffn_b"])

    enc_output = ffn_fwd(params["ffn"], pre_attn_output, residual=attn_output)
    enc_vl_output = ffn_fwd(params["vl_ffn"], pre_attn_vl_output,
                            residual=attn_vl_output)
    return enc_output, enc_vl_output


# --------------------------------------------------------------------------
# Pure-JAX reference (semantics of the PyTorch module, eval mode)
# --------------------------------------------------------------------------

def _ref_ln(x, g, b, eps=1e-5):
    mu = x.mean(-1, keepdims=True)
    var = ((x - mu) ** 2).mean(-1, keepdims=True)
    return (x - mu) / jnp.sqrt(var + eps) * g + b


def _ref_mha(p, queries, keys, values, bias, n_head):
    B, Nq, _ = queries.shape
    _, Nk, _ = keys.shape
    q = (queries @ p["q_w"] + p["q_b"]).reshape(B, Nq, n_head, -1).transpose(0, 2, 1, 3)
    k = (keys @ p["k_w"] + p["k_b"]).reshape(B, Nk, n_head, -1).transpose(0, 2, 1, 3)
    v = (values @ p["v_w"] + p["v_b"]).reshape(B, Nk, n_head, -1).transpose(0, 2, 1, 3)
    d_key = k.shape[-1]
    logits = jnp.einsum("bhqd,bhkd->bhqk", q * d_key ** -0.5, k) + bias
    w = jax.nn.softmax(logits, axis=-1)
    ctx = jnp.einsum("bhqk,bhkd->bhqd", w, v)
    out = ctx.transpose(0, 2, 1, 3).reshape(B, Nq, -1)
    return out @ p["o_w"] + p["o_b"]


def _ref_ffn(p, x):
    h = jax.nn.gelu(x @ p["fc0_w"] + p["fc0_b"], approximate=True)
    return h @ p["fc1_w"] + p["fc1_b"]


def encoder_co_layer_ref(params, enc_input, enc_vl_input, attn_vl_bias, co_head):
    a = _ref_ln(enc_input, params["pre_att_g"], params["pre_att_b"])
    b = _ref_ln(enc_vl_input, params["vl_pre_att_g"], params["vl_pre_att_b"])
    attn = _ref_mha(params["mha"], a, b, b,
                    jnp.swapaxes(attn_vl_bias, -1, -2), co_head)
    attn_vl = _ref_mha(params["vl_mha"], b, a, a, attn_vl_bias, co_head)
    attn = attn + enc_input
    attn_vl = attn_vl + enc_vl_input
    ff = _ref_ffn(params["ffn"],
                  _ref_ln(attn, params["pre_ffn_g"], params["pre_ffn_b"]))
    ff_vl = _ref_ffn(params["vl_ffn"],
                     _ref_ln(attn_vl, params["vl_pre_ffn_g"], params["vl_pre_ffn_b"]))
    return ff + attn, ff_vl + attn_vl


# --------------------------------------------------------------------------
# Deterministic parameter init
# --------------------------------------------------------------------------

def _init_linear(key, d_in, d_out):
    kw, kb = jax.random.split(key)
    w = jax.random.normal(kw, (d_out, d_in), jnp.float32) * 0.02
    b = jax.random.normal(kb, (d_out,), jnp.float32) * 0.02
    return w.T, b


def _init_mha(key, d_model, hidden_size, d_key, d_value, n_head):
    ks = jax.random.split(key, 4)
    qw, qb = _init_linear(ks[0], d_model, d_key * n_head)
    kw, kb = _init_linear(ks[1], hidden_size, d_key * n_head)
    vw, vb = _init_linear(ks[2], hidden_size, d_value * n_head)
    ow, ob = _init_linear(ks[3], max(d_model, hidden_size), d_model)
    return {"q_w": qw, "q_b": qb, "k_w": kw, "k_b": kb,
            "v_w": vw, "v_b": vb, "o_w": ow, "o_b": ob}


def _init_ffn(key, d_hid, d_inner):
    k0, k1 = jax.random.split(key)
    w0, b0 = _init_linear(k0, d_hid, d_inner)
    w1, b1 = _init_linear(k1, d_inner, d_hid)
    return {"fc0_w": w0, "fc0_b": b0, "fc1_w": w1, "fc1_b": b1}


def _init_ln(key, d):
    kg, kb = jax.random.split(key)
    g = 1.0 + jax.random.normal(kg, (d,), jnp.float32) * 0.02
    b = jax.random.normal(kb, (d,), jnp.float32) * 0.02
    return g, b


def init_params(key, co_head, co_key, co_value, co_model,
                d_model, d_inner_hid, v_model, v_inner_hid):
    ks = jax.random.split(key, 8)
    pa_g, pa_b = _init_ln(ks[0], d_model)
    vpa_g, vpa_b = _init_ln(ks[1], co_model)
    pf_g, pf_b = _init_ln(ks[2], d_model)
    vpf_g, vpf_b = _init_ln(ks[3], v_model)
    return {
        "pre_att_g": pa_g, "pre_att_b": pa_b,
        "vl_pre_att_g": vpa_g, "vl_pre_att_b": vpa_b,
        "pre_ffn_g": pf_g, "pre_ffn_b": pf_b,
        "vl_pre_ffn_g": vpf_g, "vl_pre_ffn_b": vpf_b,
        "mha": _init_mha(ks[4], d_model, v_model, co_key, co_value, co_head),
        "vl_mha": _init_mha(ks[5], v_model, d_model, co_key, co_value, co_head),
        "ffn": _init_ffn(ks[6], d_model, d_inner_hid),
        "vl_ffn": _init_ffn(ks[7], v_model, v_inner_hid),
    }


# --------------------------------------------------------------------------
# Main
# --------------------------------------------------------------------------

if __name__ == "__main__":
    # small config consistent with the module's constraints:
    #   co_head * co_value == max(d_model, v_model)  (output_fc input dim)
    #   co_model == v_model                          (vl_pre_att LayerNorm dim)
    B = 2
    T = 8          # text sequence length
    V = 16         # visual sequence length
    d_model = 32
    v_model = 32
    co_model = 32
    co_head = 2
    co_key = 16
    co_value = 16
    d_inner_hid = 64
    v_inner_hid = 48

    root = jax.random.PRNGKey(0)
    k_par, k_txt, k_vis, k_bias = jax.random.split(root, 4)

    params = init_params(k_par, co_head, co_key, co_value, co_model,
                         d_model, d_inner_hid, v_model, v_inner_hid)

    enc_input = jax.random.normal(k_txt, (B, T, d_model), jnp.float32)
    enc_vl_input = jax.random.normal(k_vis, (B, V, v_model), jnp.float32)
    # attn_vl_bias: (B, co_head, V, T); used directly for vis->txt attention,
    # transposed for txt->vis attention.
    attn_vl_bias = jax.random.normal(k_bias, (B, co_head, V, T), jnp.float32) * 0.5

    fwd = jax.jit(functools.partial(encoder_co_layer_fwd, co_head=co_head))
    enc_out, enc_vl_out = fwd(params, enc_input, enc_vl_input, attn_vl_bias)
    jax.block_until_ready((enc_out, enc_vl_out))

    ref_out, ref_vl_out = encoder_co_layer_ref(
        params, enc_input, enc_vl_input, attn_vl_bias, co_head)

    assert enc_out.shape == (B, T, d_model)
    assert enc_vl_out.shape == (B, V, v_model)
    # tolerance accounts for the approximate (EUP) reciprocal in the softmax
    assert jnp.allclose(enc_out, ref_out, atol=2e-3, rtol=2e-3)
    assert jnp.allclose(enc_vl_out, ref_vl_out, atol=2e-3, rtol=2e-3)

    # TODO(synk): dropout layers are identity here (eval mode / zero rates).
    print("KERNEL_OK")
</pallas_src>

<mosaic_0001>
module attributes {stable_mosaic.version = 11 : i64} {
  func.func @_layernorm_kernel(%arg0: i32, %arg1: memref<16x32xf32, #tpu.memory_space<vmem>>, %arg2: memref<1x32xf32, #tpu.memory_space<vmem>>, %arg3: memref<1x32xf32, #tpu.memory_space<vmem>>, %arg4: memref<16x32xf32, #tpu.memory_space<vmem>>) attributes {dimension_semantics = [#tpu.dimension_semantics<parallel>], iteration_bounds = array<i64: 1>, scalar_prefetch = 0 : i64, scratch_operands = 0 : i64, tpu.core_type = #tpu.core_type<tc>, window_params = [{transform_indices = @transform_0, window_bounds = array<i64: 16, 32>}, {pipeline_mode = #tpu.pipeline_mode<synchronous>, transform_indices = @transform_1, window_bounds = array<i64: 1, 32>}, {pipeline_mode = #tpu.pipeline_mode<synchronous>, transform_indices = @transform_2, window_bounds = array<i64: 1, 32>}, {transform_indices = @transform_3, window_bounds = array<i64: 16, 32>}]} {
    %c0 = arith.constant 0 : index
    %c0_0 = arith.constant 0 : index
    %0 = vector.load %arg1[%c0, %c0_0] : memref<16x32xf32, #tpu.memory_space<vmem>>, vector<16x32xf32>
    %cst = arith.constant dense<0.000000e+00> : vector<16xf32>
    %1 = vector.multi_reduction <add>, %0, %cst [1] : vector<16x32xf32> to vector<16xf32>
    %2 = vector.shape_cast %1 : vector<16xf32> to vector<16x1xf32>
    %cst_1 = arith.constant 3.200000e+01 : f32
    %3 = vector.broadcast %cst_1 : f32 to vector<16x1xf32>
    %4 = arith.divf %2, %3 : vector<16x1xf32>
    %5 = vector.broadcast %4 : vector<16x1xf32> to vector<16x32xf32>
    %6 = arith.subf %0, %5 : vector<16x32xf32>
    %7 = arith.mulf %6, %6 : vector<16x32xf32>
    %cst_2 = arith.constant dense<0.000000e+00> : vector<16xf32>
    %8 = vector.multi_reduction <add>, %7, %cst_2 [1] : vector<16x32xf32> to vector<16xf32>
    %9 = vector.shape_cast %8 : vector<16xf32> to vector<16x1xf32>
    %cst_3 = arith.constant 3.200000e+01 : f32
    %10 = vector.broadcast %cst_3 : f32 to vector<16x1xf32>
    %11 = arith.divf %9, %10 : vector<16x1xf32>
    %12 = vector.broadcast %4 : vector<16x1xf32> to vector<16x32xf32>
    %13 = arith.subf %0, %12 : vector<16x32xf32>
    %cst_4 = arith.constant 9.99999974E-6 : f32
    %14 = vector.broadcast %cst_4 : f32 to vector<16x1xf32>
    %15 = arith.addf %11, %14 : vector<16x1xf32>
    %16 = math.rsqrt %15 : vector<16x1xf32>
    %17 = vector.broadcast %16 : vector<16x1xf32> to vector<16x32xf32>
    %18 = arith.mulf %13, %17 : vector<16x32xf32>
    %c0_5 = arith.constant 0 : index
    %c0_6 = arith.constant 0 : index
    %19 = vector.load %arg2[%c0_5, %c0_6] : memref<1x32xf32, #tpu.memory_space<vmem>>, vector<1x32xf32>
    %20 = vector.broadcast %19 : vector<1x32xf32> to vector<16x32xf32>
    %21 = arith.mulf %18, %20 : vector<16x32xf32>
    %c0_7 = arith.constant 0 : index
    %c0_8 = arith.constant 0 : index
    %22 = vector.load %arg3[%c0_7, %c0_8] : memref<1x32xf32, #tpu.memory_space<vmem>>, vector<1x32xf32>
    %23 = vector.broadcast %22 : vector<1x32xf32> to vector<16x32xf32>
    %24 = arith.addf %21, %23 : vector<16x32xf32>
    %c0_9 = arith.constant 0 : index
    %c0_10 = arith.constant 0 : index
    %25 = vector.load %arg4[%c0_9, %c0_10] : memref<16x32xf32, #tpu.memory_space<vmem>>, vector<16x32xf32>
    tpu.vector_store %arg4[%c0_9, %c0_10], %24 {strides = array<i32>} : memref<16x32xf32, #tpu.memory_space<vmem>>, vector<16x32xf32>,
    return
  }
  func.func @transform_0(%arg0: i32) -> (i32, i32) {
    %c0_i32 = arith.constant 0 : i32
    %c0_i32_0 = arith.constant 0 : i32
    return %arg0, %c0_i32 : i32, i32
  }
  func.func @transform_1(%arg0: i32) -> (i32, i32) {
    %c0_i32 = arith.constant 0 : i32
    %c0_i32_0 = arith.constant 0 : i32
    %c0_i32_1 = arith.constant 0 : i32
    return %c0_i32, %c0_i32_0 : i32, i32
  }
  func.func @transform_2(%arg0: i32) -> (i32, i32) {
    %c0_i32 = arith.constant 0 : i32
    %c0_i32_0 = arith.constant 0 : i32
    %c0_i32_1 = arith.constant 0 : i32
    return %c0_i32, %c0_i32_0 : i32, i32
  }
  func.func @transform_3(%arg0: i32) -> (i32, i32) {
    %c0_i32 = arith.constant 0 : i32
    %c0_i32_0 = arith.constant 0 : i32
    return %arg0, %c0_i32 : i32, i32
  }
}

module attributes {stable_mosaic.version = 11 : i64} {
  func.func @_linear_kernel(%arg0: i32, %arg1: i32, %arg2: i32, %arg3: memref<16x32xf32, #tpu.memory_space<vmem>>, %arg4: memref<32x32xf32, #tpu.memory_space<vmem>>, %arg5: memref<1x32xf32, #tpu.memory_space<vmem>>, %arg6: memref<16x32xf32, #tpu.memory_space<vmem>>, %arg7: memref<16x32xf32, #tpu.memory_space<vmem>>) attributes {dimension_semantics = [#tpu.dimension_semantics<parallel>, #tpu.dimension_semantics<parallel>, #tpu.dimension_semantics<arbitrary>], iteration_bounds = array<i64: 1, 1, 1>, scalar_prefetch = 0 : i64, scratch_operands = 1 : i64, tpu.core_type = #tpu.core_type<tc>, window_params = [{transform_indices = @transform_0, window_bounds = array<i64: 16, 32>}, {transform_indices = @transform_1, window_bounds = array<i64: 32, 32>}, {transform_indices = @transform_2, window_bounds = array<i64: 1, 32>}, {transform_indices = @transform_3, window_bounds = array<i64: 16, 32>}]} {
    %c0_i32 = arith.constant 0 : i32
    %0 = arith.cmpi eq, %arg2, %c0_i32 : i32
    %1 = arith.extui %0 : i1 to i32
    %c0_i32_0 = arith.constant 0 : i32
    %2 = arith.cmpi ne, %1, %c0_i32_0 : i32
    scf.if %2 {
      %cst_10 = arith.constant 0.000000e+00 : f32
      %12 = vector.broadcast %cst_10 : f32 to vector<16x32xf32>
      %c0_11 = arith.constant 0 : index
      %c0_12 = arith.constant 0 : index
      %13 = vector.load %arg7[%c0_11, %c0_12] : memref<16x32xf32, #tpu.memory_space<vmem>>, vector<16x32xf32>
      tpu.vector_store %arg7[%c0_11, %c0_12], %12 {strides = array<i32>} : memref<16x32xf32, #tpu.memory_space<vmem>>, vector<16x32xf32>,
    } else {
    }
    %c0 = arith.constant 0 : index
    %c0_1 = arith.constant 0 : index
    %3 = vector.load %arg7[%c0, %c0_1] : memref<16x32xf32, #tpu.memory_space<vmem>>, vector<16x32xf32>
    %c0_2 = arith.constant 0 : index
    %c0_3 = arith.constant 0 : index
    %4 = vector.load %arg3[%c0_2, %c0_3] : memref<16x32xf32, #tpu.memory_space<vmem>>, vector<16x32xf32>
    %c0_4 = arith.constant 0 : index
    %c0_5 = arith.constant 0 : index
    %5 = vector.load %arg4[%c0_4, %c0_5] : memref<32x32xf32, #tpu.memory_space<vmem>>, vector<32x32xf32>
    %cst = arith.constant dense<0.000000e+00> : vector<16x32xf32>
    %6 = tpu.matmul %4, %5, %cst {dimension_numbers = #tpu.dot_dimension_numbers<[1], [0], [0], [1], [0, 0, 1, 1], [], []>} : vector<16x32xf32>, vector<32x32xf32>, vector<16x32xf32> -> vector<16x32xf32>
    %7 = arith.addf %3, %6 : vector<16x32xf32>
    %c0_6 = arith.constant 0 : index
    %c0_7 = arith.constant 0 : index
    %8 = vector.load %arg7[%c0_6, %c0_7] : memref<16x32xf32, #tpu.memory_space<vmem>>, vector<16x32xf32>
    tpu.vector_store %arg7[%c0_6, %c0_7], %7 {strides = array<i32>} : memref<16x32xf32, #tpu.memory_space<vmem>>, vector<16x32xf32>,
    %c0_i32_8 = arith.constant 0 : i32
    %9 = arith.cmpi eq, %arg2, %c0_i32_8 : i32
    %10 = arith.extui %9 : i1 to i32
    %c0_i32_9 = arith.constant 0 : i32
    %11 = arith.cmpi ne, %10, %c0_i32_9 : i32
    scf.if %11 {
      %c0_10 = arith.constant 0 : index
      %c0_11 = arith.constant 0 : index
      %12 = vector.load %arg7[%c0_10, %c0_11] : memref<16x32xf32, #tpu.memory_space<vmem>>, vector<16x32xf32>
      %c0_12 = arith.constant 0 : index
      %c0_13 = arith.constant 0 : index
      %13 = vector.load %arg5[%c0_12, %c0_13] : memref<1x32xf32, #tpu.memory_space<vmem>>, vector<1x32xf32>
      %14 = vector.broadcast %13 : vector<1x32xf32> to vector<16x32xf32>
      %15 = arith.addf %12, %14 : vector<16x32xf32>
      %c0_14 = arith.constant 0 : index
      %c0_15 = arith.constant 0 : index
      %16 = vector.load %arg6[%c0_14, %c0_15] : memref<16x32xf32, #tpu.memory_space<vmem>>, vector<16x32xf32>
      tpu.vector_store %arg6[%c0_14, %c0_15], %15 {strides = array<i32>} : memref<16x32xf32, #tpu.memory_space<vmem>>, vector<16x32xf32>,
    } else {
    }
    return
  }
  func.func @transform_0(%arg0: i32, %arg1: i32, %arg2: i32) -> (i32, i32) {
    %c0_i32 = arith.constant 0 : i32
    return %arg0, %arg2 : i32, i32
  }
  func.func @transform_1(%arg0: i32, %arg1: i32, %arg2: i32) -> (i32, i32) {
    %c0_i32 = arith.constant 0 : i32
    return %arg2, %arg1 : i32, i32
  }
  func.func @transform_2(%arg0: i32, %arg1: i32, %arg2: i32) -> (i32, i32) {
    %c0_i32 = arith.constant 0 : i32
    %c0_i32_0 = arith.constant 0 : i32
    return %c0_i32, %arg1 : i32, i32
  }
  func.func @transform_3(%arg0: i32, %arg1: i32, %arg2: i32) -> (i32, i32) {
    %c0_i32 = arith.constant 0 : i32
    return %arg0, %arg1 : i32, i32
  }
}

module attributes {stable_mosaic.version = 11 : i64} {
  func.func @_layernorm_kernel(%arg0: i32, %arg1: memref<32x32xf32, #tpu.memory_space<vmem>>, %arg2: memref<1x32xf32, #tpu.memory_space<vmem>>, %arg3: memref<1x32xf32, #tpu.memory_space<vmem>>, %arg4: memref<32x32xf32, #tpu.memory_space<vmem>>) attributes {dimension_semantics = [#tpu.dimension_semantics<parallel>], iteration_bounds = array<i64: 1>, scalar_prefetch = 0 : i64, scratch_operands = 0 : i64, tpu.core_type = #tpu.core_type<tc>, window_params = [{transform_indices = @transform_0, window_bounds = array<i64: 32, 32>}, {pipeline_mode = #tpu.pipeline_mode<synchronous>, transform_indices = @transform_1, window_bounds = array<i64: 1, 32>}, {pipeline_mode = #tpu.pipeline_mode<synchronous>, transform_indices = @transform_2, window_bounds = array<i64: 1, 32>}, {transform_indices = @transform_3, window_bounds = array<i64: 32, 32>}]} {
    %c0 = arith.constant 0 : index
    %c0_0 = arith.constant 0 : index
    %0 = vector.load %arg1[%c0, %c0_0] : memref<32x32xf32, #tpu.memory_space<vmem>>, vector<32x32xf32>
    %cst = arith.constant dense<0.000000e+00> : vector<32xf32>
    %1 = vector.multi_reduction <add>, %0, %cst [1] : vector<32x32xf32> to vector<32xf32>
    %2 = vector.shape_cast %1 : vector<32xf32> to vector<32x1xf32>
    %cst_1 = arith.constant 3.200000e+01 : f32
    %3 = vector.broadcast %cst_1 : f32 to vector<32x1xf32>
    %4 = arith.divf %2, %3 : vector<32x1xf32>
    %5 = vector.broadcast %4 : vector<32x1xf32> to vector<32x32xf32>
    %6 = arith.subf %0, %5 : vector<32x32xf32>
    %7 = arith.mulf %6, %6 : vector<32x32xf32>
    %cst_2 = arith.constant dense<0.000000e+00> : vector<32xf32>
    %8 = vector.multi_reduction <add>, %7, %cst_2 [1] : vector<32x32xf32> to vector<32xf32>
    %9 = vector.shape_cast %8 : vector<32xf32> to vector<32x1xf32>
    %cst_3 = arith.constant 3.200000e+01 : f32
    %10 = vector.broadcast %cst_3 : f32 to vector<32x1xf32>
    %11 = arith.divf %9, %10 : vector<32x1xf32>
    %12 = vector.broadcast %4 : vector<32x1xf32> to vector<32x32xf32>
    %13 = arith.subf %0, %12 : vector<32x32xf32>
    %cst_4 = arith.constant 9.99999974E-6 : f32
    %14 = vector.broadcast %cst_4 : f32 to vector<32x1xf32>
    %15 = arith.addf %11, %14 : vector<32x1xf32>
    %16 = math.rsqrt %15 : vector<32x1xf32>
    %17 = vector.broadcast %16 : vector<32x1xf32> to vector<32x32xf32>
    %18 = arith.mulf %13, %17 : vector<32x32xf32>
    %c0_5 = arith.constant 0 : index
    %c0_6 = arith.constant 0 : index
    %19 = vector.load %arg2[%c0_5, %c0_6] : memref<1x32xf32, #tpu.memory_space<vmem>>, vector<1x32xf32>
    %20 = vector.broadcast %19 : vector<1x32xf32> to vector<32x32xf32>
    %21 = arith.mulf %18, %20 : vector<32x32xf32>
    %c0_7 = arith.constant 0 : index
    %c0_8 = arith.constant 0 : index
    %22 = vector.load %arg3[%c0_7, %c0_8] : memref<1x32xf32, #tpu.memory_space<vmem>>, vector<1x32xf32>
    %23 = vector.broadcast %22 : vector<1x32xf32> to vector<32x32xf32>
    %24 = arith.addf %21, %23 : vector<32x32xf32>
    %c0_9 = arith.constant 0 : index
    %c0_10 = arith.constant 0 : index
    %25 = vector.load %arg4[%c0_9, %c0_10] : memref<32x32xf32, #tpu.memory_space<vmem>>, vector<32x32xf32>
    tpu.vector_store %arg4[%c0_9, %c0_10], %24 {strides = array<i32>} : memref<32x32xf32, #tpu.memory_space<vmem>>, vector<32x32xf32>,
    return
  }
  func.func @transform_0(%arg0: i32) -> (i32, i32) {
    %c0_i32 = arith.constant 0 : i32
    %c0_i32_0 = arith.constant 0 : i32
    return %arg0, %c0_i32 : i32, i32
  }
  func.func @transform_1(%arg0: i32) -> (i32, i32) {
    %c0_i32 = arith.constant 0 : i32
    %c0_i32_0 = arith.constant 0 : i32
    %c0_i32_1 = arith.constant 0 : i32
    return %c0_i32, %c0_i32_0 : i32, i32
  }
  func.func @transform_2(%arg0: i32) -> (i32, i32) {
    %c0_i32 = arith.constant 0 : i32
    %c0_i32_0 = arith.constant 0 : i32
    %c0_i32_1 = arith.constant 0 : i32
    return %c0_i32, %c0_i32_0 : i32, i32
  }
  func.func @transform_3(%arg0: i32) -> (i32, i32) {
    %c0_i32 = arith.constant 0 : i32
    %c0_i32_0 = arith.constant 0 : i32
    return %arg0, %c0_i32 : i32, i32
  }
}

module attributes {stable_mosaic.version = 11 : i64} {
  func.func @_linear_kernel(%arg0: i32, %arg1: i32, %arg2: i32, %arg3: memref<32x32xf32, #tpu.memory_space<vmem>>, %arg4: memref<32x32xf32, #tpu.memory_space<vmem>>, %arg5: memref<1x32xf32, #tpu.memory_space<vmem>>, %arg6: memref<32x32xf32, #tpu.memory_space<vmem>>, %arg7: memref<32x32xf32, #tpu.memory_space<vmem>>) attributes {dimension_semantics = [#tpu.dimension_semantics<parallel>, #tpu.dimension_semantics<parallel>, #tpu.dimension_semantics<arbitrary>], iteration_bounds = array<i64: 1, 1, 1>, scalar_prefetch = 0 : i64, scratch_operands = 1 : i64, tpu.core_type = #tpu.core_type<tc>, window_params = [{transform_indices = @transform_0, window_bounds = array<i64: 32, 32>}, {transform_indices = @transform_1, window_bounds = array<i64: 32, 32>}, {transform_indices = @transform_2, window_bounds = array<i64: 1, 32>}, {transform_indices = @transform_3, window_bounds = array<i64: 32, 32>}]} {
    %c0_i32 = arith.constant 0 : i32
    %0 = arith.cmpi eq, %arg2, %c0_i32 : i32
    %1 = arith.extui %0 : i1 to i32
    %c0_i32_0 = arith.constant 0 : i32
    %2 = arith.cmpi ne, %1, %c0_i32_0 : i32
    scf.if %2 {
      %cst_10 = arith.constant 0.000000e+00 : f32
      %12 = vector.broadcast %cst_10 : f32 to vector<32x32xf32>
      %c0_11 = arith.constant 0 : index
      %c0_12 = arith.constant 0 : index
      %13 = vector.load %arg7[%c0_11, %c0_12] : memref<32x32xf32, #tpu.memory_space<vmem>>, vector<32x32xf32>
      tpu.vector_store %arg7[%c0_11, %c0_12], %12 {strides = array<i32>} : memref<32x32xf32, #tpu.memory_space<vmem>>, vector<32x32xf32>,
    } else {
    }
    %c0 = arith.constant 0 : index
    %c0_1 = arith.constant 0 : index
    %3 = vector.load %arg7[%c0, %c0_1] : memref<32x32xf32, #tpu.memory_space<vmem>>, vector<32x32xf32>
    %c0_2 = arith.constant 0 : index
    %c0_3 = arith.constant 0 : index
    %4 = vector.load %arg3[%c0_2, %c0_3] : memref<32x32xf32, #tpu.memory_space<vmem>>, vector<32x32xf32>
    %c0_4 = arith.constant 0 : index
    %c0_5 = arith.constant 0 : index
    %5 = vector.load %arg4[%c0_4, %c0_5] : memref<32x32xf32, #tpu.memory_space<vmem>>, vector<32x32xf32>
    %cst = arith.constant dense<0.000000e+00> : vector<32x32xf32>
    %6 = tpu.matmul %4, %5, %cst {dimension_numbers = #tpu.dot_dimension_numbers<[1], [0], [0], [1], [0, 0, 1, 1], [], []>} : vector<32x32xf32>, vector<32x32xf32>, vector<32x32xf32> -> vector<32x32xf32>
    %7 = arith.addf %3, %6 : vector<32x32xf32>
    %c0_6 = arith.constant 0 : index
    %c0_7 = arith.constant 0 : index
    %8 = vector.load %arg7[%c0_6, %c0_7] : memref<32x32xf32, #tpu.memory_space<vmem>>, vector<32x32xf32>
    tpu.vector_store %arg7[%c0_6, %c0_7], %7 {strides = array<i32>} : memref<32x32xf32, #tpu.memory_space<vmem>>, vector<32x32xf32>,
    %c0_i32_8 = arith.constant 0 : i32
    %9 = arith.cmpi eq, %arg2, %c0_i32_8 : i32
    %10 = arith.extui %9 : i1 to i32
    %c0_i32_9 = arith.constant 0 : i32
    %11 = arith.cmpi ne, %10, %c0_i32_9 : i32
    scf.if %11 {
      %c0_10 = arith.constant 0 : index
      %c0_11 = arith.constant 0 : index
      %12 = vector.load %arg7[%c0_10, %c0_11] : memref<32x32xf32, #tpu.memory_space<vmem>>, vector<32x32xf32>
      %c0_12 = arith.constant 0 : index
      %c0_13 = arith.constant 0 : index
      %13 = vector.load %arg5[%c0_12, %c0_13] : memref<1x32xf32, #tpu.memory_space<vmem>>, vector<1x32xf32>
      %14 = vector.broadcast %13 : vector<1x32xf32> to vector<32x32xf32>
      %15 = arith.addf %12, %14 : vector<32x32xf32>
      %c0_14 = arith.constant 0 : index
      %c0_15 = arith.constant 0 : index
      %16 = vector.load %arg6[%c0_14, %c0_15] : memref<32x32xf32, #tpu.memory_space<vmem>>, vector<32x32xf32>
      tpu.vector_store %arg6[%c0_14, %c0_15], %15 {strides = array<i32>} : memref<32x32xf32, #tpu.memory_space<vmem>>, vector<32x32xf32>,
    } else {
    }
    return
  }
  func.func @transform_0(%arg0: i32, %arg1: i32, %arg2: i32) -> (i32, i32) {
    %c0_i32 = arith.constant 0 : i32
    return %arg0, %arg2 : i32, i32
  }
  func.func @transform_1(%arg0: i32, %arg1: i32, %arg2: i32) -> (i32, i32) {
    %c0_i32 = arith.constant 0 : i32
    return %arg2, %arg1 : i32, i32
  }
  func.func @transform_2(%arg0: i32, %arg1: i32, %arg2: i32) -> (i32, i32) {
    %c0_i32 = arith.constant 0 : i32
    %c0_i32_0 = arith.constant 0 : i32
    return %c0_i32, %arg1 : i32, i32
  }
  func.func @transform_3(%arg0: i32, %arg1: i32, %arg2: i32) -> (i32, i32) {
    %c0_i32 = arith.constant 0 : i32
    return %arg0, %arg1 : i32, i32
  }
}

module attributes {stable_mosaic.version = 11 : i64} {
  func.func @_linear_kernel(%arg0: i32, %arg1: i32, %arg2: i32, %arg3: memref<16x32xf32, #tpu.memory_space<vmem>>, %arg4: memref<32x32xf32, #tpu.memory_space<vmem>>, %arg5: memref<1x32xf32, #tpu.memory_space<vmem>>, %arg6: memref<16x32xf32, #tpu.memory_space<vmem>>, %arg7: memref<16x32xf32, #tpu.memory_space<vmem>>, %arg8: memref<16x32xf32, #tpu.memory_space<vmem>>) attributes {dimension_semantics = [#tpu.dimension_semantics<parallel>, #tpu.dimension_semantics<parallel>, #tpu.dimension_semantics<arbitrary>], iteration_bounds = array<i64: 1, 1, 1>, scalar_prefetch = 0 : i64, scratch_operands = 1 : i64, tpu.core_type = #tpu.core_type<tc>, window_params = [{transform_indices = @transform_0, window_bounds = array<i64: 16, 32>}, {transform_indices = @transform_1, window_bounds = array<i64: 32, 32>}, {transform_indices = @transform_2, window_bounds = array<i64: 1, 32>}, {transform_indices = @transform_3, window_bounds = array<i64: 16, 32>}, {transform_indices = @transform_4, window_bounds = array<i64: 16, 32>}]} {
    %c0_i32 = arith.constant 0 : i32
    %0 = arith.cmpi eq, %arg2, %c0_i32 : i32
    %1 = arith.extui %0 : i1 to i32
    %c0_i32_0 = arith.constant 0 : i32
    %2 = arith.cmpi ne, %1, %c0_i32_0 : i32
    scf.if %2 {
      %cst_10 = arith.constant 0.000000e+00 : f32
      %12 = vector.broadcast %cst_10 : f32 to vector<16x32xf32>
      %c0_11 = arith.constant 0 : index
      %c0_12 = arith.constant 0 : index
      %13 = vector.load %arg8[%c0_11, %c0_12] : memref<16x32xf32, #tpu.memory_space<vmem>>, vector<16x32xf32>
      tpu.vector_store %arg8[%c0_11, %c0_12], %12 {strides = array<i32>} : memref<16x32xf32, #tpu.memory_space<vmem>>, vector<16x32xf32>,
    } else {
    }
    %c0 = arith.constant 0 : index
    %c0_1 = arith.constant 0 : index
    %3 = vector.load %arg8[%c0, %c0_1] : memref<16x32xf32, #tpu.memory_space<vmem>>, vector<16x32xf32>
    %c0_2 = arith.constant 0 : index
    %c0_3 = arith.constant 0 : index
    %4 = vector.load %arg3[%c0_2, %c0_3] : memref<16x32xf32, #tpu.memory_space<vmem>>, vector<16x32xf32>
    %c0_4 = arith.constant 0 : index
    %c0_5 = arith.constant 0 : index
    %5 = vector.load %arg4[%c0_4, %c0_5] : memref<32x32xf32, #tpu.memory_space<vmem>>, vector<32x32xf32>
    %cst = arith.constant dense<0.000000e+00> : vector<16x32xf32>
    %6 = tpu.matmul %4, %5, %cst {dimension_numbers = #tpu.dot_dimension_numbers<[1], [0], [0], [1], [0, 0, 1, 1], [], []>} : vector<16x32xf32>, vector<32x32xf32>, vector<16x32xf32> -> vector<16x32xf32>
    %7 = arith.addf %3, %6 : vector<16x32xf32>
    %c0_6 = arith.constant 0 : index
    %c0_7 = arith.constant 0 : index
    %8 = vector.load %arg8[%c0_6, %c0_7] : memref<16x32xf32, #tpu.memory_space<vmem>>, vector<16x32xf32>
    tpu.vector_store %arg8[%c0_6, %c0_7], %7 {strides = array<i32>} : memref<16x32xf32, #tpu.memory_space<vmem>>, vector<16x32xf32>,
    %c0_i32_8 = arith.constant 0 : i32
    %9 = arith.cmpi eq, %arg2, %c0_i32_8 : i32
    %10 = arith.extui %9 : i1 to i32
    %c0_i32_9 = arith.constant 0 : i32
    %11 = arith.cmpi ne, %10, %c0_i32_9 : i32
    scf.if %11 {
      %c0_10 = arith.constant 0 : index
      %c0_11 = arith.constant 0 : index
      %12 = vector.load %arg8[%c0_10, %c0_11] : memref<16x32xf32, #tpu.memory_space<vmem>>, vector<16x32xf32>
      %c0_12 = arith.constant 0 : index
      %c0_13 = arith.constant 0 : index
      %13 = vector.load %arg5[%c0_12, %c0_13] : memref<1x32xf32, #tpu.memory_space<vmem>>, vector<1x32xf32>
      %14 = vector.broadcast %13 : vector<1x32xf32> to vector<16x32xf32>
      %15 = arith.addf %12, %14 : vector<16x32xf32>
      %c0_14 = arith.constant 0 : index
      %c0_15 = arith.constant 0 : index
      %16 = vector.load %arg6[%c0_14, %c0_15] : memref<16x32xf32, #tpu.memory_space<vmem>>, vector<16x32xf32>
      %17 = arith.addf %15, %16 : vector<16x32xf32>
      %c0_16 = arith.constant 0 : index
      %c0_17 = arith.constant 0 : index
      %18 = vector.load %arg7[%c0_16, %c0_17] : memref<16x32xf32, #tpu.memory_space<vmem>>, vector<16x32xf32>
      tpu.vector_store %arg7[%c0_16, %c0_17], %17 {strides = array<i32>} : memref<16x32xf32, #tpu.memory_space<vmem>>, vector<16x32xf32>,
    } else {
    }
    return
  }
  func.func @transform_0(%arg0: i32, %arg1: i32, %arg2: i32) -> (i32, i32) {
    %c0_i32 = arith.constant 0 : i32
    return %arg0, %arg2 : i32, i32
  }
  func.func @transform_1(%arg0: i32, %arg1: i32, %arg2: i32) -> (i32, i32) {
    %c0_i32 = arith.constant 0 : i32
    return %arg2, %arg1 : i32, i32
  }
  func.func @transform_2(%arg0: i32, %arg1: i32, %arg2: i32) -> (i32, i32) {
    %c0_i32 = arith.constant 0 : i32
    %c0_i32_0 = arith.constant 0 : i32
    return %c0_i32, %arg1 : i32, i32
  }
  func.func @transform_3(%arg0: i32, %arg1: i32, %arg2: i32) -> (i32, i32) {
    %c0_i32 = arith.constant 0 : i32
    return %arg0, %arg1 : i32, i32
  }
  func.func @transform_4(%arg0: i32, %arg1: i32, %arg2: i32) -> (i32, i32) {
    %c0_i32 = arith.constant 0 : i32
    return %arg0, %arg1 : i32, i32
  }
}

module attributes {stable_mosaic.version = 11 : i64} {
  func.func @_linear_kernel(%arg0: i32, %arg1: i32, %arg2: i32, %arg3: memref<16x32xf32, #tpu.memory_space<vmem>>, %arg4: memref<32x64xf32, #tpu.memory_space<vmem>>, %arg5: memref<1x64xf32, #tpu.memory_space<vmem>>, %arg6: memref<16x64xf32, #tpu.memory_space<vmem>>, %arg7: memref<16x64xf32, #tpu.memory_space<vmem>>) attributes {dimension_semantics = [#tpu.dimension_semantics<parallel>, #tpu.dimension_semantics<parallel>, #tpu.dimension_semantics<arbitrary>], iteration_bounds = array<i64: 1, 1, 1>, scalar_prefetch = 0 : i64, scratch_operands = 1 : i64, tpu.core_type = #tpu.core_type<tc>, window_params = [{transform_indices = @transform_0, window_bounds = array<i64: 16, 32>}, {transform_indices = @transform_1, window_bounds = array<i64: 32, 64>}, {transform_indices = @transform_2, window_bounds = array<i64: 1, 64>}, {transform_indices = @transform_3, window_bounds = array<i64: 16, 64>}]} {
    %c0_i32 = arith.constant 0 : i32
    %0 = arith.cmpi eq, %arg2, %c0_i32 : i32
    %1 = arith.extui %0 : i1 to i32
    %c0_i32_0 = arith.constant 0 : i32
    %2 = arith.cmpi ne, %1, %c0_i32_0 : i32
    scf.if %2 {
      %cst_10 = arith.constant 0.000000e+00 : f32
      %12 = vector.broadcast %cst_10 : f32 to vector<16x64xf32>
      %c0_11 = arith.constant 0 : index
      %c0_12 = arith.constant 0 : index
      %13 = vector.load %arg7[%c0_11, %c0_12] : memref<16x64xf32, #tpu.memory_space<vmem>>, vector<16x64xf32>
      tpu.vector_store %arg7[%c0_11, %c0_12], %12 {strides = array<i32>} : memref<16x64xf32, #tpu.memory_space<vmem>>, vector<16x64xf32>,
    } else {
    }
    %c0 = arith.constant 0 : index
    %c0_1 = arith.constant 0 : index
    %3 = vector.load %arg7[%c0, %c0_1] : memref<16x64xf32, #tpu.memory_space<vmem>>, vector<16x64xf32>
    %c0_2 = arith.constant 0 : index
    %c0_3 = arith.constant 0 : index
    %4 = vector.load %arg3[%c0_2, %c0_3] : memref<16x32xf32, #tpu.memory_space<vmem>>, vector<16x32xf32>
    %c0_4 = arith.constant 0 : index
    %c0_5 = arith.constant 0 : index
    %5 = vector.load %arg4[%c0_4, %c0_5] : memref<32x64xf32, #tpu.memory_space<vmem>>, vector<32x64xf32>
    %cst = arith.constant dense<0.000000e+00> : vector<16x64xf32>
    %6 = tpu.matmul %4, %5, %cst {dimension_numbers = #tpu.dot_dimension_numbers<[1], [0], [0], [1], [0, 0, 1, 1], [], []>} : vector<16x32xf32>, vector<32x64xf32>, vector<16x64xf32> -> vector<16x64xf32>
    %7 = arith.addf %3, %6 : vector<16x64xf32>
    %c0_6 = arith.constant 0 : index
    %c0_7 = arith.constant 0 : index
    %8 = vector.load %arg7[%c0_6, %c0_7] : memref<16x64xf32, #tpu.memory_space<vmem>>, vector<16x64xf32>
    tpu.vector_store %arg7[%c0_6, %c0_7], %7 {strides = array<i32>} : memref<16x64xf32, #tpu.memory_space<vmem>>, vector<16x64xf32>,
    %c0_i32_8 = arith.constant 0 : i32
    %9 = arith.cmpi eq, %arg2, %c0_i32_8 : i32
    %10 = arith.extui %9 : i1 to i32
    %c0_i32_9 = arith.constant 0 : i32
    %11 = arith.cmpi ne, %10, %c0_i32_9 : i32
    scf.if %11 {
      %c0_10 = arith.constant 0 : index
      %c0_11 = arith.constant 0 : index
      %12 = vector.load %arg7[%c0_10, %c0_11] : memref<16x64xf32, #tpu.memory_space<vmem>>, vector<16x64xf32>
      %c0_12 = arith.constant 0 : index
      %c0_13 = arith.constant 0 : index
      %13 = vector.load %arg5[%c0_12, %c0_13] : memref<1x64xf32, #tpu.memory_space<vmem>>, vector<1x64xf32>
      %14 = vector.broadcast %13 : vector<1x64xf32> to vector<16x64xf32>
      %15 = arith.addf %12, %14 : vector<16x64xf32>
      %16 = arith.mulf %15, %15 : vector<16x64xf32>
      %17 = arith.mulf %15, %16 : vector<16x64xf32>
      %cst_14 = arith.constant 4.471500e-02 : f32
      %18 = vector.broadcast %cst_14 : f32 to vector<16x64xf32>
      %19 = arith.mulf %18, %17 : vector<16x64xf32>
      %20 = arith.addf %15, %19 : vector<16x64xf32>
      %cst_15 = arith.constant 0.797884583 : f32
      %21 = vector.broadcast %cst_15 : f32 to vector<16x64xf32>
      %22 = arith.mulf %21, %20 : vector<16x64xf32>
      %23 = math.tanh %22 : vector<16x64xf32>
      %cst_16 = arith.constant 1.000000e+00 : f32
      %24 = vector.broadcast %cst_16 : f32 to vector<16x64xf32>
      %25 = arith.addf %24, %23 : vector<16x64xf32>
      %cst_17 = arith.constant 5.000000e-01 : f32
      %26 = vector.broadcast %cst_17 : f32 to vector<16x64xf32>
      %27 = arith.mulf %26, %25 : vector<16x64xf32>
      %28 = arith.mulf %15, %27 : vector<16x64xf32>
      %c0_18 = arith.constant 0 : index
      %c0_19 = arith.constant 0 : index
      %29 = vector.load %arg6[%c0_18, %c0_19] : memref<16x64xf32, #tpu.memory_space<vmem>>, vector<16x64xf32>
      tpu.vector_store %arg6[%c0_18, %c0_19], %28 {strides = array<i32>} : memref<16x64xf32, #tpu.memory_space<vmem>>, vector<16x64xf32>,
    } else {
    }
    return
  }
  func.func @transform_0(%arg0: i32, %arg1: i32, %arg2: i32) -> (i32, i32) {
    %c0_i32 = arith.constant 0 : i32
    return %arg0, %arg2 : i32, i32
  }
  func.func @transform_1(%arg0: i32, %arg1: i32, %arg2: i32) -> (i32, i32) {
    %c0_i32 = arith.constant 0 : i32
    return %arg2, %arg1 : i32, i32
  }
  func.func @transform_2(%arg0: i32, %arg1: i32, %arg2: i32) -> (i32, i32) {
    %c0_i32 = arith.constant 0 : i32
    %c0_i32_0 = arith.constant 0 : i32
    return %c0_i32, %arg1 : i32, i32
  }
  func.func @transform_3(%arg0: i32, %arg1: i32, %arg2: i32) -> (i32, i32) {
    %c0_i32 = arith.constant 0 : i32
    return %arg0, %arg1 : i32, i32
  }
}

module attributes {stable_mosaic.version = 11 : i64} {
  func.func @_attention_kernel(%arg0: i32, %arg1: memref<1x8x32xf32, #tpu.memory_space<vmem>>, %arg2: memref<1x16x32xf32, #tpu.memory_space<vmem>>, %arg3: memref<1x16x32xf32, #tpu.memory_space<vmem>>, %arg4: memref<1x2x8x16xf32, #tpu.memory_space<vmem>>, %arg5: memref<1x8x32xf32, #tpu.memory_space<vmem>>) attributes {dimension_semantics = [#tpu.dimension_semantics<parallel>], iteration_bounds = array<i64: 2>, scalar_prefetch = 0 : i64, scratch_operands = 0 : i64, tpu.core_type = #tpu.core_type<tc>, window_params = [{transform_indices = @transform_0, window_bounds = array<i64: 1, 8, 32>}, {transform_indices = @transform_1, window_bounds = array<i64: 1, 16, 32>}, {transform_indices = @transform_2, window_bounds = array<i64: 1, 16, 32>}, {transform_indices = @transform_3, window_bounds = array<i64: 1, 2, 8, 16>}, {transform_indices = @transform_4, window_bounds = array<i64: 1, 8, 32>}]} {
    %c0 = arith.constant 0 : index
    %c0_0 = arith.constant 0 : index
    %c0_1 = arith.constant 0 : index
    %0 = vector.load %arg1[%c0, %c0_0, %c0_1] : memref<1x8x32xf32, #tpu.memory_space<vmem>>, vector<1x8x32xf32>
    %1 = vector.shape_cast %0 : vector<1x8x32xf32> to vector<8x32xf32>
    %cst = arith.constant 2.500000e-01 : f32
    %2 = vector.broadcast %cst : f32 to vector<8x32xf32>
    %3 = arith.mulf %1, %2 : vector<8x32xf32>
    %c0_2 = arith.constant 0 : index
    %c0_3 = arith.constant 0 : index
    %c0_4 = arith.constant 0 : index
    %4 = vector.load %arg2[%c0_2, %c0_3, %c0_4] : memref<1x16x32xf32, #tpu.memory_space<vmem>>, vector<1x16x32xf32>
    %5 = vector.shape_cast %4 : vector<1x16x32xf32> to vector<16x32xf32>
    %c0_5 = arith.constant 0 : index
    %c0_6 = arith.constant 0 : index
    %c0_7 = arith.constant 0 : index
    %6 = vector.load %arg3[%c0_5, %c0_6, %c0_7] : memref<1x16x32xf32, #tpu.memory_space<vmem>>, vector<1x16x32xf32>
    %7 = vector.shape_cast %6 : vector<1x16x32xf32> to vector<16x32xf32>
    %c0_8 = arith.constant 0 : index
    %c0_9 = arith.constant 0 : index
    %c0_10 = arith.constant 0 : index
    %c0_11 = arith.constant 0 : index
    %8 = vector.load %arg4[%c0_8, %c0_9, %c0_10, %c0_11] : memref<1x2x8x16xf32, #tpu.memory_space<vmem>>, vector<1x2x8x16xf32>
    %9 = vector.shape_cast %8 : vector<1x2x8x16xf32> to vector<2x8x16xf32>
    %10 = vector.extract_strided_slice %3 {offsets = [0, 0], sizes = [8, 16], strides = [1, 1]} : vector<8x32xf32> to vector<8x16xf32>
    %11 = vector.extract_strided_slice %5 {offsets = [0, 0], sizes = [16, 16], strides = [1, 1]} : vector<16x32xf32> to vector<16x16xf32>
    %12 = vector.extract_strided_slice %7 {offsets = [0, 0], sizes = [16, 16], strides = [1, 1]} : vector<16x32xf32> to vector<16x16xf32>
    %cst_12 = arith.constant dense<0.000000e+00> : vector<8x16xf32>
    %13 = tpu.matmul %10, %11, %cst_12 {dimension_numbers = #tpu.dot_dimension_numbers<[1], [1], [0], [0], [0, 0, 1, 0], [], []>} : vector<8x16xf32>, vector<16x16xf32>, vector<8x16xf32> -> vector<8x16xf32>
    %14 = vector.extract_strided_slice %9 {offsets = [0, 0, 0], sizes = [1, 8, 16], strides = [1, 1, 1]} : vector<2x8x16xf32> to vector<1x8x16xf32>
    %15 = vector.shape_cast %14 : vector<1x8x16xf32> to vector<8x16xf32>
    %16 = arith.addf %13, %15 : vector<8x16xf32>
    %cst_13 = arith.constant dense<0xFF800000> : vector<8xf32>
    %17 = vector.multi_reduction <maximumf>, %16, %cst_13 [1] : vector<8x16xf32> to vector<8xf32>
    %18 = vector.shape_cast %17 : vector<8xf32> to vector<8x1xf32>
    %19 = vector.broadcast %18 : vector<8x1xf32> to vector<8x16xf32>
    %20 = arith.subf %16, %19 : vector<8x16xf32>
    %21 = math.exp %20 : vector<8x16xf32>
    %cst_14 = arith.constant dense<0.000000e+00> : vector<8xf32>
    %22 = vector.multi_reduction <add>, %21, %cst_14 [1] : vector<8x16xf32> to vector<8xf32>
    %23 = vector.shape_cast %22 : vector<8xf32> to vector<8x1xf32>
    %24 = tpu.reciprocal %23 {approx = true} : vector<8x1xf32> -> vector<8x1xf32>
    %25 = vector.broadcast %24 : vector<8x1xf32> to vector<8x16xf32>
    %26 = arith.mulf %21, %25 : vector<8x16xf32>
    %cst_15 = arith.constant dense<0.000000e+00> : vector<8x16xf32>
    %27 = tpu.matmul %26, %12, %cst_15 {dimension_numbers = #tpu.dot_dimension_numbers<[1], [0], [0], [1], [0, 0, 1, 1], [], []>} : vector<8x16xf32>, vector<16x16xf32>, vector<8x16xf32> -> vector<8x16xf32>
    %28 = vector.extract_strided_slice %3 {offsets = [0, 16], sizes = [8, 16], strides = [1, 1]} : vector<8x32xf32> to vector<8x16xf32>
    %29 = vector.extract_strided_slice %5 {offsets = [0, 16], sizes = [16, 16], strides = [1, 1]} : vector<16x32xf32> to vector<16x16xf32>
    %30 = vector.extract_strided_slice %7 {offsets = [0, 16], sizes = [16, 16], strides = [1, 1]} : vector<16x32xf32> to vector<16x16xf32>
    %cst_16 = arith.constant dense<0.000000e+00> : vector<8x16xf32>
    %31 = tpu.matmul %28, %29, %cst_16 {dimension_numbers = #tpu.dot_dimension_numbers<[1], [1], [0], [0], [0, 0, 1, 0], [], []>} : vector<8x16xf32>, vector<16x16xf32>, vector<8x16xf32> -> vector<8x16xf32>
    %32 = vector.extract_strided_slice %9 {offsets = [1, 0, 0], sizes = [1, 8, 16], strides = [1, 1, 1]} : vector<2x8x16xf32> to vector<1x8x16xf32>
    %33 = vector.shape_cast %32 : vector<1x8x16xf32> to vector<8x16xf32>
    %34 = arith.addf %31, %33 : vector<8x16xf32>
    %cst_17 = arith.constant dense<0xFF800000> : vector<8xf32>
    %35 = vector.multi_reduction <maximumf>, %34, %cst_17 [1] : vector<8x16xf32> to vector<8xf32>
    %36 = vector.shape_cast %35 : vector<8xf32> to vector<8x1xf32>
    %37 = vector.broadcast %36 : vector<8x1xf32> to vector<8x16xf32>
    %38 = arith.subf %34, %37 : vector<8x16xf32>
    %39 = math.exp %38 : vector<8x16xf32>
    %cst_18 = arith.constant dense<0.000000e+00> : vector<8xf32>
    %40 = vector.multi_reduction <add>, %39, %cst_18 [1] : vector<8x16xf32> to vector<8xf32>
    %41 = vector.shape_cast %40 : vector<8xf32> to vector<8x1xf32>
    %42 = tpu.reciprocal %41 {approx = true} : vector<8x1xf32> -> vector<8x1xf32>
    %43 = vector.broadcast %42 : vector<8x1xf32> to vector<8x16xf32>
    %44 = arith.mulf %39, %43 : vector<8x16xf32>
    %cst_19 = arith.constant dense<0.000000e+00> : vector<8x16xf32>
    %45 = tpu.matmul %44, %30, %cst_19 {dimension_numbers = #tpu.dot_dimension_numbers<[1], [0], [0], [1], [0, 0, 1, 1], [], []>} : vector<8x16xf32>, vector<16x16xf32>, vector<8x16xf32> -> vector<8x16xf32>
    %46 = tpu.concatenate %27, %45 in 1 : vector<8x16xf32>, vector<8x16xf32> -> vector<8x32xf32>
    %c0_20 = arith.constant 0 : index
    %c0_21 = arith.constant 0 : index
    %c0_22 = arith.constant 0 : index
    %47 = vector.load %arg5[%c0_20, %c0_21, %c0_22] : memref<1x8x32xf32, #tpu.memory_space<vmem>>, vector<1x8x32xf32>
    %48 = vector.shape_cast %47 : vector<1x8x32xf32> to vector<8x32xf32>
    %49 = vector.shape_cast %46 : vector<8x32xf32> to vector<1x8x32xf32>
    tpu.vector_store %arg5[%c0_20, %c0_21, %c0_22], %49 {strides = array<i32>} : memref<1x8x32xf32, #tpu.memory_space<vmem>>, vector<1x8x32xf32>,
    return
  }
  func.func @transform_0(%arg0: i32) -> (i32, i32, i32) {
    %c0_i32 = arith.constant 0 : i32
    %c0_i32_0 = arith.constant 0 : i32
    %c0_i32_1 = arith.constant 0 : i32
    return %arg0, %c0_i32, %c0_i32_0 : i32, i32, i32
  }
  func.func @transform_1(%arg0: i32) -> (i32, i32, i32) {
    %c0_i32 = arith.constant 0 : i32
    %c0_i32_0 = arith.constant 0 : i32
    %c0_i32_1 = arith.constant 0 : i32
    return %arg0, %c0_i32, %c0_i32_0 : i32, i32, i32
  }
  func.func @transform_2(%arg0: i32) -> (i32, i32, i32) {
    %c0_i32 = arith.constant 0 : i32
    %c0_i32_0 = arith.constant 0 : i32
    %c0_i32_1 = arith.constant 0 : i32
    return %arg0, %c0_i32, %c0_i32_0 : i32, i32, i32
  }
  func.func @transform_3(%arg0: i32) -> (i32, i32, i32, i32) {
    %c0_i32 = arith.constant 0 : i32
    %c0_i32_0 = arith.constant 0 : i32
    %c0_i32_1 = arith.constant 0 : i32
    %c0_i32_2 = arith.constant 0 : i32
    return %arg0, %c0_i32, %c0_i32_0, %c0_i32_1 : i32, i32, i32, i32
  }
  func.func @transform_4(%arg0: i32) -> (i32, i32, i32) {
    %c0_i32 = arith.constant 0 : i32
    %c0_i32_0 = arith.constant 0 : i32
    %c0_i32_1 = arith.constant 0 : i32
    return %arg0, %c0_i32, %c0_i32_0 : i32, i32, i32
  }
}

module attributes {stable_mosaic.version = 11 : i64} {
  func.func @_linear_kernel(%arg0: i32, %arg1: i32, %arg2: i32, %arg3: memref<16x64xf32, #tpu.memory_space<vmem>>, %arg4: memref<64x32xf32, #tpu.memory_space<vmem>>, %arg5: memref<1x32xf32, #tpu.memory_space<vmem>>, %arg6: memref<16x32xf32, #tpu.memory_space<vmem>>, %arg7: memref<16x32xf32, #tpu.memory_space<vmem>>, %arg8: memref<16x32xf32, #tpu.memory_space<vmem>>) attributes {dimension_semantics = [#tpu.dimension_semantics<parallel>, #tpu.dimension_semantics<parallel>, #tpu.dimension_semantics<arbitrary>], iteration_bounds = array<i64: 1, 1, 1>, scalar_prefetch = 0 : i64, scratch_operands = 1 : i64, tpu.core_type = #tpu.core_type<tc>, window_params = [{transform_indices = @transform_0, window_bounds = array<i64: 16, 64>}, {transform_indices = @transform_1, window_bounds = array<i64: 64, 32>}, {transform_indices = @transform_2, window_bounds = array<i64: 1, 32>}, {transform_indices = @transform_3, window_bounds = array<i64: 16, 32>}, {transform_indices = @transform_4, window_bounds = array<i64: 16, 32>}]} {
    %c0_i32 = arith.constant 0 : i32
    %0 = arith.cmpi eq, %arg2, %c0_i32 : i32
    %1 = arith.extui %0 : i1 to i32
    %c0_i32_0 = arith.constant 0 : i32
    %2 = arith.cmpi ne, %1, %c0_i32_0 : i32
    scf.if %2 {
      %cst_10 = arith.constant 0.000000e+00 : f32
      %12 = vector.broadcast %cst_10 : f32 to vector<16x32xf32>
      %c0_11 = arith.constant 0 : index
      %c0_12 = arith.constant 0 : index
      %13 = vector.load %arg8[%c0_11, %c0_12] : memref<16x32xf32, #tpu.memory_space<vmem>>, vector<16x32xf32>
      tpu.vector_store %arg8[%c0_11, %c0_12], %12 {strides = array<i32>} : memref<16x32xf32, #tpu.memory_space<vmem>>, vector<16x32xf32>,
    } else {
    }
    %c0 = arith.constant 0 : index
    %c0_1 = arith.constant 0 : index
    %3 = vector.load %arg8[%c0, %c0_1] : memref<16x32xf32, #tpu.memory_space<vmem>>, vector<16x32xf32>
    %c0_2 = arith.constant 0 : index
    %c0_3 = arith.constant 0 : index
    %4 = vector.load %arg3[%c0_2, %c0_3] : memref<16x64xf32, #tpu.memory_space<vmem>>, vector<16x64xf32>
    %c0_4 = arith.constant 0 : index
    %c0_5 = arith.constant 0 : index
    %5 = vector.load %arg4[%c0_4, %c0_5] : memref<64x32xf32, #tpu.memory_space<vmem>>, vector<64x32xf32>
    %cst = arith.constant dense<0.000000e+00> : vector<16x32xf32>
    %6 = tpu.matmul %4, %5, %cst {dimension_numbers = #tpu.dot_dimension_numbers<[1], [0], [0], [1], [0, 0, 1, 1], [], []>} : vector<16x64xf32>, vector<64x32xf32>, vector<16x32xf32> -> vector<16x32xf32>
    %7 = arith.addf %3, %6 : vector<16x32xf32>
    %c0_6 = arith.constant 0 : index
    %c0_7 = arith.constant 0 : index
    %8 = vector.load %arg8[%c0_6, %c0_7] : memref<16x32xf32, #tpu.memory_space<vmem>>, vector<16x32xf32>
    tpu.vector_store %arg8[%c0_6, %c0_7], %7 {strides = array<i32>} : memref<16x32xf32, #tpu.memory_space<vmem>>, vector<16x32xf32>,
    %c0_i32_8 = arith.constant 0 : i32
    %9 = arith.cmpi eq, %arg2, %c0_i32_8 : i32
    %10 = arith.extui %9 : i1 to i32
    %c0_i32_9 = arith.constant 0 : i32
    %11 = arith.cmpi ne, %10, %c0_i32_9 : i32
    scf.if %11 {
      %c0_10 = arith.constant 0 : index
      %c0_11 = arith.constant 0 : index
      %12 = vector.load %arg8[%c0_10, %c0_11] : memref<16x32xf32, #tpu.memory_space<vmem>>, vector<16x32xf32>
      %c0_12 = arith.constant 0 : index
      %c0_13 = arith.constant 0 : index
      %13 = vector.load %arg5[%c0_12, %c0_13] : memref<1x32xf32, #tpu.memory_space<vmem>>, vector<1x32xf32>
      %14 = vector.broadcast %13 : vector<1x32xf32> to vector<16x32xf32>
      %15 = arith.addf %12, %14 : vector<16x32xf32>
      %c0_14 = arith.constant 0 : index
      %c0_15 = arith.constant 0 : index
      %16 = vector.load %arg6[%c0_14, %c0_15] : memref<16x32xf32, #tpu.memory_space<vmem>>, vector<16x32xf32>
      %17 = arith.addf %15, %16 : vector<16x32xf32>
      %c0_16 = arith.constant 0 : index
      %c0_17 = arith.constant 0 : index
      %18 = vector.load %arg7[%c0_16, %c0_17] : memref<16x32xf32, #tpu.memory_space<vmem>>, vector<16x32xf32>
      tpu.vector_store %arg7[%c0_16, %c0_17], %17 {strides = array<i32>} : memref<16x32xf32, #tpu.memory_space<vmem>>, vector<16x32xf32>,
    } else {
    }
    return
  }
  func.func @transform_0(%arg0: i32, %arg1: i32, %arg2: i32) -> (i32, i32) {
    %c0_i32 = arith.constant 0 : i32
    return %arg0, %arg2 : i32, i32
  }
  func.func @transform_1(%arg0: i32, %arg1: i32, %arg2: i32) -> (i32, i32) {
    %c0_i32 = arith.constant 0 : i32
    return %arg2, %arg1 : i32, i32
  }
  func.func @transform_2(%arg0: i32, %arg1: i32, %arg2: i32) -> (i32, i32) {
    %c0_i32 = arith.constant 0 : i32
    %c0_i32_0 = arith.constant 0 : i32
    return %c0_i32, %arg1 : i32, i32
  }
  func.func @transform_3(%arg0: i32, %arg1: i32, %arg2: i32) -> (i32, i32) {
    %c0_i32 = arith.constant 0 : i32
    return %arg0, %arg1 : i32, i32
  }
  func.func @transform_4(%arg0: i32, %arg1: i32, %arg2: i32) -> (i32, i32) {
    %c0_i32 = arith.constant 0 : i32
    return %arg0, %arg1 : i32, i32
  }
}

module attributes {stable_mosaic.version = 11 : i64} {
  func.func @_linear_kernel(%arg0: i32, %arg1: i32, %arg2: i32, %arg3: memref<32x32xf32, #tpu.memory_space<vmem>>, %arg4: memref<32x32xf32, #tpu.memory_space<vmem>>, %arg5: memref<1x32xf32, #tpu.memory_space<vmem>>, %arg6: memref<32x32xf32, #tpu.memory_space<vmem>>, %arg7: memref<32x32xf32, #tpu.memory_space<vmem>>, %arg8: memref<32x32xf32, #tpu.memory_space<vmem>>) attributes {dimension_semantics = [#tpu.dimension_semantics<parallel>, #tpu.dimension_semantics<parallel>, #tpu.dimension_semantics<arbitrary>], iteration_bounds = array<i64: 1, 1, 1>, scalar_prefetch = 0 : i64, scratch_operands = 1 : i64, tpu.core_type = #tpu.core_type<tc>, window_params = [{transform_indices = @transform_0, window_bounds = array<i64: 32, 32>}, {transform_indices = @transform_1, window_bounds = array<i64: 32, 32>}, {transform_indices = @transform_2, window_bounds = array<i64: 1, 32>}, {transform_indices = @transform_3, window_bounds = array<i64: 32, 32>}, {transform_indices = @transform_4, window_bounds = array<i64: 32, 32>}]} {
    %c0_i32 = arith.constant 0 : i32
    %0 = arith.cmpi eq, %arg2, %c0_i32 : i32
    %1 = arith.extui %0 : i1 to i32
    %c0_i32_0 = arith.constant 0 : i32
    %2 = arith.cmpi ne, %1, %c0_i32_0 : i32
    scf.if %2 {
      %cst_10 = arith.constant 0.000000e+00 : f32
      %12 = vector.broadcast %cst_10 : f32 to vector<32x32xf32>
      %c0_11 = arith.constant 0 : index
      %c0_12 = arith.constant 0 : index
      %13 = vector.load %arg8[%c0_11, %c0_12] : memref<32x32xf32, #tpu.memory_space<vmem>>, vector<32x32xf32>
      tpu.vector_store %arg8[%c0_11, %c0_12], %12 {strides = array<i32>} : memref<32x32xf32, #tpu.memory_space<vmem>>, vector<32x32xf32>,
    } else {
    }
    %c0 = arith.constant 0 : index
    %c0_1 = arith.constant 0 : index
    %3 = vector.load %arg8[%c0, %c0_1] : memref<32x32xf32, #tpu.memory_space<vmem>>, vector<32x32xf32>
    %c0_2 = arith.constant 0 : index
    %c0_3 = arith.constant 0 : index
    %4 = vector.load %arg3[%c0_2, %c0_3] : memref<32x32xf32, #tpu.memory_space<vmem>>, vector<32x32xf32>
    %c0_4 = arith.constant 0 : index
    %c0_5 = arith.constant 0 : index
    %5 = vector.load %arg4[%c0_4, %c0_5] : memref<32x32xf32, #tpu.memory_space<vmem>>, vector<32x32xf32>
    %cst = arith.constant dense<0.000000e+00> : vector<32x32xf32>
    %6 = tpu.matmul %4, %5, %cst {dimension_numbers = #tpu.dot_dimension_numbers<[1], [0], [0], [1], [0, 0, 1, 1], [], []>} : vector<32x32xf32>, vector<32x32xf32>, vector<32x32xf32> -> vector<32x32xf32>
    %7 = arith.addf %3, %6 : vector<32x32xf32>
    %c0_6 = arith.constant 0 : index
    %c0_7 = arith.constant 0 : index
    %8 = vector.load %arg8[%c0_6, %c0_7] : memref<32x32xf32, #tpu.memory_space<vmem>>, vector<32x32xf32>
    tpu.vector_store %arg8[%c0_6, %c0_7], %7 {strides = array<i32>} : memref<32x32xf32, #tpu.memory_space<vmem>>, vector<32x32xf32>,
    %c0_i32_8 = arith.constant 0 : i32
    %9 = arith.cmpi eq, %arg2, %c0_i32_8 : i32
    %10 = arith.extui %9 : i1 to i32
    %c0_i32_9 = arith.constant 0 : i32
    %11 = arith.cmpi ne, %10, %c0_i32_9 : i32
    scf.if %11 {
      %c0_10 = arith.constant 0 : index
      %c0_11 = arith.constant 0 : index
      %12 = vector.load %arg8[%c0_10, %c0_11] : memref<32x32xf32, #tpu.memory_space<vmem>>, vector<32x32xf32>
      %c0_12 = arith.constant 0 : index
      %c0_13 = arith.constant 0 : index
      %13 = vector.load %arg5[%c0_12, %c0_13] : memref<1x32xf32, #tpu.memory_space<vmem>>, vector<1x32xf32>
      %14 = vector.broadcast %13 : vector<1x32xf32> to vector<32x32xf32>
      %15 = arith.addf %12, %14 : vector<32x32xf32>
      %c0_14 = arith.constant 0 : index
      %c0_15 = arith.constant 0 : index
      %16 = vector.load %arg6[%c0_14, %c0_15] : memref<32x32xf32, #tpu.memory_space<vmem>>, vector<32x32xf32>
      %17 = arith.addf %15, %16 : vector<32x32xf32>
      %c0_16 = arith.constant 0 : index
      %c0_17 = arith.constant 0 : index
      %18 = vector.load %arg7[%c0_16, %c0_17] : memref<32x32xf32, #tpu.memory_space<vmem>>, vector<32x32xf32>
      tpu.vector_store %arg7[%c0_16, %c0_17], %17 {strides = array<i32>} : memref<32x32xf32, #tpu.memory_space<vmem>>, vector<32x32xf32>,
    } else {
    }
    return
  }
  func.func @transform_0(%arg0: i32, %arg1: i32, %arg2: i32) -> (i32, i32) {
    %c0_i32 = arith.constant 0 : i32
    return %arg0, %arg2 : i32, i32
  }
  func.func @transform_1(%arg0: i32, %arg1: i32, %arg2: i32) -> (i32, i32) {
    %c0_i32 = arith.constant 0 : i32
    return %arg2, %arg1 : i32, i32
  }
  func.func @transform_2(%arg0: i32, %arg1: i32, %arg2: i32) -> (i32, i32) {
    %c0_i32 = arith.constant 0 : i32
    %c0_i32_0 = arith.constant 0 : i32
    return %c0_i32, %arg1 : i32, i32
  }
  func.func @transform_3(%arg0: i32, %arg1: i32, %arg2: i32) -> (i32, i32) {
    %c0_i32 = arith.constant 0 : i32
    return %arg0, %arg1 : i32, i32
  }
  func.func @transform_4(%arg0: i32, %arg1: i32, %arg2: i32) -> (i32, i32) {
    %c0_i32 = arith.constant 0 : i32
    return %arg0, %arg1 : i32, i32
  }
}

module attributes {stable_mosaic.version = 11 : i64} {
  func.func @_linear_kernel(%arg0: i32, %arg1: i32, %arg2: i32, %arg3: memref<32x32xf32, #tpu.memory_space<vmem>>, %arg4: memref<32x48xf32, #tpu.memory_space<vmem>>, %arg5: memref<1x48xf32, #tpu.memory_space<vmem>>, %arg6: memref<32x48xf32, #tpu.memory_space<vmem>>, %arg7: memref<32x48xf32, #tpu.memory_space<vmem>>) attributes {dimension_semantics = [#tpu.dimension_semantics<parallel>, #tpu.dimension_semantics<parallel>, #tpu.dimension_semantics<arbitrary>], iteration_bounds = array<i64: 1, 1, 1>, scalar_prefetch = 0 : i64, scratch_operands = 1 : i64, tpu.core_type = #tpu.core_type<tc>, window_params = [{transform_indices = @transform_0, window_bounds = array<i64: 32, 32>}, {transform_indices = @transform_1, window_bounds = array<i64: 32, 48>}, {transform_indices = @transform_2, window_bounds = array<i64: 1, 48>}, {transform_indices = @transform_3, window_bounds = array<i64: 32, 48>}]} {
    %c0_i32 = arith.constant 0 : i32
    %0 = arith.cmpi eq, %arg2, %c0_i32 : i32
    %1 = arith.extui %0 : i1 to i32
    %c0_i32_0 = arith.constant 0 : i32
    %2 = arith.cmpi ne, %1, %c0_i32_0 : i32
    scf.if %2 {
      %cst_10 = arith.constant 0.000000e+00 : f32
      %12 = vector.broadcast %cst_10 : f32 to vector<32x48xf32>
      %c0_11 = arith.constant 0 : index
      %c0_12 = arith.constant 0 : index
      %13 = vector.load %arg7[%c0_11, %c0_12] : memref<32x48xf32, #tpu.memory_space<vmem>>, vector<32x48xf32>
      tpu.vector_store %arg7[%c0_11, %c0_12], %12 {strides = array<i32>} : memref<32x48xf32, #tpu.memory_space<vmem>>, vector<32x48xf32>,
    } else {
    }
    %c0 = arith.constant 0 : index
    %c0_1 = arith.constant 0 : index
    %3 = vector.load %arg7[%c0, %c0_1] : memref<32x48xf32, #tpu.memory_space<vmem>>, vector<32x48xf32>
    %c0_2 = arith.constant 0 : index
    %c0_3 = arith.constant 0 : index
    %4 = vector.load %arg3[%c0_2, %c0_3] : memref<32x32xf32, #tpu.memory_space<vmem>>, vector<32x32xf32>
    %c0_4 = arith.constant 0 : index
    %c0_5 = arith.constant 0 : index
    %5 = vector.load %arg4[%c0_4, %c0_5] : memref<32x48xf32, #tpu.memory_space<vmem>>, vector<32x48xf32>
    %cst = arith.constant dense<0.000000e+00> : vector<32x48xf32>
    %6 = tpu.matmul %4, %5, %cst {dimension_numbers = #tpu.dot_dimension_numbers<[1], [0], [0], [1], [0, 0, 1, 1], [], []>} : vector<32x32xf32>, vector<32x48xf32>, vector<32x48xf32> -> vector<32x48xf32>
    %7 = arith.addf %3, %6 : vector<32x48xf32>
    %c0_6 = arith.constant 0 : index
    %c0_7 = arith.constant 0 : index
    %8 = vector.load %arg7[%c0_6, %c0_7] : memref<32x48xf32, #tpu.memory_space<vmem>>, vector<32x48xf32>
    tpu.vector_store %arg7[%c0_6, %c0_7], %7 {strides = array<i32>} : memref<32x48xf32, #tpu.memory_space<vmem>>, vector<32x48xf32>,
    %c0_i32_8 = arith.constant 0 : i32
    %9 = arith.cmpi eq, %arg2, %c0_i32_8 : i32
    %10 = arith.extui %9 : i1 to i32
    %c0_i32_9 = arith.constant 0 : i32
    %11 = arith.cmpi ne, %10, %c0_i32_9 : i32
    scf.if %11 {
      %c0_10 = arith.constant 0 : index
      %c0_11 = arith.constant 0 : index
      %12 = vector.load %arg7[%c0_10, %c0_11] : memref<32x48xf32, #tpu.memory_space<vmem>>, vector<32x48xf32>
      %c0_12 = arith.constant 0 : index
      %c0_13 = arith.constant 0 : index
      %13 = vector.load %arg5[%c0_12, %c0_13] : memref<1x48xf32, #tpu.memory_space<vmem>>, vector<1x48xf32>
      %14 = vector.broadcast %13 : vector<1x48xf32> to vector<32x48xf32>
      %15 = arith.addf %12, %14 : vector<32x48xf32>
      %16 = arith.mulf %15, %15 : vector<32x48xf32>
      %17 = arith.mulf %15, %16 : vector<32x48xf32>
      %cst_14 = arith.constant 4.471500e-02 : f32
      %18 = vector.broadcast %cst_14 : f32 to vector<32x48xf32>
      %19 = arith.mulf %18, %17 : vector<32x48xf32>
      %20 = arith.addf %15, %19 : vector<32x48xf32>
      %cst_15 = arith.constant 0.797884583 : f32
      %21 = vector.broadcast %cst_15 : f32 to vector<32x48xf32>
      %22 = arith.mulf %21, %20 : vector<32x48xf32>
      %23 = math.tanh %22 : vector<32x48xf32>
      %cst_16 = arith.constant 1.000000e+00 : f32
      %24 = vector.broadcast %cst_16 : f32 to vector<32x48xf32>
      %25 = arith.addf %24, %23 : vector<32x48xf32>
      %cst_17 = arith.constant 5.000000e-01 : f32
      %26 = vector.broadcast %cst_17 : f32 to vector<32x48xf32>
      %27 = arith.mulf %26, %25 : vector<32x48xf32>
      %28 = arith.mulf %15, %27 : vector<32x48xf32>
      %c0_18 = arith.constant 0 : index
      %c0_19 = arith.constant 0 : index
      %29 = vector.load %arg6[%c0_18, %c0_19] : memref<32x48xf32, #tpu.memory_space<vmem>>, vector<32x48xf32>
      tpu.vector_store %arg6[%c0_18, %c0_19], %28 {strides = array<i32>} : memref<32x48xf32, #tpu.memory_space<vmem>>, vector<32x48xf32>,
    } else {
    }
    return
  }
  func.func @transform_0(%arg0: i32, %arg1: i32, %arg2: i32) -> (i32, i32) {
    %c0_i32 = arith.constant 0 : i32
    return %arg0, %arg2 : i32, i32
  }
  func.func @transform_1(%arg0: i32, %arg1: i32, %arg2: i32) -> (i32, i32) {
    %c0_i32 = arith.constant 0 : i32
    return %arg2, %arg1 : i32, i32
  }
  func.func @transform_2(%arg0: i32, %arg1: i32, %arg2: i32) -> (i32, i32) {
    %c0_i32 = arith.constant 0 : i32
    %c0_i32_0 = arith.constant 0 : i32
    return %c0_i32, %arg1 : i32, i32
  }
  func.func @transform_3(%arg0: i32, %arg1: i32, %arg2: i32) -> (i32, i32) {
    %c0_i32 = arith.constant 0 : i32
    return %arg0, %arg1 : i32, i32
  }
}

module attributes {stable_mosaic.version = 11 : i64} {
  func.func @_linear_kernel(%arg0: i32, %arg1: i32, %arg2: i32, %arg3: memref<32x48xf32, #tpu.memory_space<vmem>>, %arg4: memref<48x32xf32, #tpu.memory_space<vmem>>, %arg5: memref<1x32xf32, #tpu.memory_space<vmem>>, %arg6: memref<32x32xf32, #tpu.memory_space<vmem>>, %arg7: memref<32x32xf32, #tpu.memory_space<vmem>>, %arg8: memref<32x32xf32, #tpu.memory_space<vmem>>) attributes {dimension_semantics = [#tpu.dimension_semantics<parallel>, #tpu.dimension_semantics<parallel>, #tpu.dimension_semantics<arbitrary>], iteration_bounds = array<i64: 1, 1, 1>, scalar_prefetch = 0 : i64, scratch_operands = 1 : i64, tpu.core_type = #tpu.core_type<tc>, window_params = [{transform_indices = @transform_0, window_bounds = array<i64: 32, 48>}, {transform_indices = @transform_1, window_bounds = array<i64: 48, 32>}, {transform_indices = @transform_2, window_bounds = array<i64: 1, 32>}, {transform_indices = @transform_3, window_bounds = array<i64: 32, 32>}, {transform_indices = @transform_4, window_bounds = array<i64: 32, 32>}]} {
    %c0_i32 = arith.constant 0 : i32
    %0 = arith.cmpi eq, %arg2, %c0_i32 : i32
    %1 = arith.extui %0 : i1 to i32
    %c0_i32_0 = arith.constant 0 : i32
    %2 = arith.cmpi ne, %1, %c0_i32_0 : i32
    scf.if %2 {
      %cst_10 = arith.constant 0.000000e+00 : f32
      %12 = vector.broadcast %cst_10 : f32 to vector<32x32xf32>
      %c0_11 = arith.constant 0 : index
      %c0_12 = arith.constant 0 : index
      %13 = vector.load %arg8[%c0_11, %c0_12] : memref<32x32xf32, #tpu.memory_space<vmem>>, vector<32x32xf32>
      tpu.vector_store %arg8[%c0_11, %c0_12], %12 {strides = array<i32>} : memref<32x32xf32, #tpu.memory_space<vmem>>, vector<32x32xf32>,
    } else {
    }
    %c0 = arith.constant 0 : index
    %c0_1 = arith.constant 0 : index
    %3 = vector.load %arg8[%c0, %c0_1] : memref<32x32xf32, #tpu.memory_space<vmem>>, vector<32x32xf32>
    %c0_2 = arith.constant 0 : index
    %c0_3 = arith.constant 0 : index
    %4 = vector.load %arg3[%c0_2, %c0_3] : memref<32x48xf32, #tpu.memory_space<vmem>>, vector<32x48xf32>
    %c0_4 = arith.constant 0 : index
    %c0_5 = arith.constant 0 : index
    %5 = vector.load %arg4[%c0_4, %c0_5] : memref<48x32xf32, #tpu.memory_space<vmem>>, vector<48x32xf32>
    %cst = arith.constant dense<0.000000e+00> : vector<32x32xf32>
    %6 = tpu.matmul %4, %5, %cst {dimension_numbers = #tpu.dot_dimension_numbers<[1], [0], [0], [1], [0, 0, 1, 1], [], []>} : vector<32x48xf32>, vector<48x32xf32>, vector<32x32xf32> -> vector<32x32xf32>
    %7 = arith.addf %3, %6 : vector<32x32xf32>
    %c0_6 = arith.constant 0 : index
    %c0_7 = arith.constant 0 : index
    %8 = vector.load %arg8[%c0_6, %c0_7] : memref<32x32xf32, #tpu.memory_space<vmem>>, vector<32x32xf32>
    tpu.vector_store %arg8[%c0_6, %c0_7], %7 {strides = array<i32>} : memref<32x32xf32, #tpu.memory_space<vmem>>, vector<32x32xf32>,
    %c0_i32_8 = arith.constant 0 : i32
    %9 = arith.cmpi eq, %arg2, %c0_i32_8 : i32
    %10 = arith.extui %9 : i1 to i32
    %c0_i32_9 = arith.constant 0 : i32
    %11 = arith.cmpi ne, %10, %c0_i32_9 : i32
    scf.if %11 {
      %c0_10 = arith.constant 0 : index
      %c0_11 = arith.constant 0 : index
      %12 = vector.load %arg8[%c0_10, %c0_11] : memref<32x32xf32, #tpu.memory_space<vmem>>, vector<32x32xf32>
      %c0_12 = arith.constant 0 : index
      %c0_13 = arith.constant 0 : index
      %13 = vector.load %arg5[%c0_12, %c0_13] : memref<1x32xf32, #tpu.memory_space<vmem>>, vector<1x32xf32>
      %14 = vector.broadcast %13 : vector<1x32xf32> to vector<32x32xf32>
      %15 = arith.addf %12, %14 : vector<32x32xf32>
      %c0_14 = arith.constant 0 : index
      %c0_15 = arith.constant 0 : index
      %16 = vector.load %arg6[%c0_14, %c0_15] : memref<32x32xf32, #tpu.memory_space<vmem>>, vector<32x32xf32>
      %17 = arith.addf %15, %16 : vector<32x32xf32>
      %c0_16 = arith.constant 0 : index
      %c0_17 = arith.constant 0 : index
      %18 = vector.load %arg7[%c0_16, %c0_17] : memref<32x32xf32, #tpu.memory_space<vmem>>, vector<32x32xf32>
      tpu.vector_store %arg7[%c0_16, %c0_17], %17 {strides = array<i32>} : memref<32x32xf32, #tpu.memory_space<vmem>>, vector<32x32xf32>,
    } else {
    }
    return
  }
  func.func @transform_0(%arg0: i32, %arg1: i32, %arg2: i32) -> (i32, i32) {
    %c0_i32 = arith.constant 0 : i32
    return %arg0, %arg2 : i32, i32
  }
  func.func @transform_1(%arg0: i32, %arg1: i32, %arg2: i32) -> (i32, i32) {
    %c0_i32 = arith.constant 0 : i32
    return %arg2, %arg1 : i32, i32
  }
  func.func @transform_2(%arg0: i32, %arg1: i32, %arg2: i32) -> (i32, i32) {
    %c0_i32 = arith.constant 0 : i32
    %c0_i32_0 = arith.constant 0 : i32
    return %c0_i32, %arg1 : i32, i32
  }
  func.func @transform_3(%arg0: i32, %arg1: i32, %arg2: i32) -> (i32, i32) {
    %c0_i32 = arith.constant 0 : i32
    return %arg0, %arg1 : i32, i32
  }
  func.func @transform_4(%arg0: i32, %arg1: i32, %arg2: i32) -> (i32, i32) {
    %c0_i32 = arith.constant 0 : i32
    return %arg0, %arg1 : i32, i32
  }
}

module attributes {stable_mosaic.version = 11 : i64} {
  func.func @_attention_kernel(%arg0: i32, %arg1: memref<1x16x32xf32, #tpu.memory_space<vmem>>, %arg2: memref<1x8x32xf32, #tpu.memory_space<vmem>>, %arg3: memref<1x8x32xf32, #tpu.memory_space<vmem>>, %arg4: memref<1x2x16x8xf32, #tpu.memory_space<vmem>>, %arg5: memref<1x16x32xf32, #tpu.memory_space<vmem>>) attributes {dimension_semantics = [#tpu.dimension_semantics<parallel>], iteration_bounds = array<i64: 2>, scalar_prefetch = 0 : i64, scratch_operands = 0 : i64, tpu.core_type = #tpu.core_type<tc>, window_params = [{transform_indices = @transform_0, window_bounds = array<i64: 1, 16, 32>}, {transform_indices = @transform_1, window_bounds = array<i64: 1, 8, 32>}, {transform_indices = @transform_2, window_bounds = array<i64: 1, 8, 32>}, {transform_indices = @transform_3, window_bounds = array<i64: 1, 2, 16, 8>}, {transform_indices = @transform_4, window_bounds = array<i64: 1, 16, 32>}]} {
    %c0 = arith.constant 0 : index
    %c0_0 = arith.constant 0 : index
    %c0_1 = arith.constant 0 : index
    %0 = vector.load %arg1[%c0, %c0_0, %c0_1] : memref<1x16x32xf32, #tpu.memory_space<vmem>>, vector<1x16x32xf32>
    %1 = vector.shape_cast %0 : vector<1x16x32xf32> to vector<16x32xf32>
    %cst = arith.constant 2.500000e-01 : f32
    %2 = vector.broadcast %cst : f32 to vector<16x32xf32>
    %3 = arith.mulf %1, %2 : vector<16x32xf32>
    %c0_2 = arith.constant 0 : index
    %c0_3 = arith.constant 0 : index
    %c0_4 = arith.constant 0 : index
    %4 = vector.load %arg2[%c0_2, %c0_3, %c0_4] : memref<1x8x32xf32, #tpu.memory_space<vmem>>, vector<1x8x32xf32>
    %5 = vector.shape_cast %4 : vector<1x8x32xf32> to vector<8x32xf32>
    %c0_5 = arith.constant 0 : index
    %c0_6 = arith.constant 0 : index
    %c0_7 = arith.constant 0 : index
    %6 = vector.load %arg3[%c0_5, %c0_6, %c0_7] : memref<1x8x32xf32, #tpu.memory_space<vmem>>, vector<1x8x32xf32>
    %7 = vector.shape_cast %6 : vector<1x8x32xf32> to vector<8x32xf32>
    %c0_8 = arith.constant 0 : index
    %c0_9 = arith.constant 0 : index
    %c0_10 = arith.constant 0 : index
    %c0_11 = arith.constant 0 : index
    %8 = vector.load %arg4[%c0_8, %c0_9, %c0_10, %c0_11] : memref<1x2x16x8xf32, #tpu.memory_space<vmem>>, vector<1x2x16x8xf32>
    %9 = vector.shape_cast %8 : vector<1x2x16x8xf32> to vector<2x16x8xf32>
    %10 = vector.extract_strided_slice %3 {offsets = [0, 0], sizes = [16, 16], strides = [1, 1]} : vector<16x32xf32> to vector<16x16xf32>
    %11 = vector.extract_strided_slice %5 {offsets = [0, 0], sizes = [8, 16], strides = [1, 1]} : vector<8x32xf32> to vector<8x16xf32>
    %12 = vector.extract_strided_slice %7 {offsets = [0, 0], sizes = [8, 16], strides = [1, 1]} : vector<8x32xf32> to vector<8x16xf32>
    %cst_12 = arith.constant dense<0.000000e+00> : vector<16x8xf32>
    %13 = tpu.matmul %10, %11, %cst_12 {dimension_numbers = #tpu.dot_dimension_numbers<[1], [1], [0], [0], [0, 0, 1, 0], [], []>} : vector<16x16xf32>, vector<8x16xf32>, vector<16x8xf32> -> vector<16x8xf32>
    %14 = vector.extract_strided_slice %9 {offsets = [0, 0, 0], sizes = [1, 16, 8], strides = [1, 1, 1]} : vector<2x16x8xf32> to vector<1x16x8xf32>
    %15 = vector.shape_cast %14 : vector<1x16x8xf32> to vector<16x8xf32>
    %16 = arith.addf %13, %15 : vector<16x8xf32>
    %cst_13 = arith.constant dense<0xFF800000> : vector<16xf32>
    %17 = vector.multi_reduction <maximumf>, %16, %cst_13 [1] : vector<16x8xf32> to vector<16xf32>
    %18 = vector.shape_cast %17 : vector<16xf32> to vector<16x1xf32>
    %19 = vector.broadcast %18 : vector<16x1xf32> to vector<16x8xf32>
    %20 = arith.subf %16, %19 : vector<16x8xf32>
    %21 = math.exp %20 : vector<16x8xf32>
    %cst_14 = arith.constant dense<0.000000e+00> : vector<16xf32>
    %22 = vector.multi_reduction <add>, %21, %cst_14 [1] : vector<16x8xf32> to vector<16xf32>
    %23 = vector.shape_cast %22 : vector<16xf32> to vector<16x1xf32>
    %24 = tpu.reciprocal %23 {approx = true} : vector<16x1xf32> -> vector<16x1xf32>
    %25 = vector.broadcast %24 : vector<16x1xf32> to vector<16x8xf32>
    %26 = arith.mulf %21, %25 : vector<16x8xf32>
    %cst_15 = arith.constant dense<0.000000e+00> : vector<16x16xf32>
    %27 = tpu.matmul %26, %12, %cst_15 {dimension_numbers = #tpu.dot_dimension_numbers<[1], [0], [0], [1], [0, 0, 1, 1], [], []>} : vector<16x8xf32>, vector<8x16xf32>, vector<16x16xf32> -> vector<16x16xf32>
    %28 = vector.extract_strided_slice %3 {offsets = [0, 16], sizes = [16, 16], strides = [1, 1]} : vector<16x32xf32> to vector<16x16xf32>
    %29 = vector.extract_strided_slice %5 {offsets = [0, 16], sizes = [8, 16], strides = [1, 1]} : vector<8x32xf32> to vector<8x16xf32>
    %30 = vector.extract_strided_slice %7 {offsets = [0, 16], sizes = [8, 16], strides = [1, 1]} : vector<8x32xf32> to vector<8x16xf32>
    %cst_16 = arith.constant dense<0.000000e+00> : vector<16x8xf32>
    %31 = tpu.matmul %28, %29, %cst_16 {dimension_numbers = #tpu.dot_dimension_numbers<[1], [1], [0], [0], [0, 0, 1, 0], [], []>} : vector<16x16xf32>, vector<8x16xf32>, vector<16x8xf32> -> vector<16x8xf32>
    %32 = vector.extract_strided_slice %9 {offsets = [1, 0, 0], sizes = [1, 16, 8], strides = [1, 1, 1]} : vector<2x16x8xf32> to vector<1x16x8xf32>
    %33 = vector.shape_cast %32 : vector<1x16x8xf32> to vector<16x8xf32>
    %34 = arith.addf %31, %33 : vector<16x8xf32>
    %cst_17 = arith.constant dense<0xFF800000> : vector<16xf32>
    %35 = vector.multi_reduction <maximumf>, %34, %cst_17 [1] : vector<16x8xf32> to vector<16xf32>
    %36 = vector.shape_cast %35 : vector<16xf32> to vector<16x1xf32>
    %37 = vector.broadcast %36 : vector<16x1xf32> to vector<16x8xf32>
    %38 = arith.subf %34, %37 : vector<16x8xf32>
    %39 = math.exp %38 : vector<16x8xf32>
    %cst_18 = arith.constant dense<0.000000e+00> : vector<16xf32>
    %40 = vector.multi_reduction <add>, %39, %cst_18 [1] : vector<16x8xf32> to vector<16xf32>
    %41 = vector.shape_cast %40 : vector<16xf32> to vector<16x1xf32>
    %42 = tpu.reciprocal %41 {approx = true} : vector<16x1xf32> -> vector<16x1xf32>
    %43 = vector.broadcast %42 : vector<16x1xf32> to vector<16x8xf32>
    %44 = arith.mulf %39, %43 : vector<16x8xf32>
    %cst_19 = arith.constant dense<0.000000e+00> : vector<16x16xf32>
    %45 = tpu.matmul %44, %30, %cst_19 {dimension_numbers = #tpu.dot_dimension_numbers<[1], [0], [0], [1], [0, 0, 1, 1], [], []>} : vector<16x8xf32>, vector<8x16xf32>, vector<16x16xf32> -> vector<16x16xf32>
    %46 = tpu.concatenate %27, %45 in 1 : vector<16x16xf32>, vector<16x16xf32> -> vector<16x32xf32>
    %c0_20 = arith.constant 0 : index
    %c0_21 = arith.constant 0 : index
    %c0_22 = arith.constant 0 : index
    %47 = vector.load %arg5[%c0_20, %c0_21, %c0_22] : memref<1x16x32xf32, #tpu.memory_space<vmem>>, vector<1x16x32xf32>
    %48 = vector.shape_cast %47 : vector<1x16x32xf32> to vector<16x32xf32>
    %49 = vector.shape_cast %46 : vector<16x32xf32> to vector<1x16x32xf32>
    tpu.vector_store %arg5[%c0_20, %c0_21, %c0_22], %49 {strides = array<i32>} : memref<1x16x32xf32, #tpu.memory_space<vmem>>, vector<1x16x32xf32>,
    return
  }
  func.func @transform_0(%arg0: i32) -> (i32, i32, i32) {
    %c0_i32 = arith.constant 0 : i32
    %c0_i32_0 = arith.constant 0 : i32
    %c0_i32_1 = arith.constant 0 : i32
    return %arg0, %c0_i32, %c0_i32_0 : i32, i32, i32
  }
  func.func @transform_1(%arg0: i32) -> (i32, i32, i32) {
    %c0_i32 = arith.constant 0 : i32
    %c0_i32_0 = arith.constant 0 : i32
    %c0_i32_1 = arith.constant 0 : i32
    return %arg0, %c0_i32, %c0_i32_0 : i32, i32, i32
  }
  func.func @transform_2(%arg0: i32) -> (i32, i32, i32) {
    %c0_i32 = arith.constant 0 : i32
    %c0_i32_0 = arith.constant 0 : i32
    %c0_i32_1 = arith.constant 0 : i32
    return %arg0, %c0_i32, %c0_i32_0 : i32, i32, i32
  }
  func.func @transform_3(%arg0: i32) -> (i32, i32, i32, i32) {
    %c0_i32 = arith.constant 0 : i32
    %c0_i32_0 = arith.constant 0 : i32
    %c0_i32_1 = arith.constant 0 : i32
    %c0_i32_2 = arith.constant 0 : i32
    return %arg0, %c0_i32, %c0_i32_0, %c0_i32_1 : i32, i32, i32, i32
  }
  func.func @transform_4(%arg0: i32) -> (i32, i32, i32) {
    %c0_i32 = arith.constant 0 : i32
    %c0_i32_0 = arith.constant 0 : i32
    %c0_i32_1 = arith.constant 0 : i32
    return %arg0, %c0_i32, %c0_i32_0 : i32, i32, i32
  }
}

</mosaic_0001>

<llo_original>
// kernel: encoder_co_layer_fwd.19
$region0: #{encoder_co_layer_fwd.19}
  #allocation0 [shape = 'u32[]', space=smem, size = 0x4, offset = 0x4, fixed_abs, tag = 'smem constant byte address 0x4 - core index']
  #allocation1 [shape = 'u32[144,128]{1,0:T(1,128)}', space=vmem, size = 0x12000, scoped, tag = 'internal scratch']
  %s0 = inlined_call_operand.vmem [shape: f32[32,32], index: 0, kind: input, shape index: {}]
  %s1 = inlined_call_operand.vmem [shape: f32[1,32], index: 1, kind: input, shape index: {}]
  %s2 = inlined_call_operand.vmem [shape: f32[1,32], index: 2, kind: input, shape index: {}]
  %s3 = inlined_call_operand.vmem [shape: f32[32,32], index: 3, kind: output, shape index: {}]
  %s4 = sld [smem:[#allocation0]]
  $region22: #{encoder_co_layer_fwd.19} parent=0
    _
  %s6 = ssub.s32 1, %s4
  %s7 = scalar_select 0, %s6, %s4
  // Predicated region
  $region2: #{encoder_co_layer_fwd.19} parent=0 // pred_check
    _
  $region3: #{encoder_co_layer_fwd.19} parent=0 // pred_check_branch
    %9 = sbr.rel (0) target = $region5
  $region4: #{encoder_co_layer_fwd.19} parent=0 // pred_region
    _
  $region5: #{encoder_co_layer_fwd.19} parent=0 // pred_fallthru
    _
  // Predicated region
  $region6: #{encoder_co_layer_fwd.19} parent=0 // pred_check
    _
  $region7: #{encoder_co_layer_fwd.19} parent=0 // pred_check_branch
    %11 = sbr.rel (0) target = $region9
  $region8: #{encoder_co_layer_fwd.19} parent=0 // pred_region
    _
  $region9: #{encoder_co_layer_fwd.19} parent=0 // pred_fallthru
    _
  // Predicated region
  $region10: #{encoder_co_layer_fwd.19} parent=0 // pred_check
    _
  $region11: #{encoder_co_layer_fwd.19} parent=0 // pred_check_branch
    %13 = sbr.rel (0) target = $region13
  $region12: #{encoder_co_layer_fwd.19} parent=0 // pred_region
    _
  $region13: #{encoder_co_layer_fwd.19} parent=0 // pred_fallthru
    _
  %v14 = vld [vmem:[%s0] sm:$0xff]
  %v15 = vld [vmem:[%s0 + $0x8] sm:$0xff]
  %v16 = vld [vmem:[%s0 + $0x10] sm:$0xff]
  %v17 = vld [vmem:[%s0 + $0x18] sm:$0xff]
  %vm18 = vcmask 261120
  %v19 = vsel %vm18, %v14, 0.0
  %20 = vadd.xlane.f32.xlu0 %v19
  %v21 = vpop.xlane.xlu0 %20
  %v22 = vsel %vm18, %v15, 0.0
  %23 = vadd.xlane.f32.xlu0 %v22
  %v24 = vpop.xlane.xlu0 %23
  %v25 = vsel %vm18, %v16, 0.0
  %26 = vadd.xlane.f32.xlu0 %v25
  %v27 = vpop.xlane.xlu0 %26
  %v28 = vsel %vm18, %v17, 0.0
  %29 = vadd.xlane.f32.xlu0 %v28
  %v30 = vpop.xlane.xlu0 %29
  %v31 = vrcp.pop 32.0
  %v32 = vmul.f32 %v21, %v31
  %v33 = vmul.f32 %v24, %v31
  %v34 = vmul.f32 %v27, %v31
  %v35 = vmul.f32 %v30, %v31
  %v36 = vsub.f32 %v14, %v32
  %v37 = vsub.f32 %v15, %v33
  %v38 = vsub.f32 %v16, %v34
  %v39 = vsub.f32 %v17, %v35
  %v40 = vmul.f32 %v36, %v36
  %v41 = vmul.f32 %v37, %v37
  %v42 = vmul.f32 %v38, %v38
  %v43 = vmul.f32 %v39, %v39
  %v44 = vsel %vm18, %v40, 0.0
  %45 = vadd.xlane.f32.xlu0 %v44
  %v46 = vpop.xlane.xlu0 %45
  %v47 = vsel %vm18, %v41, 0.0
  %48 = vadd.xlane.f32.xlu0 %v47
  %v49 = vpop.xlane.xlu0 %48
  %v50 = vsel %vm18, %v42, 0.0
  %51 = vadd.xlane.f32.xlu0 %v50
  %v52 = vpop.xlane.xlu0 %51
  %v53 = vsel %vm18, %v43, 0.0
  %54 = vadd.xlane.f32.xlu0 %v53
  %v55 = vpop.xlane.xlu0 %54
  %v56 = vmul.f32 %v46, %v31
  %v57 = vmul.f32 %v49, %v31
  %v58 = vmul.f32 %v52, %v31
  %v59 = vmul.f32 %v55, %v31
  %v60 = vadd.f32 %v56, 1e-05
  %v61 = vadd.f32 %v57, 1e-05
  %v62 = vadd.f32 %v58, 1e-05
  %v63 = vadd.f32 %v59, 1e-05
  %v64 = vrsqrt.pop %v60
  %v65 = vrsqrt.pop %v61
  %v66 = vrsqrt.pop %v62
  %v67 = vrsqrt.pop %v63
  %v68 = vmul.f32 %v36, %v64
  %v69 = vmul.f32 %v37, %v65
  %v70 = vmul.f32 %v38, %v66
  %v71 = vmul.f32 %v39, %v67
  %v72 = vld [vmem:[%s1] sm:$0x1]
  %v74 = vlaneseq
  %v75 = vshrl.u32 %v74, 7
  %v76 = vsub.s32 0, %v75
  %v77 = vrot.slane %v72, %v76
  %v79 = vmul.f32 %v68, %v77
  %v80 = vmul.f32 %v69, %v77
  %v81 = vmul.f32 %v70, %v77
  %v82 = vmul.f32 %v71, %v77
  %v83 = vld [vmem:[%s2] sm:$0x1]
  %v85 = vlaneseq
  %v86 = vshrl.u32 %v85, 7
  %v87 = vsub.s32 0, %v86
  %v88 = vrot.slane %v83, %v87
  %v90 = vadd.f32 %v79, %v88
  %v91 = vadd.f32 %v80, %v88
  %v92 = vadd.f32 %v81, %v88
  %v93 = vadd.f32 %v82, %v88
  %94 = vst.msk [vmem:[%s3] sm:$0xff] %vm18, %v90
  %95 = vst.msk [vmem:[%s3 + $0x8] sm:$0xff] %vm18, %v91
  %96 = vst.msk [vmem:[%s3 + $0x10] sm:$0xff] %vm18, %v92
  %97 = vst.msk [vmem:[%s3 + $0x18] sm:$0xff] %vm18, %v93
  // Predicated region
  $region14: #{encoder_co_layer_fwd.19} parent=0 // pred_check
    _
  $region15: #{encoder_co_layer_fwd.19} parent=0 // pred_check_branch
    %99 = sbr.rel (0) target = $region17
  $region16: #{encoder_co_layer_fwd.19} parent=0 // pred_region
    _
  $region17: #{encoder_co_layer_fwd.19} parent=0 // pred_fallthru
    _
  // Predicated region
  $region18: #{encoder_co_layer_fwd.19} parent=0 // pred_check
    _
  $region19: #{encoder_co_layer_fwd.19} parent=0 // pred_check_branch
    %101 = sbr.rel (0) target = $region21
  $region20: #{encoder_co_layer_fwd.19} parent=0 // pred_region
    _
  $region21: #{encoder_co_layer_fwd.19} parent=0 // pred_fallthru
    _

// kernel: encoder_co_layer_fwd.21
$region0: #{encoder_co_layer_fwd.21}
  #allocation0 [shape = 'u32[]', space=smem, size = 0x4, offset = 0x4, fixed_abs, tag = 'smem constant byte address 0x4 - core index']
  #allocation1 [shape = 'u32[144,128]{1,0:T(1,128)}', space=vmem, size = 0x12000, scoped, tag = 'internal scratch']
  #allocation2 [shape = 'f32[32,32]{1,0:T(8,128)}', space=vmem, size = 0x4000, scoped, tag = 'scratch operand']
  %s0 = inlined_call_operand.vmem [shape: f32[32,32], index: 0, kind: input, shape index: {}]
  %s1 = inlined_call_operand.vmem [shape: f32[32,32], index: 1, kind: input, shape index: {}]
  %s2 = inlined_call_operand.vmem [shape: f32[1,32], index: 2, kind: input, shape index: {}]
  %s3 = inlined_call_operand.vmem [shape: f32[32,32], index: 3, kind: output, shape index: {}]
  %s4 = sld [smem:[#allocation0]]
  $region30: #{encoder_co_layer_fwd.21} parent=0
    _
  %s6 = ssub.s32 1, %s4
  %s7 = scalar_select 0, %s6, %s4
  // Predicated region
  $region2: #{encoder_co_layer_fwd.21} parent=0 // pred_check
    _
  $region3: #{encoder_co_layer_fwd.21} parent=0 // pred_check_branch
    %9 = sbr.rel (0) target = $region5
  $region4: #{encoder_co_layer_fwd.21} parent=0 // pred_region
    _
  $region5: #{encoder_co_layer_fwd.21} parent=0 // pred_fallthru
    _
  // Predicated region
  $region6: #{encoder_co_layer_fwd.21} parent=0 // pred_check
    _
  $region7: #{encoder_co_layer_fwd.21} parent=0 // pred_check_branch
    %11 = sbr.rel (0) target = $region9
  $region8: #{encoder_co_layer_fwd.21} parent=0 // pred_region
    _
  $region9: #{encoder_co_layer_fwd.21} parent=0 // pred_fallthru
    _
  // Predicated region
  $region10: #{encoder_co_layer_fwd.21} parent=0 // pred_check
    _
  $region11: #{encoder_co_layer_fwd.21} parent=0 // pred_check_branch
    %13 = sbr.rel (0) target = $region13
  $region12: #{encoder_co_layer_fwd.21} parent=0 // pred_region
    _
  $region13: #{encoder_co_layer_fwd.21} parent=0 // pred_fallthru
    _
  %p14 = scmp.eq.s32.totalorder 0, 0
  // Predicated region
  $region14: #{encoder_co_layer_fwd.21} parent=0 // pred_check
    %p15 = pneg %p14
  $region15: #{encoder_co_layer_fwd.21} parent=0 // pred_check_branch
    %17 = sbr.rel (%p15) target = $region17
  $region16: #{encoder_co_layer_fwd.21} parent=0 // pred_region
    %vm18 = vcmask 261120
    %19 = vst.msk [vmem:[#allocation2] sm:$0xff] %vm18, 0.0
    %20 = vst.msk [vmem:[#allocation2 + $0x8] sm:$0xff] %vm18, 0.0
    %21 = vst.msk [vmem:[#allocation2 + $0x10] sm:$0xff] %vm18, 0.0
    %22 = vst.msk [vmem:[#allocation2 + $0x18] sm:$0xff] %vm18, 0.0
  $region17: #{encoder_co_layer_fwd.21} parent=0 // pred_fallthru
    _
  %v23 = vld [vmem:[#allocation2] sm:$0xff]
  %v24 = vld [vmem:[#allocation2 + $0x8] sm:$0xff]
  %v25 = vld [vmem:[#allocation2 + $0x10] sm:$0xff]
  %v26 = vld [vmem:[#allocation2 + $0x18] sm:$0xff]
  %v27 = vld [vmem:[%s0] sm:$0xff]
  %v28 = vld [vmem:[%s0 + $0x8] sm:$0xff]
  %v29 = vld [vmem:[%s0 + $0x10] sm:$0xff]
  %v30 = vld [vmem:[%s0 + $0x18] sm:$0xff]
  %v31 = vld [vmem:[%s1] sm:$0xff]
  %v32 = vld [vmem:[%s1 + $0x8] sm:$0xff]
  %v33 = vld [vmem:[%s1 + $0x10] sm:$0xff]
  %v34 = vld [vmem:[%s1 + $0x18] sm:$0xff]
  %vm35 = vcmask 261120
  %v37 = vsel %vm35, %v27, 0
  %v40 = vsel %vm35, %v28, 0
  %v43 = vsel %vm35, %v29, 0
  %v46 = vsel %vm35, %v30, 0
  %48 = vmatprep.subr.mxu0 0.0
  %49 = vmatpush1.msra.mxu0 0.0
  %50 = vmatprep.subr.mxu0 0.0
  %51 = vmatpush1.msra.mxu0 0.0
  %52 = vmatprep.subr.mxu0 0.0
  %53 = vmatpush1.msra.mxu0 0.0
  %54 = vmatprep.subr.mxu0 0.0
  %55 = vmatpush1.msra.mxu0 0.0
  %56 = vmatprep.subr.mxu0 0.0
  %57 = vmatpush1.msra.mxu0 0.0
  %58 = vmatprep.subr.mxu0 0.0
  %59 = vmatpush1.msra.mxu0 0.0
  %60 = vmatprep.subr.mxu0 0.0
  %61 = vmatpush1.msra.mxu0 0.0
  %62 = vmatprep.subr.mxu0 0.0
  %63 = vmatpush1.msra.mxu0 0.0
  %64 = vmatprep.subr.mxu0 0.0
  %65 = vmatpush1.msra.mxu0 0.0
  %66 = vmatprep.subr.mxu0 0.0
  %67 = vmatpush1.msra.mxu0 0.0
  %68 = vmatprep.subr.mxu0 0.0
  %69 = vmatpush1.msra.mxu0 0.0
  %70 = vmatprep.subr.mxu0 0.0
  %71 = vmatpush1.msra.mxu0 0.0
  %72 = vmatprep.subr.mxu0 0.0
  %73 = vmatpush1.msra.mxu0 %v34
  %74 = vmatprep.subr.mxu0 0.0
  %75 = vmatpush1.msra.mxu0 %v33
  %76 = vmatprep.subr.mxu0 0.0
  %77 = vmatpush1.msra.mxu0 %v32
  %78 = vmatprep.subr.mxu0 0.0
  %79 = vmatpush1.msra.mxu0 %v31
  %80 = vmatprep.subr.mxu0 0.0
  %81 = vmatpush2.msra.mxu0 0.0
  %82 = vmatprep.subr.mxu0 0.0
  %83 = vmatpush2.msra.mxu0 0.0
  %84 = vmatprep.subr.mxu0 0.0
  %85 = vmatpush2.msra.mxu0 0.0
  %86 = vmatprep.subr.mxu0 0.0
  %87 = vmatpush2.msra.mxu0 0.0
  %88 = vmatprep.subr.mxu0 0.0
  %89 = vmatpush2.msra.mxu0 0.0
  %90 = vmatprep.subr.mxu0 0.0
  %91 = vmatpush2.msra.mxu0 0.0
  %92 = vmatprep.subr.mxu0 0.0
  %93 = vmatpush2.msra.mxu0 0.0
  %94 = vmatprep.subr.mxu0 0.0
  %95 = vmatpush2.msra.mxu0 0.0
  %96 = vmatprep.subr.mxu0 0.0
  %97 = vmatpush2.msra.mxu0 0.0
  %98 = vmatprep.subr.mxu0 0.0
  %99 = vmatpush2.msra.mxu0 0.0
  %100 = vmatprep.subr.mxu0 0.0
  %101 = vmatpush2.msra.mxu0 0.0
  %102 = vmatprep.subr.mxu0 0.0
  %103 = vmatpush2.msra.mxu0 0.0
  %104 = vmatprep.subr.mxu0 0.0
  %105 = vmatpush2.msra.mxu0 0.0
  %106 = vmatprep.subr.mxu0 0.0
  %107 = vmatpush2.msra.mxu0 0.0
  %108 = vmatprep.subr.mxu0 0.0
  %109 = vmatpush2.msra.mxu0 0.0
  %110 = vmatprep.subr.mxu0 0.0
  %111 = vmatpush2.msra.mxu0 0.0
  %112 = vmatprep.mubr.f32.mxu0 0.0
  %113 = vmatmul.mubr.f32.gmra.mxu0 %v37
  %v114 = vpop.f32.mrf.mxu0
  %v115 = vadd.f32 0.0, %v114
  %v116 = vpop.f32.mrf.mxu0
  %117 = vmatprep.mubr.f32.mxu0 0.0
  %118 = vmatmul.mubr.f32.gmra.mxu0 %v40
  %v119 = vpop.f32.mrf.mxu0
  %v120 = vadd.f32 0.0, %v119
  %v121 = vpop.f32.mrf.mxu0
  %122 = vmatprep.mubr.f32.mxu0 0.0
  %123 = vmatmul.mubr.f32.gmra.mxu0 %v43
  %v124 = vpop.f32.mrf.mxu0
  %v125 = vadd.f32 0.0, %v124
  %v126 = vpop.f32.mrf.mxu0
  %127 = vmatprep.mubr.f32.mxu0 0.0
  %128 = vmatmul.mubr.f32.gmra.mxu0 %v46
  %v129 = vpop.f32.mrf.mxu0
  %v130 = vadd.f32 0.0, %v129
  %v131 = vpop.f32.mrf.mxu0
  %132 = vdwg.mxu0
  %v133 = vadd.f32 %v23, %v115
  %v134 = vadd.f32 %v24, %v120
  %v135 = vadd.f32 %v25, %v125
  %v136 = vadd.f32 %v26, %v130
  %137 = vst.msk [vmem:[#allocation2] sm:$0xff] %vm35, %v133
  %138 = vst.msk [vmem:[#allocation2 + $0x8] sm:$0xff] %vm35, %v134
  %139 = vst.msk [vmem:[#allocation2 + $0x10] sm:$0xff] %vm35, %v135
  %140 = vst.msk [vmem:[#allocation2 + $0x18] sm:$0xff] %vm35, %v136
  // Predicated region
  $region18: #{encoder_co_layer_fwd.21} parent=0 // pred_check
    %p141 = pneg %p14
  $region19: #{encoder_co_layer_fwd.21} parent=0 // pred_check_branch
    %143 = sbr.rel (%p141) target = $region21
  $region20: #{encoder_co_layer_fwd.21} parent=0 // pred_region
    %v144 = vld [vmem:[#allocation2] sm:$0xff]
    %v145 = vld [vmem:[#allocation2 + $0x8] sm:$0xff]
    %v146 = vld [vmem:[#allocation2 + $0x10] sm:$0xff]
    %v147 = vld [vmem:[#allocation2 + $0x18] sm:$0xff]
    %v148 = vld [vmem:[%s2] sm:$0x1]
    %v150 = vlaneseq
    %v151 = vshrl.u32 %v150, 7
    %v152 = vsub.s32 0, %v151
    %v153 = vrot.slane %v148, %v152
    %v155 = vadd.f32 %v144, %v153
    %v156 = vadd.f32 %v145, %v153
    %v157 = vadd.f32 %v146, %v153
    %v158 = vadd.f32 %v147, %v153
    %159 = vst.msk [vmem:[%s3] sm:$0xff] %vm35, %v155
    %160 = vst.msk [vmem:[%s3 + $0x8] sm:$0xff] %vm35, %v156
    %161 = vst.msk [vmem:[%s3 + $0x10] sm:$0xff] %vm35, %v157
    %162 = vst.msk [vmem:[%s3 + $0x18] sm:$0xff] %vm35, %v158
  $region21: #{encoder_co_layer_fwd.21} parent=0 // pred_fallthru
    _
  // Predicated region
  $region22: #{encoder_co_layer_fwd.21} parent=0 // pred_check
    _
  $region23: #{encoder_co_layer_fwd.21} parent=0 // pred_check_branch
    %164 = sbr.rel (0) target = $region25
  $region24: #{encoder_co_layer_fwd.21} parent=0 // pred_region
    _
  $region25: #{encoder_co_layer_fwd.21} parent=0 // pred_fallthru
    _
  // Predicated region
  $region26: #{encoder_co_layer_fwd.21} parent=0 // pred_check
    _
  $region27: #{encoder_co_layer_fwd.21} parent=0 // pred_check_branch
    %166 = sbr.rel (0) target = $region29
  $region28: #{encoder_co_layer_fwd.21} parent=0 // pred_region
    _
  $region29: #{encoder_co_layer_fwd.21} parent=0 // pred_fallthru
    _

// kernel: encoder_co_layer_fwd.20
$region0: #{encoder_co_layer_fwd.20}
  #allocation0 [shape = 'u32[]', space=smem, size = 0x4, offset = 0x4, fixed_abs, tag = 'smem constant byte address 0x4 - core index']
  #allocation1 [shape = 'u32[144,128]{1,0:T(1,128)}', space=vmem, size = 0x12000, scoped, tag = 'internal scratch']
  #allocation2 [shape = 'f32[16,32]{1,0:T(8,128)}', space=vmem, size = 0x2000, scoped, tag = 'scratch operand']
  %s0 = inlined_call_operand.vmem [shape: f32[16,32], index: 0, kind: input, shape index: {}]
  %s1 = inlined_call_operand.vmem [shape: f32[32,32], index: 1, kind: input, shape index: {}]
  %s2 = inlined_call_operand.vmem [shape: f32[1,32], index: 2, kind: input, shape index: {}]
  %s3 = inlined_call_operand.vmem [shape: f32[16,32], index: 3, kind: output, shape index: {}]
  %s4 = sld [smem:[#allocation0]]
  $region30: #{encoder_co_layer_fwd.20} parent=0
    _
  %s6 = ssub.s32 1, %s4
  %s7 = scalar_select 0, %s6, %s4
  // Predicated region
  $region2: #{encoder_co_layer_fwd.20} parent=0 // pred_check
    _
  $region3: #{encoder_co_layer_fwd.20} parent=0 // pred_check_branch
    %9 = sbr.rel (0) target = $region5
  $region4: #{encoder_co_layer_fwd.20} parent=0 // pred_region
    _
  $region5: #{encoder_co_layer_fwd.20} parent=0 // pred_fallthru
    _
  // Predicated region
  $region6: #{encoder_co_layer_fwd.20} parent=0 // pred_check
    _
  $region7: #{encoder_co_layer_fwd.20} parent=0 // pred_check_branch
    %11 = sbr.rel (0) target = $region9
  $region8: #{encoder_co_layer_fwd.20} parent=0 // pred_region
    _
  $region9: #{encoder_co_layer_fwd.20} parent=0 // pred_fallthru
    _
  // Predicated region
  $region10: #{encoder_co_layer_fwd.20} parent=0 // pred_check
    _
  $region11: #{encoder_co_layer_fwd.20} parent=0 // pred_check_branch
    %13 = sbr.rel (0) target = $region13
  $region12: #{encoder_co_layer_fwd.20} parent=0 // pred_region
    _
  $region13: #{encoder_co_layer_fwd.20} parent=0 // pred_fallthru
    _
  %p14 = scmp.eq.s32.totalorder 0, 0
  // Predicated region
  $region14: #{encoder_co_layer_fwd.20} parent=0 // pred_check
    %p15 = pneg %p14
  $region15: #{encoder_co_layer_fwd.20} parent=0 // pred_check_branch
    %17 = sbr.rel (%p15) target = $region17
  $region16: #{encoder_co_layer_fwd.20} parent=0 // pred_region
    %vm18 = vcmask 261120
    %19 = vst.msk [vmem:[#allocation2] sm:$0xff] %vm18, 0.0
    %20 = vst.msk [vmem:[#allocation2 + $0x8] sm:$0xff] %vm18, 0.0
  $region17: #{encoder_co_layer_fwd.20} parent=0 // pred_fallthru
    _
  %v21 = vld [vmem:[#allocation2] sm:$0xff]
  %v22 = vld [vmem:[#allocation2 + $0x8] sm:$0xff]
  %v23 = vld [vmem:[%s0] sm:$0xff]
  %v24 = vld [vmem:[%s0 + $0x8] sm:$0xff]
  %v25 = vld [vmem:[%s1] sm:$0xff]
  %v26 = vld [vmem:[%s1 + $0x8] sm:$0xff]
  %v27 = vld [vmem:[%s1 + $0x10] sm:$0xff]
  %v28 = vld [vmem:[%s1 + $0x18] sm:$0xff]
  %vm29 = vcmask 261120
  %v31 = vsel %vm29, %v23, 0
  %v34 = vsel %vm29, %v24, 0
  %36 = vmatprep.subr.mxu0 0.0
  %37 = vmatpush1.msra.mxu0 0.0
  %38 = vmatprep.subr.mxu0 0.0
  %39 = vmatpush1.msra.mxu0 0.0
  %40 = vmatprep.subr.mxu0 0.0
  %41 = vmatpush1.msra.mxu0 0.0
  %42 = vmatprep.subr.mxu0 0.0
  %43 = vmatpush1.msra.mxu0 0.0
  %44 = vmatprep.subr.mxu0 0.0
  %45 = vmatpush1.msra.mxu0 0.0
  %46 = vmatprep.subr.mxu0 0.0
  %47 = vmatpush1.msra.mxu0 0.0
  %48 = vmatprep.subr.mxu0 0.0
  %49 = vmatpush1.msra.mxu0 0.0
  %50 = vmatprep.subr.mxu0 0.0
  %51 = vmatpush1.msra.mxu0 0.0
  %52 = vmatprep.subr.mxu0 0.0
  %53 = vmatpush1.msra.mxu0 0.0
  %54 = vmatprep.subr.mxu0 0.0
  %55 = vmatpush1.msra.mxu0 0.0
  %56 = vmatprep.subr.mxu0 0.0
  %57 = vmatpush1.msra.mxu0 0.0
  %58 = vmatprep.subr.mxu0 0.0
  %59 = vmatpush1.msra.mxu0 0.0
  %60 = vmatprep.subr.mxu0 0.0
  %61 = vmatpush1.msra.mxu0 %v28
  %62 = vmatprep.subr.mxu0 0.0
  %63 = vmatpush1.msra.mxu0 %v27
  %64 = vmatprep.subr.mxu0 0.0
  %65 = vmatpush1.msra.mxu0 %v26
  %66 = vmatprep.subr.mxu0 0.0
  %67 = vmatpush1.msra.mxu0 %v25
  %68 = vmatprep.subr.mxu0 0.0
  %69 = vmatpush2.msra.mxu0 0.0
  %70 = vmatprep.subr.mxu0 0.0
  %71 = vmatpush2.msra.mxu0 0.0
  %72 = vmatprep.subr.mxu0 0.0
  %73 = vmatpush2.msra.mxu0 0.0
  %74 = vmatprep.subr.mxu0 0.0
  %75 = vmatpush2.msra.mxu0 0.0
  %76 = vmatprep.subr.mxu0 0.0
  %77 = vmatpush2.msra.mxu0 0.0
  %78 = vmatprep.subr.mxu0 0.0
  %79 = vmatpush2.msra.mxu0 0.0
  %80 = vmatprep.subr.mxu0 0.0
  %81 = vmatpush2.msra.mxu0 0.0
  %82 = vmatprep.subr.mxu0 0.0
  %83 = vmatpush2.msra.mxu0 0.0
  %84 = vmatprep.subr.mxu0 0.0
  %85 = vmatpush2.msra.mxu0 0.0
  %86 = vmatprep.subr.mxu0 0.0
  %87 = vmatpush2.msra.mxu0 0.0
  %88 = vmatprep.subr.mxu0 0.0
  %89 = vmatpush2.msra.mxu0 0.0
  %90 = vmatprep.subr.mxu0 0.0
  %91 = vmatpush2.msra.mxu0 0.0
  %92 = vmatprep.subr.mxu0 0.0
  %93 = vmatpush2.msra.mxu0 0.0
  %94 = vmatprep.subr.mxu0 0.0
  %95 = vmatpush2.msra.mxu0 0.0
  %96 = vmatprep.subr.mxu0 0.0
  %97 = vmatpush2.msra.mxu0 0.0
  %98 = vmatprep.subr.mxu0 0.0
  %99 = vmatpush2.msra.mxu0 0.0
  %100 = vmatprep.mubr.f32.mxu0 0.0
  %101 = vmatmul.mubr.f32.gmra.mxu0 %v31
  %v102 = vpop.f32.mrf.mxu0
  %v103 = vadd.f32 0.0, %v102
  %v104 = vpop.f32.mrf.mxu0
  %105 = vmatprep.mubr.f32.mxu0 0.0
  %106 = vmatmul.mubr.f32.gmra.mxu0 %v34
  %v107 = vpop.f32.mrf.mxu0
  %v108 = vadd.f32 0.0, %v107
  %v109 = vpop.f32.mrf.mxu0
  %110 = vdwg.mxu0
  %v111 = vadd.f32 %v21, %v103
  %v112 = vadd.f32 %v22, %v108
  %113 = vst.msk [vmem:[#allocation2] sm:$0xff] %vm29, %v111
  %114 = vst.msk [vmem:[#allocation2 + $0x8] sm:$0xff] %vm29, %v112
  // Predicated region
  $region18: #{encoder_co_layer_fwd.20} parent=0 // pred_check
    %p115 = pneg %p14
  $region19: #{encoder_co_layer_fwd.20} parent=0 // pred_check_branch
    %117 = sbr.rel (%p115) target = $region21
  $region20: #{encoder_co_layer_fwd.20} parent=0 // pred_region
    %v118 = vld [vmem:[#allocation2] sm:$0xff]
    %v119 = vld [vmem:[#allocation2 + $0x8] sm:$0xff]
    %v120 = vld [vmem:[%s2] sm:$0x1]
    %v122 = vlaneseq
    %v123 = vshrl.u32 %v122, 7
    %v124 = vsub.s32 0, %v123
    %v125 = vrot.slane %v120, %v124
    %v127 = vadd.f32 %v118, %v125
    %v128 = vadd.f32 %v119, %v125
    %129 = vst.msk [vmem:[%s3] sm:$0xff] %vm29, %v127
    %130 = vst.msk [vmem:[%s3 + $0x8] sm:$0xff] %vm29, %v128
  $region21: #{encoder_co_layer_fwd.20} parent=0 // pred_fallthru
    _
  // Predicated region
  $region22: #{encoder_co_layer_fwd.20} parent=0 // pred_check
    _
  $region23: #{encoder_co_layer_fwd.20} parent=0 // pred_check_branch
    %132 = sbr.rel (0) target = $region25
  $region24: #{encoder_co_layer_fwd.20} parent=0 // pred_region
    _
  $region25: #{encoder_co_layer_fwd.20} parent=0 // pred_fallthru
    _
  // Predicated region
  $region26: #{encoder_co_layer_fwd.20} parent=0 // pred_check
    _
  $region27: #{encoder_co_layer_fwd.20} parent=0 // pred_check_branch
    %134 = sbr.rel (0) target = $region29
  $region28: #{encoder_co_layer_fwd.20} parent=0 // pred_region
    _
  $region29: #{encoder_co_layer_fwd.20} parent=0 // pred_fallthru
    _

// kernel: encoder_co_layer_fwd.18
$region0: #{encoder_co_layer_fwd.18}
  #allocation0 [shape = 'u32[]', space=smem, size = 0x4, offset = 0x4, fixed_abs, tag = 'smem constant byte address 0x4 - core index']
  #allocation1 [shape = 'u32[144,128]{1,0:T(1,128)}', space=vmem, size = 0x12000, scoped, tag = 'internal scratch']
  %s0 = inlined_call_operand.vmem [shape: f32[16,32], index: 0, kind: input, shape index: {}]
  %s1 = inlined_call_operand.vmem [shape: f32[1,32], index: 1, kind: input, shape index: {}]
  %s2 = inlined_call_operand.vmem [shape: f32[1,32], index: 2, kind: input, shape index: {}]
  %s3 = inlined_call_operand.vmem [shape: f32[16,32], index: 3, kind: output, shape index: {}]
  %s4 = sld [smem:[#allocation0]]
  $region22: #{encoder_co_layer_fwd.18} parent=0
    _
  %s6 = ssub.s32 1, %s4
  %s7 = scalar_select 0, %s6, %s4
  // Predicated region
  $region2: #{encoder_co_layer_fwd.18} parent=0 // pred_check
    _
  $region3: #{encoder_co_layer_fwd.18} parent=0 // pred_check_branch
    %9 = sbr.rel (0) target = $region5
  $region4: #{encoder_co_layer_fwd.18} parent=0 // pred_region
    _
  $region5: #{encoder_co_layer_fwd.18} parent=0 // pred_fallthru
    _
  // Predicated region
  $region6: #{encoder_co_layer_fwd.18} parent=0 // pred_check
    _
  $region7: #{encoder_co_layer_fwd.18} parent=0 // pred_check_branch
    %11 = sbr.rel (0) target = $region9
  $region8: #{encoder_co_layer_fwd.18} parent=0 // pred_region
    _
  $region9: #{encoder_co_layer_fwd.18} parent=0 // pred_fallthru
    _
  // Predicated region
  $region10: #{encoder_co_layer_fwd.18} parent=0 // pred_check
    _
  $region11: #{encoder_co_layer_fwd.18} parent=0 // pred_check_branch
    %13 = sbr.rel (0) target = $region13
  $region12: #{encoder_co_layer_fwd.18} parent=0 // pred_region
    _
  $region13: #{encoder_co_layer_fwd.18} parent=0 // pred_fallthru
    _
  %v14 = vld [vmem:[%s0] sm:$0xff]
  %v15 = vld [vmem:[%s0 + $0x8] sm:$0xff]
  %vm16 = vcmask 261120
  %v17 = vsel %vm16, %v14, 0.0
  %18 = vadd.xlane.f32.xlu0 %v17
  %v19 = vpop.xlane.xlu0 %18
  %v20 = vsel %vm16, %v15, 0.0
  %21 = vadd.xlane.f32.xlu0 %v20
  %v22 = vpop.xlane.xlu0 %21
  %v23 = vrcp.pop 32.0
  %v24 = vmul.f32 %v19, %v23
  %v25 = vmul.f32 %v22, %v23
  %v26 = vsub.f32 %v14, %v24
  %v27 = vsub.f32 %v15, %v25
  %v28 = vmul.f32 %v26, %v26
  %v29 = vmul.f32 %v27, %v27
  %v30 = vsel %vm16, %v28, 0.0
  %31 = vadd.xlane.f32.xlu0 %v30
  %v32 = vpop.xlane.xlu0 %31
  %v33 = vsel %vm16, %v29, 0.0
  %34 = vadd.xlane.f32.xlu0 %v33
  %v35 = vpop.xlane.xlu0 %34
  %v36 = vmul.f32 %v32, %v23
  %v37 = vmul.f32 %v35, %v23
  %v38 = vadd.f32 %v36, 1e-05
  %v39 = vadd.f32 %v37, 1e-05
  %v40 = vrsqrt.pop %v38
  %v41 = vrsqrt.pop %v39
  %v42 = vmul.f32 %v26, %v40
  %v43 = vmul.f32 %v27, %v41
  %v44 = vld [vmem:[%s1] sm:$0x1]
  %v46 = vlaneseq
  %v47 = vshrl.u32 %v46, 7
  %v48 = vsub.s32 0, %v47
  %v49 = vrot.slane %v44, %v48
  %v51 = vmul.f32 %v42, %v49
  %v52 = vmul.f32 %v43, %v49
  %v53 = vld [vmem:[%s2] sm:$0x1]
  %v55 = vlaneseq
  %v56 = vshrl.u32 %v55, 7
  %v57 = vsub.s32 0, %v56
  %v58 = vrot.slane %v53, %v57
  %v60 = vadd.f32 %v51, %v58
  %v61 = vadd.f32 %v52, %v58
  %62 = vst.msk [vmem:[%s3] sm:$0xff] %vm16, %v60
  %63 = vst.msk [vmem:[%s3 + $0x8] sm:$0xff] %vm16, %v61
  // Predicated region
  $region14: #{encoder_co_layer_fwd.18} parent=0 // pred_check
    _
  $region15: #{encoder_co_layer_fwd.18} parent=0 // pred_check_branch
    %65 = sbr.rel (0) target = $region17
  $region16: #{encoder_co_layer_fwd.18} parent=0 // pred_region
    _
  $region17: #{encoder_co_layer_fwd.18} parent=0 // pred_fallthru
    _
  // Predicated region
  $region18: #{encoder_co_layer_fwd.18} parent=0 // pred_check
    _
  $region19: #{encoder_co_layer_fwd.18} parent=0 // pred_check_branch
    %67 = sbr.rel (0) target = $region21
  $region20: #{encoder_co_layer_fwd.18} parent=0 // pred_region
    _
  $region21: #{encoder_co_layer_fwd.18} parent=0 // pred_fallthru
    _

// kernel: encoder_co_layer_fwd.24
$region0: #{encoder_co_layer_fwd.24}
  #allocation0 [shape = 'u32[]', space=smem, size = 0x4, offset = 0x4, fixed_abs, tag = 'smem constant byte address 0x4 - core index']
  #allocation1 [shape = 'u32[144,128]{1,0:T(1,128)}', space=vmem, size = 0x12000, scoped, tag = 'internal scratch']
  #allocation2 [shape = 'f32[16,32]{1,0:T(8,128)}', space=vmem, size = 0x2000, scoped, tag = 'scratch operand']
  %s0 = inlined_call_operand.vmem [shape: f32[16,32], index: 0, kind: input, shape index: {}]
  %s1 = inlined_call_operand.vmem [shape: f32[32,32], index: 1, kind: input, shape index: {}]
  %s2 = inlined_call_operand.vmem [shape: f32[1,32], index: 2, kind: input, shape index: {}]
  %s3 = inlined_call_operand.vmem [shape: f32[16,32], index: 3, kind: input, shape index: {}]
  %s4 = inlined_call_operand.vmem [shape: f32[16,32], index: 4, kind: output, shape index: {}]
  %s5 = sld [smem:[#allocation0]]
  $region34: #{encoder_co_layer_fwd.24} parent=0
    _
  %s7 = ssub.s32 1, %s5
  %s8 = scalar_select 0, %s7, %s5
  // Predicated region
  $region2: #{encoder_co_layer_fwd.24} parent=0 // pred_check
    _
  $region3: #{encoder_co_layer_fwd.24} parent=0 // pred_check_branch
    %10 = sbr.rel (0) target = $region5
  $region4: #{encoder_co_layer_fwd.24} parent=0 // pred_region
    _
  $region5: #{encoder_co_layer_fwd.24} parent=0 // pred_fallthru
    _
  // Predicated region
  $region6: #{encoder_co_layer_fwd.24} parent=0 // pred_check
    _
  $region7: #{encoder_co_layer_fwd.24} parent=0 // pred_check_branch
    %12 = sbr.rel (0) target = $region9
  $region8: #{encoder_co_layer_fwd.24} parent=0 // pred_region
    _
  $region9: #{encoder_co_layer_fwd.24} parent=0 // pred_fallthru
    _
  // Predicated region
  $region10: #{encoder_co_layer_fwd.24} parent=0 // pred_check
    _
  $region11: #{encoder_co_layer_fwd.24} parent=0 // pred_check_branch
    %14 = sbr.rel (0) target = $region13
  $region12: #{encoder_co_layer_fwd.24} parent=0 // pred_region
    _
  $region13: #{encoder_co_layer_fwd.24} parent=0 // pred_fallthru
    _
  // Predicated region
  $region14: #{encoder_co_layer_fwd.24} parent=0 // pred_check
    _
  $region15: #{encoder_co_layer_fwd.24} parent=0 // pred_check_branch
    %16 = sbr.rel (0) target = $region17
  $region16: #{encoder_co_layer_fwd.24} parent=0 // pred_region
    _
  $region17: #{encoder_co_layer_fwd.24} parent=0 // pred_fallthru
    _
  %p17 = scmp.eq.s32.totalorder 0, 0
  // Predicated region
  $region18: #{encoder_co_layer_fwd.24} parent=0 // pred_check
    %p18 = pneg %p17
  $region19: #{encoder_co_layer_fwd.24} parent=0 // pred_check_branch
    %20 = sbr.rel (%p18) target = $region21
  $region20: #{encoder_co_layer_fwd.24} parent=0 // pred_region
    %vm21 = vcmask 261120
    %22 = vst.msk [vmem:[#allocation2] sm:$0xff] %vm21, 0.0
    %23 = vst.msk [vmem:[#allocation2 + $0x8] sm:$0xff] %vm21, 0.0
  $region21: #{encoder_co_layer_fwd.24} parent=0 // pred_fallthru
    _
  %v24 = vld [vmem:[#allocation2] sm:$0xff]
  %v25 = vld [vmem:[#allocation2 + $0x8] sm:$0xff]
  %v26 = vld [vmem:[%s0] sm:$0xff]
  %v27 = vld [vmem:[%s0 + $0x8] sm:$0xff]
  %v28 = vld [vmem:[%s1] sm:$0xff]
  %v29 = vld [vmem:[%s1 + $0x8] sm:$0xff]
  %v30 = vld [vmem:[%s1 + $0x10] sm:$0xff]
  %v31 = vld [vmem:[%s1 + $0x18] sm:$0xff]
  %vm32 = vcmask 261120
  %v34 = vsel %vm32, %v26, 0
  %v37 = vsel %vm32, %v27, 0
  %39 = vmatprep.subr.mxu0 0.0
  %40 = vmatpush1.msra.mxu0 0.0
  %41 = vmatprep.subr.mxu0 0.0
  %42 = vmatpush1.msra.mxu0 0.0
  %43 = vmatprep.subr.mxu0 0.0
  %44 = vmatpush1.msra.mxu0 0.0
  %45 = vmatprep.subr.mxu0 0.0
  %46 = vmatpush1.msra.mxu0 0.0
  %47 = vmatprep.subr.mxu0 0.0
  %48 = vmatpush1.msra.mxu0 0.0
  %49 = vmatprep.subr.mxu0 0.0
  %50 = vmatpush1.msra.mxu0 0.0
  %51 = vmatprep.subr.mxu0 0.0
  %52 = vmatpush1.msra.mxu0 0.0
  %53 = vmatprep.subr.mxu0 0.0
  %54 = vmatpush1.msra.mxu0 0.0
  %55 = vmatprep.subr.mxu0 0.0
  %56 = vmatpush1.msra.mxu0 0.0
  %57 = vmatprep.subr.mxu0 0.0
  %58 = vmatpush1.msra.mxu0 0.0
  %59 = vmatprep.subr.mxu0 0.0
  %60 = vmatpush1.msra.mxu0 0.0
  %61 = vmatprep.subr.mxu0 0.0
  %62 = vmatpush1.msra.mxu0 0.0
  %63 = vmatprep.subr.mxu0 0.0
  %64 = vmatpush1.msra.mxu0 %v31
  %65 = vmatprep.subr.mxu0 0.0
  %66 = vmatpush1.msra.mxu0 %v30
  %67 = vmatprep.subr.mxu0 0.0
  %68 = vmatpush1.msra.mxu0 %v29
  %69 = vmatprep.subr.mxu0 0.0
  %70 = vmatpush1.msra.mxu0 %v28
  %71 = vmatprep.subr.mxu0 0.0
  %72 = vmatpush2.msra.mxu0 0.0
  %73 = vmatprep.subr.mxu0 0.0
  %74 = vmatpush2.msra.mxu0 0.0
  %75 = vmatprep.subr.mxu0 0.0
  %76 = vmatpush2.msra.mxu0 0.0
  %77 = vmatprep.subr.mxu0 0.0
  %78 = vmatpush2.msra.mxu0 0.0
  %79 = vmatprep.subr.mxu0 0.0
  %80 = vmatpush2.msra.mxu0 0.0
  %81 = vmatprep.subr.mxu0 0.0
  %82 = vmatpush2.msra.mxu0 0.0
  %83 = vmatprep.subr.mxu0 0.0
  %84 = vmatpush2.msra.mxu0 0.0
  %85 = vmatprep.subr.mxu0 0.0
  %86 = vmatpush2.msra.mxu0 0.0
  %87 = vmatprep.subr.mxu0 0.0
  %88 = vmatpush2.msra.mxu0 0.0
  %89 = vmatprep.subr.mxu0 0.0
  %90 = vmatpush2.msra.mxu0 0.0
  %91 = vmatprep.subr.mxu0 0.0
  %92 = vmatpush2.msra.mxu0 0.0
  %93 = vmatprep.subr.mxu0 0.0
  %94 = vmatpush2.msra.mxu0 0.0
  %95 = vmatprep.subr.mxu0 0.0
  %96 = vmatpush2.msra.mxu0 0.0
  %97 = vmatprep.subr.mxu0 0.0
  %98 = vmatpush2.msra.mxu0 0.0
  %99 = vmatprep.subr.mxu0 0.0
  %100 = vmatpush2.msra.mxu0 0.0
  %101 = vmatprep.subr.mxu0 0.0
  %102 = vmatpush2.msra.mxu0 0.0
  %103 = vmatprep.mubr.f32.mxu0 0.0
  %104 = vmatmul.mubr.f32.gmra.mxu0 %v34
  %v105 = vpop.f32.mrf.mxu0
  %v106 = vadd.f32 0.0, %v105
  %v107 = vpop.f32.mrf.mxu0
  %108 = vmatprep.mubr.f32.mxu0 0.0
  %109 = vmatmul.mubr.f32.gmra.mxu0 %v37
  %v110 = vpop.f32.mrf.mxu0
  %v111 = vadd.f32 0.0, %v110
  %v112 = vpop.f32.mrf.mxu0
  %113 = vdwg.mxu0
  %v114 = vadd.f32 %v24, %v106
  %v115 = vadd.f32 %v25, %v111
  %116 = vst.msk [vmem:[#allocation2] sm:$0xff] %vm32, %v114
  %117 = vst.msk [vmem:[#allocation2 + $0x8] sm:$0xff] %vm32, %v115
  // Predicated region
  $region22: #{encoder_co_layer_fwd.24} parent=0 // pred_check
    %p118 = pneg %p17
  $region23: #{encoder_co_layer_fwd.24} parent=0 // pred_check_branch
    %120 = sbr.rel (%p118) target = $region25
  $region24: #{encoder_co_layer_fwd.24} parent=0 // pred_region
    %v121 = vld [vmem:[#allocation2] sm:$0xff]
    %v122 = vld [vmem:[#allocation2 + $0x8] sm:$0xff]
    %v123 = vld [vmem:[%s2] sm:$0x1]
    %v125 = vlaneseq
    %v126 = vshrl.u32 %v125, 7
    %v127 = vsub.s32 0, %v126
    %v128 = vrot.slane %v123, %v127
    %v130 = vadd.f32 %v121, %v128
    %v131 = vadd.f32 %v122, %v128
    %v132 = vld [vmem:[%s3] sm:$0xff]
    %v133 = vld [vmem:[%s3 + $0x8] sm:$0xff]
    %v134 = vadd.f32 %v130, %v132
    %v135 = vadd.f32 %v131, %v133
    %136 = vst.msk [vmem:[%s4] sm:$0xff] %vm32, %v134
    %137 = vst.msk [vmem:[%s4 + $0x8] sm:$0xff] %vm32, %v135
  $region25: #{encoder_co_layer_fwd.24} parent=0 // pred_fallthru
    _
  // Predicated region
  $region26: #{encoder_co_layer_fwd.24} parent=0 // pred_check
    _
  $region27: #{encoder_co_layer_fwd.24} parent=0 // pred_check_branch
    %139 = sbr.rel (0) target = $region29
  $region28: #{encoder_co_layer_fwd.24} parent=0 // pred_region
    _
  $region29: #{encoder_co_layer_fwd.24} parent=0 // pred_fallthru
    _
  // Predicated region
  $region30: #{encoder_co_layer_fwd.24} parent=0 // pred_check
    _
  $region31: #{encoder_co_layer_fwd.24} parent=0 // pred_check_branch
    %141 = sbr.rel (0) target = $region33
  $region32: #{encoder_co_layer_fwd.24} parent=0 // pred_region
    _
  $region33: #{encoder_co_layer_fwd.24} parent=0 // pred_fallthru
    _

// kernel: encoder_co_layer_fwd.32
$region0: #{encoder_co_layer_fwd.32}
  #allocation0 [shape = 'u32[]', space=smem, size = 0x4, offset = 0x4, fixed_abs, tag = 'smem constant byte address 0x4 - core index']
  #allocation1 [shape = 'u32[144,128]{1,0:T(1,128)}', space=vmem, size = 0x12000, scoped, tag = 'internal scratch']
  #allocation2 [shape = 'f32[16,64]{1,0:T(8,128)}', space=vmem, size = 0x2000, scoped, tag = 'scratch operand']
  %s0 = inlined_call_operand.vmem [shape: f32[16,32], index: 0, kind: input, shape index: {}]
  %s1 = inlined_call_operand.vmem [shape: f32[32,64], index: 1, kind: input, shape index: {}]
  %s2 = inlined_call_operand.vmem [shape: f32[1,64], index: 2, kind: input, shape index: {}]
  %s3 = inlined_call_operand.vmem [shape: f32[16,64], index: 3, kind: output, shape index: {}]
  %s4 = sld [smem:[#allocation0]]
  $region30: #{encoder_co_layer_fwd.32} parent=0
    _
  %s6 = ssub.s32 1, %s4
  %s7 = scalar_select 0, %s6, %s4
  // Predicated region
  $region2: #{encoder_co_layer_fwd.32} parent=0 // pred_check
    _
  $region3: #{encoder_co_layer_fwd.32} parent=0 // pred_check_branch
    %9 = sbr.rel (0) target = $region5
  $region4: #{encoder_co_layer_fwd.32} parent=0 // pred_region
    _
  $region5: #{encoder_co_layer_fwd.32} parent=0 // pred_fallthru
    _
  // Predicated region
  $region6: #{encoder_co_layer_fwd.32} parent=0 // pred_check
    _
  $region7: #{encoder_co_layer_fwd.32} parent=0 // pred_check_branch
    %11 = sbr.rel (0) target = $region9
  $region8: #{encoder_co_layer_fwd.32} parent=0 // pred_region
    _
  $region9: #{encoder_co_layer_fwd.32} parent=0 // pred_fallthru
    _
  // Predicated region
  $region10: #{encoder_co_layer_fwd.32} parent=0 // pred_check
    _
  $region11: #{encoder_co_layer_fwd.32} parent=0 // pred_check_branch
    %13 = sbr.rel (0) target = $region13
  $region12: #{encoder_co_layer_fwd.32} parent=0 // pred_region
    _
  $region13: #{encoder_co_layer_fwd.32} parent=0 // pred_fallthru
    _
  %p14 = scmp.eq.s32.totalorder 0, 0
  // Predicated region
  $region14: #{encoder_co_layer_fwd.32} parent=0 // pred_check
    %p15 = pneg %p14
  $region15: #{encoder_co_layer_fwd.32} parent=0 // pred_check_branch
    %17 = sbr.rel (%p15) target = $region17
  $region16: #{encoder_co_layer_fwd.32} parent=0 // pred_region
    %vm18 = vcmask 523264
    %19 = vst.msk [vmem:[#allocation2] sm:$0xff] %vm18, 0.0
    %20 = vst.msk [vmem:[#allocation2 + $0x8] sm:$0xff] %vm18, 0.0
  $region17: #{encoder_co_layer_fwd.32} parent=0 // pred_fallthru
    _
  %v21 = vld [vmem:[#allocation2] sm:$0xff]
  %v22 = vld [vmem:[#allocation2 + $0x8] sm:$0xff]
  %v23 = vld [vmem:[%s0] sm:$0xff]
  %v24 = vld [vmem:[%s0 + $0x8] sm:$0xff]
  %v25 = vld [vmem:[%s1] sm:$0xff]
  %v26 = vld [vmem:[%s1 + $0x8] sm:$0xff]
  %v27 = vld [vmem:[%s1 + $0x10] sm:$0xff]
  %v28 = vld [vmem:[%s1 + $0x18] sm:$0xff]
  %vm29 = vcmask 261120
  %v31 = vsel %vm29, %v23, 0
  %v34 = vsel %vm29, %v24, 0
  %36 = vmatprep.subr.mxu0 0.0
  %37 = vmatpush1.msra.mxu0 0.0
  %38 = vmatprep.subr.mxu0 0.0
  %39 = vmatpush1.msra.mxu0 0.0
  %40 = vmatprep.subr.mxu0 0.0
  %41 = vmatpush1.msra.mxu0 0.0
  %42 = vmatprep.subr.mxu0 0.0
  %43 = vmatpush1.msra.mxu0 0.0
  %44 = vmatprep.subr.mxu0 0.0
  %45 = vmatpush1.msra.mxu0 0.0
  %46 = vmatprep.subr.mxu0 0.0
  %47 = vmatpush1.msra.mxu0 0.0
  %48 = vmatprep.subr.mxu0 0.0
  %49 = vmatpush1.msra.mxu0 0.0
  %50 = vmatprep.subr.mxu0 0.0
  %51 = vmatpush1.msra.mxu0 0.0
  %52 = vmatprep.subr.mxu0 0.0
  %53 = vmatpush1.msra.mxu0 0.0
  %54 = vmatprep.subr.mxu0 0.0
  %55 = vmatpush1.msra.mxu0 0.0
  %56 = vmatprep.subr.mxu0 0.0
  %57 = vmatpush1.msra.mxu0 0.0
  %58 = vmatprep.subr.mxu0 0.0
  %59 = vmatpush1.msra.mxu0 0.0
  %60 = vmatprep.subr.mxu0 0.0
  %61 = vmatpush1.msra.mxu0 %v28
  %62 = vmatprep.subr.mxu0 0.0
  %63 = vmatpush1.msra.mxu0 %v27
  %64 = vmatprep.subr.mxu0 0.0
  %65 = vmatpush1.msra.mxu0 %v26
  %66 = vmatprep.subr.mxu0 0.0
  %67 = vmatpush1.msra.mxu0 %v25
  %68 = vmatprep.subr.mxu0 0.0
  %69 = vmatpush2.msra.mxu0 0.0
  %70 = vmatprep.subr.mxu0 0.0
  %71 = vmatpush2.msra.mxu0 0.0
  %72 = vmatprep.subr.mxu0 0.0
  %73 = vmatpush2.msra.mxu0 0.0
  %74 = vmatprep.subr.mxu0 0.0
  %75 = vmatpush2.msra.mxu0 0.0
  %76 = vmatprep.subr.mxu0 0.0
  %77 = vmatpush2.msra.mxu0 0.0
  %78 = vmatprep.subr.mxu0 0.0
  %79 = vmatpush2.msra.mxu0 0.0
  %80 = vmatprep.subr.mxu0 0.0
  %81 = vmatpush2.msra.mxu0 0.0
  %82 = vmatprep.subr.mxu0 0.0
  %83 = vmatpush2.msra.mxu0 0.0
  %84 = vmatprep.subr.mxu0 0.0
  %85 = vmatpush2.msra.mxu0 0.0
  %86 = vmatprep.subr.mxu0 0.0
  %87 = vmatpush2.msra.mxu0 0.0
  %88 = vmatprep.subr.mxu0 0.0
  %89 = vmatpush2.msra.mxu0 0.0
  %90 = vmatprep.subr.mxu0 0.0
  %91 = vmatpush2.msra.mxu0 0.0
  %92 = vmatprep.subr.mxu0 0.0
  %93 = vmatpush2.msra.mxu0 0.0
  %94 = vmatprep.subr.mxu0 0.0
  %95 = vmatpush2.msra.mxu0 0.0
  %96 = vmatprep.subr.mxu0 0.0
  %97 = vmatpush2.msra.mxu0 0.0
  %98 = vmatprep.subr.mxu0 0.0
  %99 = vmatpush2.msra.mxu0 0.0
  %100 = vmatprep.mubr.f32.mxu0 0.0
  %101 = vmatmul.mubr.f32.gmra.mxu0 %v31
  %v102 = vpop.f32.mrf.mxu0
  %v103 = vadd.f32 0.0, %v102
  %v104 = vpop.f32.mrf.mxu0
  %105 = vmatprep.mubr.f32.mxu0 0.0
  %106 = vmatmul.mubr.f32.gmra.mxu0 %v34
  %v107 = vpop.f32.mrf.mxu0
  %v108 = vadd.f32 0.0, %v107
  %v109 = vpop.f32.mrf.mxu0
  %110 = vdwg.mxu0
  %v111 = vadd.f32 %v21, %v103
  %v112 = vadd.f32 %v22, %v108
  %vm113 = vcmask 523264
  %114 = vst.msk [vmem:[#allocation2] sm:$0xff] %vm113, %v111
  %115 = vst.msk [vmem:[#allocation2 + $0x8] sm:$0xff] %vm113, %v112
  // Predicated region
  $region18: #{encoder_co_layer_fwd.32} parent=0 // pred_check
    %p116 = pneg %p14
  $region19: #{encoder_co_layer_fwd.32} parent=0 // pred_check_branch
    %118 = sbr.rel (%p116) target = $region21
  $region20: #{encoder_co_layer_fwd.32} parent=0 // pred_region
    %v119 = vld [vmem:[#allocation2] sm:$0xff]
    %v120 = vld [vmem:[#allocation2 + $0x8] sm:$0xff]
    %v121 = vld [vmem:[%s2] sm:$0x1]
    %v123 = vlaneseq
    %v124 = vshrl.u32 %v123, 7
    %v125 = vsub.s32 0, %v124
    %v126 = vrot.slane %v121, %v125
    %v128 = vadd.f32 %v119, %v126
    %v129 = vadd.f32 %v120, %v126
    %v130 = vmul.f32 %v128, %v128
    %v131 = vmul.f32 %v129, %v129
    %v132 = vmul.f32 %v128, %v130
    %v133 = vmul.f32 %v129, %v131
    %v134 = vmul.f32 %v132, 0.044715
    %v135 = vmul.f32 %v133, 0.044715
    %v136 = vadd.f32 %v128, %v134
    %v137 = vadd.f32 %v129, %v135
    %v138 = vmul.f32 %v136, 0.7978846
    %v139 = vmul.f32 %v137, 0.7978846
    %v140 = vtanh.pop %v138
    %v141 = vtanh.pop %v139
    %v142 = vadd.f32 %v140, 1.0
    %v143 = vadd.f32 %v141, 1.0
    %v144 = vmul.f32 %v142, 0.5
    %v145 = vmul.f32 %v143, 0.5
    %v146 = vmul.f32 %v128, %v144
    %v147 = vmul.f32 %v129, %v145
    %148 = vst.msk [vmem:[%s3] sm:$0xff] %vm113, %v146
    %149 = vst.msk [vmem:[%s3 + $0x8] sm:$0xff] %vm113, %v147
  $region21: #{encoder_co_layer_fwd.32} parent=0 // pred_fallthru
    _
  // Predicated region
  $region22: #{encoder_co_layer_fwd.32} parent=0 // pred_check
    _
  $region23: #{encoder_co_layer_fwd.32} parent=0 // pred_check_branch
    %151 = sbr.rel (0) target = $region25
  $region24: #{encoder_co_layer_fwd.32} parent=0 // pred_region
    _
  $region25: #{encoder_co_layer_fwd.32} parent=0 // pred_fallthru
    _
  // Predicated region
  $region26: #{encoder_co_layer_fwd.32} parent=0 // pred_check
    _
  $region27: #{encoder_co_layer_fwd.32} parent=0 // pred_check_branch
    %153 = sbr.rel (0) target = $region29
  $region28: #{encoder_co_layer_fwd.32} parent=0 // pred_region
    _
  $region29: #{encoder_co_layer_fwd.32} parent=0 // pred_fallthru
    _

// kernel: encoder_co_layer_fwd.33
$region0: #{encoder_co_layer_fwd.33}
  #allocation0 [shape = 'u32[]', space=smem, size = 0x4, offset = 0x4, fixed_abs, tag = 'smem constant byte address 0x4 - core index']
  #allocation1 [shape = 'u32[144,128]{1,0:T(1,128)}', space=vmem, size = 0x12000, scoped, tag = 'internal scratch']
  #allocation2 [shape = 'f32[16,32]{1,0:T(8,128)}', space=vmem, size = 0x2000, scoped, tag = 'scratch operand']
  %s0 = inlined_call_operand.vmem [shape: f32[16,64], index: 0, kind: input, shape index: {}]
  %s1 = inlined_call_operand.vmem [shape: f32[64,32], index: 1, kind: input, shape index: {}]
  %s2 = inlined_call_operand.vmem [shape: f32[1,32], index: 2, kind: input, shape index: {}]
  %s3 = inlined_call_operand.vmem [shape: f32[16,32], index: 3, kind: input, shape index: {}]
  %s4 = inlined_call_operand.hbm [shape: f32[16,32], index: 4, kind: output, shape index: {}]
  %s5 = sld [smem:[#allocation0]]
  $region34: #{encoder_co_layer_fwd.33} parent=0
    _
  %s7 = ssub.s32 1, %s5
  %s8 = scalar_select 0, %s7, %s5
  $region1: #{encoder_co_layer_fwd.33} parent=0
    #allocation3 [shape = 'u8[8192]{0}', space=vmem, size = 0x2000, scoped, tag = 'output window, operand 0, single buffered']
    #allocation4 [shape = 's32[1]{0}', space=sflag, size = 0x4, scoped, tag = 'scoped memory for encoder_co_layer_fwd.33']
    %9 = vsyncpa [#allocation4], 0
    // Predicated region
    $region2: #{encoder_co_layer_fwd.33} parent=1 // pred_check
      _
    $region3: #{encoder_co_layer_fwd.33} parent=1 // pred_check_branch
      %11 = sbr.rel (0) target = $region5
    $region4: #{encoder_co_layer_fwd.33} parent=1 // pred_region
      _
    $region5: #{encoder_co_layer_fwd.33} parent=1 // pred_fallthru
      _
    // Predicated region
    $region6: #{encoder_co_layer_fwd.33} parent=1 // pred_check
      _
    $region7: #{encoder_co_layer_fwd.33} parent=1 // pred_check_branch
      %13 = sbr.rel (0) target = $region9
    $region8: #{encoder_co_layer_fwd.33} parent=1 // pred_region
      _
    $region9: #{encoder_co_layer_fwd.33} parent=1 // pred_fallthru
      _
    // Predicated region
    $region10: #{encoder_co_layer_fwd.33} parent=1 // pred_check
      _
    $region11: #{encoder_co_layer_fwd.33} parent=1 // pred_check_branch
      %15 = sbr.rel (0) target = $region13
    $region12: #{encoder_co_layer_fwd.33} parent=1 // pred_region
      _
    $region13: #{encoder_co_layer_fwd.33} parent=1 // pred_fallthru
      _
    // Predicated region
    $region14: #{encoder_co_layer_fwd.33} parent=1 // pred_check
      _
    $region15: #{encoder_co_layer_fwd.33} parent=1 // pred_check_branch
      %17 = sbr.rel (0) target = $region17
    $region16: #{encoder_co_layer_fwd.33} parent=1 // pred_region
      _
    $region17: #{encoder_co_layer_fwd.33} parent=1 // pred_fallthru
      _
    %p18 = scmp.eq.s32.totalorder 0, 0
    // Predicated region
    $region18: #{encoder_co_layer_fwd.33} parent=1 // pred_check
      %p19 = pneg %p18
    $region19: #{encoder_co_layer_fwd.33} parent=1 // pred_check_branch
      %21 = sbr.rel (%p19) target = $region21
    $region20: #{encoder_co_layer_fwd.33} parent=1 // pred_region
      %vm22 = vcmask 261120
      %23 = vst.msk [vmem:[#allocation2] sm:$0xff] %vm22, 0.0
      %24 = vst.msk [vmem:[#allocation2 + $0x8] sm:$0xff] %vm22, 0.0
    $region21: #{encoder_co_layer_fwd.33} parent=1 // pred_fallthru
      _
    %v25 = vld [vmem:[#allocation2] sm:$0xff]
    %v26 = vld [vmem:[#allocation2 + $0x8] sm:$0xff]
    %v27 = vld [vmem:[%s0] sm:$0xff]
    %v28 = vld [vmem:[%s0 + $0x8] sm:$0xff]
    %v29 = vld [vmem:[%s1] sm:$0xff]
    %v30 = vld [vmem:[%s1 + $0x8] sm:$0xff]
    %v31 = vld [vmem:[%s1 + $0x10] sm:$0xff]
    %v32 = vld [vmem:[%s1 + $0x18] sm:$0xff]
    %v33 = vld [vmem:[%s1 + $0x20] sm:$0xff]
    %v34 = vld [vmem:[%s1 + $0x28] sm:$0xff]
    %v35 = vld [vmem:[%s1 + $0x30] sm:$0xff]
    %v36 = vld [vmem:[%s1 + $0x38] sm:$0xff]
    %vm37 = vcmask 523264
    %v39 = vsel %vm37, %v27, 0
    %v42 = vsel %vm37, %v28, 0
    %44 = vmatprep.subr.mxu0 0.0
    %45 = vmatpush1.msra.mxu0 0.0
    %46 = vmatprep.subr.mxu0 0.0
    %47 = vmatpush1.msra.mxu0 0.0
    %48 = vmatprep.subr.mxu0 0.0
    %49 = vmatpush1.msra.mxu0 0.0
    %50 = vmatprep.subr.mxu0 0.0
    %51 = vmatpush1.msra.mxu0 0.0
    %52 = vmatprep.subr.mxu0 0.0
    %53 = vmatpush1.msra.mxu0 0.0
    %54 = vmatprep.subr.mxu0 0.0
    %55 = vmatpush1.msra.mxu0 0.0
    %56 = vmatprep.subr.mxu0 0.0
    %57 = vmatpush1.msra.mxu0 0.0
    %58 = vmatprep.subr.mxu0 0.0
    %59 = vmatpush1.msra.mxu0 0.0
    %60 = vmatprep.subr.mxu0 0.0
    %61 = vmatpush1.msra.mxu0 %v36
    %62 = vmatprep.subr.mxu0 0.0
    %63 = vmatpush1.msra.mxu0 %v35
    %64 = vmatprep.subr.mxu0 0.0
    %65 = vmatpush1.msra.mxu0 %v34
    %66 = vmatprep.subr.mxu0 0.0
    %67 = vmatpush1.msra.mxu0 %v33
    %68 = vmatprep.subr.mxu0 0.0
    %69 = vmatpush1.msra.mxu0 %v32
    %70 = vmatprep.subr.mxu0 0.0
    %71 = vmatpush1.msra.mxu0 %v31
    %72 = vmatprep.subr.mxu0 0.0
    %73 = vmatpush1.msra.mxu0 %v30
    %74 = vmatprep.subr.mxu0 0.0
    %75 = vmatpush1.msra.mxu0 %v29
    %76 = vmatprep.subr.mxu0 0.0
    %77 = vmatpush2.msra.mxu0 0.0
    %78 = vmatprep.subr.mxu0 0.0
    %79 = vmatpush2.msra.mxu0 0.0
    %80 = vmatprep.subr.mxu0 0.0
    %81 = vmatpush2.msra.mxu0 0.0
    %82 = vmatprep.subr.mxu0 0.0
    %83 = vmatpush2.msra.mxu0 0.0
    %84 = vmatprep.subr.mxu0 0.0
    %85 = vmatpush2.msra.mxu0 0.0
    %86 = vmatprep.subr.mxu0 0.0
    %87 = vmatpush2.msra.mxu0 0.0
    %88 = vmatprep.subr.mxu0 0.0
    %89 = vmatpush2.msra.mxu0 0.0
    %90 = vmatprep.subr.mxu0 0.0
    %91 = vmatpush2.msra.mxu0 0.0
    %92 = vmatprep.subr.mxu0 0.0
    %93 = vmatpush2.msra.mxu0 0.0
    %94 = vmatprep.subr.mxu0 0.0
    %95 = vmatpush2.msra.mxu0 0.0
    %96 = vmatprep.subr.mxu0 0.0
    %97 = vmatpush2.msra.mxu0 0.0
    %98 = vmatprep.subr.mxu0 0.0
    %99 = vmatpush2.msra.mxu0 0.0
    %100 = vmatprep.subr.mxu0 0.0
    %101 = vmatpush2.msra.mxu0 0.0
    %102 = vmatprep.subr.mxu0 0.0
    %103 = vmatpush2.msra.mxu0 0.0
    %104 = vmatprep.subr.mxu0 0.0
    %105 = vmatpush2.msra.mxu0 0.0
    %106 = vmatprep.subr.mxu0 0.0
    %107 = vmatpush2.msra.mxu0 0.0
    %108 = vmatprep.mubr.f32.mxu0 0.0
    %109 = vmatmul.mubr.f32.gmra.mxu0 %v39
    %v110 = vpop.f32.mrf.mxu0
    %v111 = vadd.f32 0.0, %v110
    %v112 = vpop.f32.mrf.mxu0
    %113 = vmatprep.mubr.f32.mxu0 0.0
    %114 = vmatmul.mubr.f32.gmra.mxu0 %v42
    %v115 = vpop.f32.mrf.mxu0
    %v116 = vadd.f32 0.0, %v115
    %v117 = vpop.f32.mrf.mxu0
    %118 = vdwg.mxu0
    %v119 = vadd.f32 %v25, %v111
    %v120 = vadd.f32 %v26, %v116
    %vm121 = vcmask 261120
    %122 = vst.msk [vmem:[#allocation2] sm:$0xff] %vm121, %v119
    %123 = vst.msk [vmem:[#allocation2 + $0x8] sm:$0xff] %vm121, %v120
    // Predicated region
    $region22: #{encoder_co_layer_fwd.33} parent=1 // pred_check
      %p124 = pneg %p18
    $region23: #{encoder_co_layer_fwd.33} parent=1 // pred_check_branch
      %126 = sbr.rel (%p124) target = $region25
    $region24: #{encoder_co_layer_fwd.33} parent=1 // pred_region
      %v127 = vld [vmem:[#allocation2] sm:$0xff]
      %v128 = vld [vmem:[#allocation2 + $0x8] sm:$0xff]
      %v129 = vld [vmem:[%s2] sm:$0x1]
      %v131 = vlaneseq
      %v132 = vshrl.u32 %v131, 7
      %v133 = vsub.s32 0, %v132
      %v134 = vrot.slane %v129, %v133
      %v136 = vadd.f32 %v127, %v134
      %v137 = vadd.f32 %v128, %v134
      %v138 = vld [vmem:[%s3] sm:$0xff]
      %v139 = vld [vmem:[%s3 + $0x8] sm:$0xff]
      %v140 = vadd.f32 %v136, %v138
      %v141 = vadd.f32 %v137, %v139
      %142 = vst.msk [vmem:[#allocation3] sm:$0xff] %vm121, %v140
      %143 = vst.msk [vmem:[#allocation3 + $0x8] sm:$0xff] %vm121, %v141
    $region25: #{encoder_co_layer_fwd.33} parent=1 // pred_fallthru
      _
    // Predicated region
    $region26: #{encoder_co_layer_fwd.33} parent=1 // pred_check
      _
    $region27: #{encoder_co_layer_fwd.33} parent=1 // pred_check_branch
      %145 = sbr.rel (0) target = $region29
    $region28: #{encoder_co_layer_fwd.33} parent=1 // pred_region
      %s147 = ssub.s32 256, 256
      %148 = vsyncadd [#allocation4], %s147
      %s149 = sshll.u32 [#allocation3], 4
      %s150 = int_to_ptr.vmem [resolvable:$true] %s149
      %155 = dma.vmem_to_hbm [thread:$0]  %s150, 256, %s4, [#allocation4], 128, 128, 8
    $region29: #{encoder_co_layer_fwd.33} parent=1 // pred_fallthru
      _
    // Predicated region
    $region30: #{encoder_co_layer_fwd.33} parent=1 // pred_check
      _
    $region31: #{encoder_co_layer_fwd.33} parent=1 // pred_check_branch
      %157 = sbr.rel (0) target = $region33
    $region32: #{encoder_co_layer_fwd.33} parent=1 // pred_region
      %158 = dma.done [#allocation4], 256
    $region33: #{encoder_co_layer_fwd.33} parent=1 // pred_fallthru
      _
    %159 = vsyncpa [#allocation4], 1

// kernel: encoder_co_layer_fwd.23
$region0: #{encoder_co_layer_fwd.23}
  #allocation0 [shape = 'u32[]', space=smem, size = 0x4, offset = 0x4, fixed_abs, tag = 'smem constant byte address 0x4 - core index']
  #allocation1 [shape = 'u32[144,128]{1,0:T(1,128)}', space=vmem, size = 0x12000, scoped, tag = 'internal scratch']
  %s0 = inlined_call_operand.vmem [shape: f32[2,8,32], index: 0, kind: input, shape index: {}]
  %s1 = inlined_call_operand.vmem [shape: f32[2,16,32], index: 1, kind: input, shape index: {}]
  %s2 = inlined_call_operand.vmem [shape: f32[2,16,32], index: 2, kind: input, shape index: {}]
  %s3 = inlined_call_operand.vmem [shape: f32[2,2,8,16], index: 3, kind: input, shape index: {}]
  %s4 = inlined_call_operand.vmem [shape: f32[2,8,32], index: 4, kind: output, shape index: {}]
  %s5 = sld [smem:[#allocation0]]
  $region49: #{encoder_co_layer_fwd.23} parent=0
    _
  %s7 = ssub.s32 1, %s5
  %s8 = scalar_select 0, %s7, %s5
  loop: start=0, step=1, limit=4
  $region2: #{encoder_co_layer_fwd.23} parent=0 // loop_pre_header
    _
  $region3: #{encoder_co_layer_fwd.23} parent=0 // loop_header
    %s10 = sphi 0, %s14
    %p11 = scmp.ge.s32.totalorder %s10, 4
    %s20 = sphi 0, %s22
    %s23 = sphi 0, %s20
    %s24 = sphi 0, %s23
    %s40 = sphi 0, %s24
    %s46 = sphi 0, %s48
    %s49 = sphi 0, %s46
    %s50 = sphi 0, %s49
    %s66 = sphi 0, %s50
    %s72 = sphi 0, %s74
    %s75 = sphi 0, %s72
    %s76 = sphi 0, %s75
    %s92 = sphi 0, %s76
    %s98 = sphi 0, %s100
    %s101 = sphi 0, %s98
    %s102 = sphi 0, %s101
    %s118 = sphi 0, %s102
    %s124 = sphi 0, %s126
    %s127 = sphi 0, %s124
    %s128 = sphi 0, %s127
    %s144 = sphi 0, %s128
  $region4: #{encoder_co_layer_fwd.23} parent=0 // loop_header_branch
    %13 = sbr.rel (%p11) target = $region8
  $region5: #{encoder_co_layer_fwd.23} parent=0 // loop_body
    %s15 = ssub.s32 %s10, 1
    %s16 = ssub.s32 %s10, 2
    %s17 = sadd.s32 %s10, 1
    %s18 = ssub.s32 %s10, %s17
    %p19 = scmp.eq.s32.totalorder %s18, 0
    %s21 = sadd.s32 %s20, 1
    %s22 = scalar_select %p19, %s20, %s21
    %p25 = pneg %p19
    %p26 = scmp.eq.s32.totalorder %s10, 1
    %p27 = por %p25, %p26
    %p28 = scmp.ne.s32.totalorder %s20, %s23
    %p29 = scmp.eq.s32.totalorder %s10, 0
    %p30 = por %p28, %p29
    %p31 = scmp.ne.s32.totalorder %s20, %s23
    %p32 = scmp.eq.s32.totalorder %s15, 1
    %p33 = por %p31, %p32
    %p34 = scmp.ne.s32.totalorder %s23, %s24
    %p35 = scmp.eq.s32.totalorder %s15, 0
    %p36 = por %p34, %p35
    %p37 = scmp.ne.s32.totalorder %s23, %s24
    %p38 = scmp.eq.s32.totalorder %s16, 1
    %p39 = por %p37, %p38
    %p41 = scmp.ne.s32.totalorder %s24, %s40
    %p42 = scmp.eq.s32.totalorder %s16, 0
    %p43 = por %p41, %p42
    %s44 = ssub.s32 %s10, %s17
    %p45 = scmp.eq.s32.totalorder %s44, 0
    %s47 = sadd.s32 %s46, 1
    %s48 = scalar_select %p45, %s46, %s47
    %p51 = pneg %p45
    %p52 = scmp.eq.s32.totalorder %s10, 1
    %p53 = por %p51, %p52
    %p54 = scmp.ne.s32.totalorder %s46, %s49
    %p55 = scmp.eq.s32.totalorder %s10, 0
    %p56 = por %p54, %p55
    %p57 = scmp.ne.s32.totalorder %s46, %s49
    %p58 = scmp.eq.s32.totalorder %s15, 1
    %p59 = por %p57, %p58
    %p60 = scmp.ne.s32.totalorder %s49, %s50
    %p61 = scmp.eq.s32.totalorder %s15, 0
    %p62 = por %p60, %p61
    %p63 = scmp.ne.s32.totalorder %s49, %s50
    %p64 = scmp.eq.s32.totalorder %s16, 1
    %p65 = por %p63, %p64
    %p67 = scmp.ne.s32.totalorder %s50, %s66
    %p68 = scmp.eq.s32.totalorder %s16, 0
    %p69 = por %p67, %p68
    %s70 = ssub.s32 %s10, %s17
    %p71 = scmp.eq.s32.totalorder %s70, 0
    %s73 = sadd.s32 %s72, 1
    %s74 = scalar_select %p71, %s72, %s73
    %p77 = pneg %p71
    %p78 = scmp.eq.s32.totalorder %s10, 1
    %p79 = por %p77, %p78
    %p80 = scmp.ne.s32.totalorder %s72, %s75
    %p81 = scmp.eq.s32.totalorder %s10, 0
    %p82 = por %p80, %p81
    %p83 = scmp.ne.s32.totalorder %s72, %s75
    %p84 = scmp.eq.s32.totalorder %s15, 1
    %p85 = por %p83, %p84
    %p86 = scmp.ne.s32.totalorder %s75, %s76
    %p87 = scmp.eq.s32.totalorder %s15, 0
    %p88 = por %p86, %p87
    %p89 = scmp.ne.s32.totalorder %s75, %s76
    %p90 = scmp.eq.s32.totalorder %s16, 1
    %p91 = por %p89, %p90
    %p93 = scmp.ne.s32.totalorder %s76, %s92
    %p94 = scmp.eq.s32.totalorder %s16, 0
    %p95 = por %p93, %p94
    %s96 = ssub.s32 %s10, %s17
    %p97 = scmp.eq.s32.totalorder %s96, 0
    %s99 = sadd.s32 %s98, 1
    %s100 = scalar_select %p97, %s98, %s99
    %p103 = pneg %p97
    %p104 = scmp.eq.s32.totalorder %s10, 1
    %p105 = por %p103, %p104
    %p106 = scmp.ne.s32.totalorder %s98, %s101
    %p107 = scmp.eq.s32.totalorder %s10, 0
    %p108 = por %p106, %p107
    %p109 = scmp.ne.s32.totalorder %s98, %s101
    %p110 = scmp.eq.s32.totalorder %s15, 1
    %p111 = por %p109, %p110
    %p112 = scmp.ne.s32.totalorder %s101, %s102
    %p113 = scmp.eq.s32.totalorder %s15, 0
    %p114 = por %p112, %p113
    %p115 = scmp.ne.s32.totalorder %s101, %s102
    %p116 = scmp.eq.s32.totalorder %s16, 1
    %p117 = por %p115, %p116
    %p119 = scmp.ne.s32.totalorder %s102, %s118
    %p120 = scmp.eq.s32.totalorder %s16, 0
    %p121 = por %p119, %p120
    %s122 = ssub.s32 %s10, %s17
    %p123 = scmp.eq.s32.totalorder %s122, 0
    %s125 = sadd.s32 %s124, 1
    %s126 = scalar_select %p123, %s124, %s125
    %p129 = pneg %p123
    %p130 = scmp.eq.s32.totalorder %s10, 1
    %p131 = por %p129, %p130
    %p132 = scmp.ne.s32.totalorder %s124, %s127
    %p133 = scmp.eq.s32.totalorder %s10, 0
    %p134 = por %p132, %p133
    %p135 = scmp.ne.s32.totalorder %s124, %s127
    %p136 = scmp.eq.s32.totalorder %s15, 1
    %p137 = por %p135, %p136
    %p138 = scmp.ne.s32.totalorder %s127, %s128
    %p139 = scmp.eq.s32.totalorder %s15, 0
    %p140 = por %p138, %p139
    %p141 = scmp.ne.s32.totalorder %s127, %s128
    %p142 = scmp.eq.s32.totalorder %s16, 1
    %p143 = por %p141, %p142
    %p145 = scmp.ne.s32.totalorder %s128, %s144
    %p146 = scmp.eq.s32.totalorder %s16, 0
    %p147 = por %p145, %p146
    %p148 = scmp.le.s32.totalorder 1, %s10
    %p149 = scmp.lt.s32.totalorder %s10, 3
    %p150 = pnand %p148, %p149
    %p151 = pneg %p150
    // Predicated region
    $region9: #{encoder_co_layer_fwd.23} parent=5 // pred_check
      _
    $region10: #{encoder_co_layer_fwd.23} parent=5 // pred_check_branch
      %153 = sbr.rel (%p150) target = $region12
    $region11: #{encoder_co_layer_fwd.23} parent=5 // pred_region
      %s154 = ssub.s32 %s10, 1
    $region12: #{encoder_co_layer_fwd.23} parent=5 // pred_fallthru
      _
    %p155 = scmp.lt.s32.totalorder %s10, 2
    // Predicated region
    $region13: #{encoder_co_layer_fwd.23} parent=5 // pred_check
      %p156 = pneg %p155
    $region14: #{encoder_co_layer_fwd.23} parent=5 // pred_check_branch
      %158 = sbr.rel (%p156) target = $region16
    $region15: #{encoder_co_layer_fwd.23} parent=5 // pred_region
      // Predicated region
      $region17: #{encoder_co_layer_fwd.23} parent=15 // pred_check
        %p159 = pneg %p30
      $region18: #{encoder_co_layer_fwd.23} parent=15 // pred_check_branch
        %161 = sbr.rel (%p159) target = $region20
      $region19: #{encoder_co_layer_fwd.23} parent=15 // pred_region
        %p162 = scmp.lt.s32.totalorder %s10, 1
        %s163 = scalar_select %p162, %s10, 1
        %s164 = smul.addr %s163, 8
        %s165 = scalar_lea.vmem %s0, %s164
      $region20: #{encoder_co_layer_fwd.23} parent=15 // pred_fallthru
        _
      // Predicated region
      $region21: #{encoder_co_layer_fwd.23} parent=15 // pred_check
        %p166 = pneg %p56
      $region22: #{encoder_co_layer_fwd.23} parent=15 // pred_check_branch
        %168 = sbr.rel (%p166) target = $region24
      $region23: #{encoder_co_layer_fwd.23} parent=15 // pred_region
        %p169 = scmp.lt.s32.totalorder %s10, 1
        %s170 = scalar_select %p169, %s10, 1
        %s171 = smul.addr %s170, 2
        %s172 = smul.addr %s171, 8
        %s173 = scalar_lea.vmem %s1, %s172
      $region24: #{encoder_co_layer_fwd.23} parent=15 // pred_fallthru
        _
      // Predicated region
      $region25: #{encoder_co_layer_fwd.23} parent=15 // pred_check
        %p174 = pneg %p82
      $region26: #{encoder_co_layer_fwd.23} parent=15 // pred_check_branch
        %176 = sbr.rel (%p174) target = $region28
      $region27: #{encoder_co_layer_fwd.23} parent=15 // pred_region
        %p177 = scmp.lt.s32.totalorder %s10, 1
        %s178 = scalar_select %p177, %s10, 1
        %s179 = smul.addr %s178, 2
        %s180 = smul.addr %s179, 8
        %s181 = scalar_lea.vmem %s2, %s180
      $region28: #{encoder_co_layer_fwd.23} parent=15 // pred_fallthru
        _
      // Predicated region
      $region29: #{encoder_co_layer_fwd.23} parent=15 // pred_check
        %p182 = pneg %p108
      $region30: #{encoder_co_layer_fwd.23} parent=15 // pred_check_branch
        %184 = sbr.rel (%p182) target = $region32
      $region31: #{encoder_co_layer_fwd.23} parent=15 // pred_region
        %p185 = scmp.lt.s32.totalorder %s10, 1
        %s186 = scalar_select %p185, %s10, 1
        %s187 = smul.addr %s186, 2
        %s188 = smul.addr %s187, 8
        %s189 = scalar_lea.vmem %s3, %s188
      $region32: #{encoder_co_layer_fwd.23} parent=15 // pred_fallthru
        _
    $region16: #{encoder_co_layer_fwd.23} parent=5 // pred_fallthru
      _
    %p190 = scmp.le.s32.totalorder 1, %s10
    %p191 = scmp.lt.s32.totalorder %s10, 3
    %p192 = pnand %p190, %p191
    %p193 = pneg %p192
    // Predicated region
    $region33: #{encoder_co_layer_fwd.23} parent=5 // pred_check
      _
    $region34: #{encoder_co_layer_fwd.23} parent=5 // pred_check_branch
      %195 = sbr.rel (%p192) target = $region36
    $region35: #{encoder_co_layer_fwd.23} parent=5 // pred_region
      %s196 = ssub.s32 %s10, 1
      %p197 = scmp.lt.s32.totalorder %s15, 1
      %s198 = scalar_select %p197, %s15, 1
      %s199 = smul.addr %s198, 8
      %s200 = scalar_lea.vmem %s0, %s199
      %p201 = pneg %p36
      %p202 = pneg %p33
      %p203 = scmp.lt.s32.totalorder %s15, 1
      %s204 = scalar_select %p203, %s15, 1
      %s205 = smul.addr %s204, 2
      %s206 = smul.addr %s205, 8
      %s207 = scalar_lea.vmem %s1, %s206
      %p208 = pneg %p62
      %p209 = pneg %p59
      %p210 = scmp.lt.s32.totalorder %s15, 1
      %s211 = scalar_select %p210, %s15, 1
      %s212 = smul.addr %s211, 2
      %s213 = smul.addr %s212, 8
      %s214 = scalar_lea.vmem %s2, %s213
      %p215 = pneg %p88
      %p216 = pneg %p85
      %p217 = scmp.lt.s32.totalorder %s15, 1
      %s218 = scalar_select %p217, %s15, 1
      %s219 = smul.addr %s218, 2
      %s220 = smul.addr %s219, 8
      %s221 = scalar_lea.vmem %s3, %s220
      %p222 = pneg %p114
      %p223 = pneg %p111
      %p224 = pneg %p140
      %p225 = pneg %p137
      %p226 = scmp.lt.s32.totalorder %s15, 1
      %s227 = scalar_select %p226, %s15, 1
      %s228 = smul.addr %s227, 8
      %s229 = scalar_lea.vmem %s4, %s228
      %p230 = scmp.lt.s32.totalorder %s15, 1
      %s231 = scalar_select %p230, %s15, 1
      %s232 = smul.addr %s231, 8
      %s233 = scalar_lea.vmem %s0, %s232
      %p234 = scmp.lt.s32.totalorder %s15, 1
      %s235 = scalar_select %p234, %s15, 1
      %s236 = smul.addr %s235, 2
      %s237 = smul.addr %s236, 8
      %s238 = scalar_lea.vmem %s1, %s237
      %p239 = scmp.lt.s32.totalorder %s15, 1
      %s240 = scalar_select %p239, %s15, 1
      %s241 = smul.addr %s240, 2
      %s242 = smul.addr %s241, 8
      %s243 = scalar_lea.vmem %s2, %s242
      %p244 = scmp.lt.s32.totalorder %s15, 1
      %s245 = scalar_select %p244, %s15, 1
      %s246 = smul.addr %s245, 2
      %s247 = smul.addr %s246, 8
      %s248 = scalar_lea.vmem %s3, %s247
      %p249 = scmp.lt.s32.totalorder %s15, 1
      %s250 = scalar_select %p249, %s15, 1
      %s251 = smul.addr %s250, 8
      %s252 = scalar_lea.vmem %s4, %s251
      %v253 = vld [vmem:[%s233] sm:$0xff]
      %v254 = vmul.f32 %v253, 0.25
      %v255 = vld [vmem:[%s238] sm:$0xff]
      %v256 = vld [vmem:[%s238 + $0x8] sm:$0xff]
      %v257 = vld [vmem:[%s243] sm:$0xff]
      %v258 = vld [vmem:[%s243 + $0x8] sm:$0xff]
      %v259 = vld [vmem:[%s248] sm:$0xff]
      %v260 = vld [vmem:[%s248 + $0x8] sm:$0xff]
      %vm261 = vcmask 130048
      %v263 = vsel %vm261, %v254, 0
      %v266 = vsel %vm261, %v255, 0
      %v269 = vsel %vm261, %v256, 0
      %271 = vmatprep.subr.mxu0 0.0
      %272 = vmatpush1.xpose.msra.mxu0 0.0
      %273 = vmatprep.subr.mxu0 0.0
      %274 = vmatpush1.xpose.msra.mxu0 0.0
      %275 = vmatprep.subr.mxu0 0.0
      %276 = vmatpush1.xpose.msra.mxu0 0.0
      %277 = vmatprep.subr.mxu0 0.0
      %278 = vmatpush1.xpose.msra.mxu0 0.0
      %279 = vmatprep.subr.mxu0 0.0
      %280 = vmatpush1.xpose.msra.mxu0 0.0
      %281 = vmatprep.subr.mxu0 0.0
      %282 = vmatpush1.xpose.msra.mxu0 0.0
      %283 = vmatprep.subr.mxu0 0.0
      %284 = vmatpush1.xpose.msra.mxu0 0.0
      %285 = vmatprep.subr.mxu0 0.0
      %286 = vmatpush1.xpose.msra.mxu0 0.0
      %287 = vmatprep.subr.mxu0 0.0
      %288 = vmatpush1.xpose.msra.mxu0 0.0
      %289 = vmatprep.subr.mxu0 0.0
      %290 = vmatpush1.xpose.msra.mxu0 0.0
      %291 = vmatprep.subr.mxu0 0.0
      %292 = vmatpush1.xpose.msra.mxu0 0.0
      %293 = vmatprep.subr.mxu0 0.0
      %294 = vmatpush1.xpose.msra.mxu0 0.0
      %295 = vmatprep.subr.mxu0 0.0
      %296 = vmatpush1.xpose.msra.mxu0 0.0
      %297 = vmatprep.subr.mxu0 0.0
      %298 = vmatpush1.xpose.msra.mxu0 0.0
      %299 = vmatprep.subr.mxu0 0.0
      %300 = vmatpush1.xpose.msra.mxu0 %v269
      %301 = vmatprep.subr.mxu0 0.0
      %302 = vmatpush1.xpose.msra.mxu0 %v266
      %303 = vmatprep.subr.mxu0 0.0
      %304 = vmatpush2.xpose.msra.mxu0 0.0
      %305 = vmatprep.subr.mxu0 0.0
      %306 = vmatpush2.xpose.msra.mxu0 0.0
      %307 = vmatprep.subr.mxu0 0.0
      %308 = vmatpush2.xpose.msra.mxu0 0.0
      %309 = vmatprep.subr.mxu0 0.0
      %310 = vmatpush2.xpose.msra.mxu0 0.0
      %311 = vmatprep.subr.mxu0 0.0
      %312 = vmatpush2.xpose.msra.mxu0 0.0
      %313 = vmatprep.subr.mxu0 0.0
      %314 = vmatpush2.xpose.msra.mxu0 0.0
      %315 = vmatprep.subr.mxu0 0.0
      %316 = vmatpush2.xpose.msra.mxu0 0.0
      %317 = vmatprep.subr.mxu0 0.0
      %318 = vmatpush2.xpose.msra.mxu0 0.0
      %319 = vmatprep.subr.mxu0 0.0
      %320 = vmatpush2.xpose.msra.mxu0 0.0
      %321 = vmatprep.subr.mxu0 0.0
      %322 = vmatpush2.xpose.msra.mxu0 0.0
      %323 = vmatprep.subr.mxu0 0.0
      %324 = vmatpush2.xpose.msra.mxu0 0.0
      %325 = vmatprep.subr.mxu0 0.0
      %326 = vmatpush2.xpose.msra.mxu0 0.0
      %327 = vmatprep.subr.mxu0 0.0
      %328 = vmatpush2.xpose.msra.mxu0 0.0
      %329 = vmatprep.subr.mxu0 0.0
      %330 = vmatpush2.xpose.msra.mxu0 0.0
      %331 = vmatprep.subr.mxu0 0.0
      %332 = vmatpush2.xpose.msra.mxu0 0.0
      %333 = vmatprep.subr.mxu0 0.0
      %334 = vmatpush2.xpose.msra.mxu0 0.0
      %335 = vmatprep.mubr.f32.mxu0 0.0
      %336 = vmatmul.mubr.f32.gmra.mxu0 %v263
      %v337 = vpop.f32.mrf.mxu0
      %v338 = vadd.f32 %v259, %v337
      %v339 = vpop.f32.mrf.mxu0
      %340 = vdwg.mxu0
      %v341 = vsel %vm261, %v338, -inf
      %342 = vmax.xlane.f32.xlu0 %v341
      %v343 = vpop.xlane.xlu0 %342
      %v344 = vsub.f32 %v338, %v343
      %v345 = vmul.f32 %v344, 1.442695
      %v346 = vpow.pop %v345
      %v347 = vsel %vm261, %v346, 0.0
      %348 = vadd.xlane.f32.xlu0 %v347
      %v349 = vpop.xlane.xlu0 %348
      %v350 = vrcp.pop %v349
      %v351 = vmul.f32 %v346, %v350
      %v353 = vsel %vm261, %v351, 0
      %355 = vmatprep.subr.mxu0 0.0
      %356 = vmatpush1.msra.mxu0 0.0
      %357 = vmatprep.subr.mxu0 0.0
      %358 = vmatpush1.msra.mxu0 0.0
      %359 = vmatprep.subr.mxu0 0.0
      %360 = vmatpush1.msra.mxu0 0.0
      %361 = vmatprep.subr.mxu0 0.0
      %362 = vmatpush1.msra.mxu0 0.0
      %363 = vmatprep.subr.mxu0 0.0
      %364 = vmatpush1.msra.mxu0 0.0
      %365 = vmatprep.subr.mxu0 0.0
      %366 = vmatpush1.msra.mxu0 0.0
      %367 = vmatprep.subr.mxu0 0.0
      %368 = vmatpush1.msra.mxu0 0.0
      %369 = vmatprep.subr.mxu0 0.0
      %370 = vmatpush1.msra.mxu0 0.0
      %371 = vmatprep.subr.mxu0 0.0
      %372 = vmatpush1.msra.mxu0 0.0
      %373 = vmatprep.subr.mxu0 0.0
      %374 = vmatpush1.msra.mxu0 0.0
      %375 = vmatprep.subr.mxu0 0.0
      %376 = vmatpush1.msra.mxu0 0.0
      %377 = vmatprep.subr.mxu0 0.0
      %378 = vmatpush1.msra.mxu0 0.0
      %379 = vmatprep.subr.mxu0 0.0
      %380 = vmatpush1.msra.mxu0 0.0
      %381 = vmatprep.subr.mxu0 0.0
      %382 = vmatpush1.msra.mxu0 0.0
      %383 = vmatprep.subr.mxu0 0.0
      %384 = vmatpush1.msra.mxu0 %v258
      %385 = vmatprep.subr.mxu0 0.0
      %386 = vmatpush1.msra.mxu0 %v257
      %387 = vmatprep.subr.mxu0 0.0
      %388 = vmatpush2.msra.mxu0 0.0
      %389 = vmatprep.subr.mxu0 0.0
      %390 = vmatpush2.msra.mxu0 0.0
      %391 = vmatprep.subr.mxu0 0.0
      %392 = vmatpush2.msra.mxu0 0.0
      %393 = vmatprep.subr.mxu0 0.0
      %394 = vmatpush2.msra.mxu0 0.0
      %395 = vmatprep.subr.mxu0 0.0
      %396 = vmatpush2.msra.mxu0 0.0
      %397 = vmatprep.subr.mxu0 0.0
      %398 = vmatpush2.msra.mxu0 0.0
      %399 = vmatprep.subr.mxu0 0.0
      %400 = vmatpush2.msra.mxu0 0.0
      %401 = vmatprep.subr.mxu0 0.0
      %402 = vmatpush2.msra.mxu0 0.0
      %403 = vmatprep.subr.mxu0 0.0
      %404 = vmatpush2.msra.mxu0 0.0
      %405 = vmatprep.subr.mxu0 0.0
      %406 = vmatpush2.msra.mxu0 0.0
      %407 = vmatprep.subr.mxu0 0.0
      %408 = vmatpush2.msra.mxu0 0.0
      %409 = vmatprep.subr.mxu0 0.0
      %410 = vmatpush2.msra.mxu0 0.0
      %411 = vmatprep.subr.mxu0 0.0
      %412 = vmatpush2.msra.mxu0 0.0
      %413 = vmatprep.subr.mxu0 0.0
      %414 = vmatpush2.msra.mxu0 0.0
      %415 = vmatprep.subr.mxu0 0.0
      %416 = vmatpush2.msra.mxu0 0.0
      %417 = vmatprep.subr.mxu0 0.0
      %418 = vmatpush2.msra.mxu0 0.0
      %419 = vmatprep.mubr.f32.mxu0 0.0
      %420 = vmatmul.mubr.f32.gmra.mxu0 %v353
      %v421 = vpop.f32.mrf.mxu0
      %v422 = vadd.f32 0.0, %v421
      %v423 = vpop.f32.mrf.mxu0
      %424 = vdwg.mxu0
      %425 = vrot.lane.b32.xlu0 %v254, 112
      %v426 = vpop.permute.xlu0 %425
      %427 = vrot.lane.b32.xlu0 %v255, 112
      %v428 = vpop.permute.xlu0 %427
      %429 = vrot.lane.b32.xlu0 %v256, 112
      %v430 = vpop.permute.xlu0 %429
      %v431 = vsel %vm261, %v426, 0
      %v433 = vsel %vm261, %v428, 0
      %v435 = vsel %vm261, %v430, 0
      %437 = vmatprep.subr.mxu0 0.0
      %438 = vmatpush1.xpose.msra.mxu0 0.0
      %439 = vmatprep.subr.mxu0 0.0
      %440 = vmatpush1.xpose.msra.mxu0 0.0
      %441 = vmatprep.subr.mxu0 0.0
      %442 = vmatpush1.xpose.msra.mxu0 0.0
      %443 = vmatprep.subr.mxu0 0.0
      %444 = vmatpush1.xpose.msra.mxu0 0.0
      %445 = vmatprep.subr.mxu0 0.0
      %446 = vmatpush1.xpose.msra.mxu0 0.0
      %447 = vmatprep.subr.mxu0 0.0
      %448 = vmatpush1.xpose.msra.mxu0 0.0
      %449 = vmatprep.subr.mxu0 0.0
      %450 = vmatpush1.xpose.msra.mxu0 0.0
      %451 = vmatprep.subr.mxu0 0.0
      %452 = vmatpush1.xpose.msra.mxu0 0.0
      %453 = vmatprep.subr.mxu0 0.0
      %454 = vmatpush1.xpose.msra.mxu0 0.0
      %455 = vmatprep.subr.mxu0 0.0
      %456 = vmatpush1.xpose.msra.mxu0 0.0
      %457 = vmatprep.subr.mxu0 0.0
      %458 = vmatpush1.xpose.msra.mxu0 0.0
      %459 = vmatprep.subr.mxu0 0.0
      %460 = vmatpush1.xpose.msra.mxu0 0.0
      %461 = vmatprep.subr.mxu0 0.0
      %462 = vmatpush1.xpose.msra.mxu0 0.0
      %463 = vmatprep.subr.mxu0 0.0
      %464 = vmatpush1.xpose.msra.mxu0 0.0
      %465 = vmatprep.subr.mxu0 0.0
      %466 = vmatpush1.xpose.msra.mxu0 %v435
      %467 = vmatprep.subr.mxu0 0.0
      %468 = vmatpush1.xpose.msra.mxu0 %v433
      %469 = vmatprep.subr.mxu0 0.0
      %470 = vmatpush2.xpose.msra.mxu0 0.0
      %471 = vmatprep.subr.mxu0 0.0
      %472 = vmatpush2.xpose.msra.mxu0 0.0
      %473 = vmatprep.subr.mxu0 0.0
      %474 = vmatpush2.xpose.msra.mxu0 0.0
      %475 = vmatprep.subr.mxu0 0.0
      %476 = vmatpush2.xpose.msra.mxu0 0.0
      %477 = vmatprep.subr.mxu0 0.0
      %478 = vmatpush2.xpose.msra.mxu0 0.0
      %479 = vmatprep.subr.mxu0 0.0
      %480 = vmatpush2.xpose.msra.mxu0 0.0
      %481 = vmatprep.subr.mxu0 0.0
      %482 = vmatpush2.xpose.msra.mxu0 0.0
      %483 = vmatprep.subr.mxu0 0.0
      %484 = vmatpush2.xpose.msra.mxu0 0.0
      %485 = vmatprep.subr.mxu0 0.0
      %486 = vmatpush2.xpose.msra.mxu0 0.0
      %487 = vmatprep.subr.mxu0 0.0
      %488 = vmatpush2.xpose.msra.mxu0 0.0
      %489 = vmatprep.subr.mxu0 0.0
      %490 = vmatpush2.xpose.msra.mxu0 0.0
      %491 = vmatprep.subr.mxu0 0.0
      %492 = vmatpush2.xpose.msra.mxu0 0.0
      %493 = vmatprep.subr.mxu0 0.0
      %494 = vmatpush2.xpose.msra.mxu0 0.0
      %495 = vmatprep.subr.mxu0 0.0
      %496 = vmatpush2.xpose.msra.mxu0 0.0
      %497 = vmatprep.subr.mxu0 0.0
      %498 = vmatpush2.xpose.msra.mxu0 0.0
      %499 = vmatprep.subr.mxu0 0.0
      %500 = vmatpush2.xpose.msra.mxu0 0.0
      %501 = vmatprep.mubr.f32.mxu0 0.0
      %502 = vmatmul.mubr.f32.gmra.mxu0 %v431
      %v503 = vpop.f32.mrf.mxu0
      %v504 = vadd.f32 %v260, %v503
      %v505 = vpop.f32.mrf.mxu0
      %506 = vdwg.mxu0
      %v507 = vsel %vm261, %v504, -inf
      %508 = vmax.xlane.f32.xlu0 %v507
      %v509 = vpop.xlane.xlu0 %508
      %v510 = vsub.f32 %v504, %v509
      %v511 = vmul.f32 %v510, 1.442695
      %v512 = vpow.pop %v511
      %v513 = vsel %vm261, %v512, 0.0
      %514 = vadd.xlane.f32.xlu0 %v513
      %v515 = vpop.xlane.xlu0 %514
      %v516 = vrcp.pop %v515
      %v517 = vmul.f32 %v512, %v516
      %520 = vrot.lane.b32.xlu0 %v257, 112
      %v521 = vpop.permute.xlu0 %520
      %522 = vrot.lane.b32.xlu0 %v258, 112
      %v523 = vpop.permute.xlu0 %522
      %v527 = vsel %vm261, %v517, 0
      %529 = vmatprep.subr.mxu0 0.0
      %530 = vmatpush1.msra.mxu0 0.0
      %531 = vmatprep.subr.mxu0 0.0
      %532 = vmatpush1.msra.mxu0 0.0
      %533 = vmatprep.subr.mxu0 0.0
      %534 = vmatpush1.msra.mxu0 0.0
      %535 = vmatprep.subr.mxu0 0.0
      %536 = vmatpush1.msra.mxu0 0.0
      %537 = vmatprep.subr.mxu0 0.0
      %538 = vmatpush1.msra.mxu0 0.0
      %539 = vmatprep.subr.mxu0 0.0
      %540 = vmatpush1.msra.mxu0 0.0
      %541 = vmatprep.subr.mxu0 0.0
      %542 = vmatpush1.msra.mxu0 0.0
      %543 = vmatprep.subr.mxu0 0.0
      %544 = vmatpush1.msra.mxu0 0.0
      %545 = vmatprep.subr.mxu0 0.0
      %546 = vmatpush1.msra.mxu0 0.0
      %547 = vmatprep.subr.mxu0 0.0
      %548 = vmatpush1.msra.mxu0 0.0
      %549 = vmatprep.subr.mxu0 0.0
      %550 = vmatpush1.msra.mxu0 0.0
      %551 = vmatprep.subr.mxu0 0.0
      %552 = vmatpush1.msra.mxu0 0.0
      %553 = vmatprep.subr.mxu0 0.0
      %554 = vmatpush1.msra.mxu0 0.0
      %555 = vmatprep.subr.mxu0 0.0
      %556 = vmatpush1.msra.mxu0 0.0
      %557 = vmatprep.subr.mxu0 0.0
      %558 = vmatpush1.msra.mxu0 %v523
      %559 = vmatprep.subr.mxu0 0.0
      %560 = vmatpush1.msra.mxu0 %v521
      %561 = vmatprep.subr.mxu0 0.0
      %562 = vmatpush2.msra.mxu0 0.0
      %563 = vmatprep.subr.mxu0 0.0
      %564 = vmatpush2.msra.mxu0 0.0
      %565 = vmatprep.subr.mxu0 0.0
      %566 = vmatpush2.msra.mxu0 0.0
      %567 = vmatprep.subr.mxu0 0.0
      %568 = vmatpush2.msra.mxu0 0.0
      %569 = vmatprep.subr.mxu0 0.0
      %570 = vmatpush2.msra.mxu0 0.0
      %571 = vmatprep.subr.mxu0 0.0
      %572 = vmatpush2.msra.mxu0 0.0
      %573 = vmatprep.subr.mxu0 0.0
      %574 = vmatpush2.msra.mxu0 0.0
      %575 = vmatprep.subr.mxu0 0.0
      %576 = vmatpush2.msra.mxu0 0.0
      %577 = vmatprep.subr.mxu0 0.0
      %578 = vmatpush2.msra.mxu0 0.0
      %579 = vmatprep.subr.mxu0 0.0
      %580 = vmatpush2.msra.mxu0 0.0
      %581 = vmatprep.subr.mxu0 0.0
      %582 = vmatpush2.msra.mxu0 0.0
      %583 = vmatprep.subr.mxu0 0.0
      %584 = vmatpush2.msra.mxu0 0.0
      %585 = vmatprep.subr.mxu0 0.0
      %586 = vmatpush2.msra.mxu0 0.0
      %587 = vmatprep.subr.mxu0 0.0
      %588 = vmatpush2.msra.mxu0 0.0
      %589 = vmatprep.subr.mxu0 0.0
      %590 = vmatpush2.msra.mxu0 0.0
      %591 = vmatprep.subr.mxu0 0.0
      %592 = vmatpush2.msra.mxu0 0.0
      %593 = vmatprep.mubr.f32.mxu0 0.0
      %594 = vmatmul.mubr.f32.gmra.mxu0 %v527
      %v595 = vpop.f32.mrf.mxu0
      %v596 = vadd.f32 0.0, %v595
      %v597 = vpop.f32.mrf.mxu0
      %598 = vdwg.mxu0
      %600 = vrot.lane.b32.xlu0 %v596, 16
      %v601 = vpop.permute.xlu0 %600
      %v603 = vsel %vm261, %v422, %v601
      %vm604 = vcmask 261120
      %605 = vst.msk [vmem:[%s252] sm:$0xff] %vm604, %v603
      %p606 = scmp.lt.s32.totalorder %s15, 1
      %s607 = scalar_select %p606, %s15, 1
      %s608 = smul.addr %s607, 8
      %s609 = scalar_lea.vmem %s4, %s608
      // Predicated region
      $region37: #{encoder_co_layer_fwd.23} parent=35 // pred_check
        %p610 = pneg %p137
      $region38: #{encoder_co_layer_fwd.23} parent=35 // pred_check_branch
        %612 = sbr.rel (%p610) target = $region40
      $region39: #{encoder_co_layer_fwd.23} parent=35 // pred_region
        _
      $region40: #{encoder_co_layer_fwd.23} parent=35 // pred_fallthru
        _
    $region36: #{encoder_co_layer_fwd.23} parent=5 // pred_fallthru
      _
    %p613 = scmp.le.s32.totalorder 2, %s10
    // Predicated region
    $region41: #{encoder_co_layer_fwd.23} parent=5 // pred_check
      %p614 = pneg %p613
    $region42: #{encoder_co_layer_fwd.23} parent=5 // pred_check_branch
      %616 = sbr.rel (%p614) target = $region44
    $region43: #{encoder_co_layer_fwd.23} parent=5 // pred_region
      %s617 = ssub.s32 %s10, 2
      // Predicated region
      $region45: #{encoder_co_layer_fwd.23} parent=43 // pred_check
        %p618 = pneg %p143
      $region46: #{encoder_co_layer_fwd.23} parent=43 // pred_check_branch
        %620 = sbr.rel (%p618) target = $region48
      $region47: #{encoder_co_layer_fwd.23} parent=43 // pred_region
        %p621 = scmp.lt.s32.totalorder %s16, 1
        %s622 = scalar_select %p621, %s16, 1
        %s623 = smul.addr %s622, 8
        %s624 = scalar_lea.vmem %s4, %s623
      $region48: #{encoder_co_layer_fwd.23} parent=43 // pred_fallthru
        _
    $region44: #{encoder_co_layer_fwd.23} parent=5 // pred_fallthru
      _
  $region6: #{encoder_co_layer_fwd.23} parent=0 // loop_footer
    %s14 = sadd.s32 1, %s10
  $region7: #{encoder_co_layer_fwd.23} parent=0 // loop_footer_branch
    %9 = sbr.rel target = $region3
  $region8: #{encoder_co_layer_fwd.23} parent=0 // loop_exit
    _

// kernel: encoder_co_layer_fwd.29
$region0: #{encoder_co_layer_fwd.29}
  #allocation0 [shape = 'u32[]', space=smem, size = 0x4, offset = 0x4, fixed_abs, tag = 'smem constant byte address 0x4 - core index']
  #allocation1 [shape = 'u32[144,128]{1,0:T(1,128)}', space=vmem, size = 0x12000, scoped, tag = 'internal scratch']
  #allocation2 [shape = 'f32[32,32]{1,0:T(8,128)}', space=vmem, size = 0x4000, scoped, tag = 'scratch operand']
  %s0 = inlined_call_operand.vmem [shape: f32[32,32], index: 0, kind: input, shape index: {}]
  %s1 = inlined_call_operand.vmem [shape: f32[32,32], index: 1, kind: input, shape index: {}]
  %s2 = inlined_call_operand.vmem [shape: f32[1,32], index: 2, kind: input, shape index: {}]
  %s3 = inlined_call_operand.vmem [shape: f32[32,32], index: 3, kind: input, shape index: {}]
  %s4 = inlined_call_operand.vmem [shape: f32[32,32], index: 4, kind: output, shape index: {}]
  %s5 = sld [smem:[#allocation0]]
  $region34: #{encoder_co_layer_fwd.29} parent=0
    _
  %s7 = ssub.s32 1, %s5
  %s8 = scalar_select 0, %s7, %s5
  // Predicated region
  $region2: #{encoder_co_layer_fwd.29} parent=0 // pred_check
    _
  $region3: #{encoder_co_layer_fwd.29} parent=0 // pred_check_branch
    %10 = sbr.rel (0) target = $region5
  $region4: #{encoder_co_layer_fwd.29} parent=0 // pred_region
    _
  $region5: #{encoder_co_layer_fwd.29} parent=0 // pred_fallthru
    _
  // Predicated region
  $region6: #{encoder_co_layer_fwd.29} parent=0 // pred_check
    _
  $region7: #{encoder_co_layer_fwd.29} parent=0 // pred_check_branch
    %12 = sbr.rel (0) target = $region9
  $region8: #{encoder_co_layer_fwd.29} parent=0 // pred_region
    _
  $region9: #{encoder_co_layer_fwd.29} parent=0 // pred_fallthru
    _
  // Predicated region
  $region10: #{encoder_co_layer_fwd.29} parent=0 // pred_check
    _
  $region11: #{encoder_co_layer_fwd.29} parent=0 // pred_check_branch
    %14 = sbr.rel (0) target = $region13
  $region12: #{encoder_co_layer_fwd.29} parent=0 // pred_region
    _
  $region13: #{encoder_co_layer_fwd.29} parent=0 // pred_fallthru
    _
  // Predicated region
  $region14: #{encoder_co_layer_fwd.29} parent=0 // pred_check
    _
  $region15: #{encoder_co_layer_fwd.29} parent=0 // pred_check_branch
    %16 = sbr.rel (0) target = $region17
  $region16: #{encoder_co_layer_fwd.29} parent=0 // pred_region
    _
  $region17: #{encoder_co_layer_fwd.29} parent=0 // pred_fallthru
    _
  %p17 = scmp.eq.s32.totalorder 0, 0
  // Predicated region
  $region18: #{encoder_co_layer_fwd.29} parent=0 // pred_check
    %p18 = pneg %p17
  $region19: #{encoder_co_layer_fwd.29} parent=0 // pred_check_branch
    %20 = sbr.rel (%p18) target = $region21
  $region20: #{encoder_co_layer_fwd.29} parent=0 // pred_region
    %vm21 = vcmask 261120
    %22 = vst.msk [vmem:[#allocation2] sm:$0xff] %vm21, 0.0
    %23 = vst.msk [vmem:[#allocation2 + $0x8] sm:$0xff] %vm21, 0.0
    %24 = vst.msk [vmem:[#allocation2 + $0x10] sm:$0xff] %vm21, 0.0
    %25 = vst.msk [vmem:[#allocation2 + $0x18] sm:$0xff] %vm21, 0.0
  $region21: #{encoder_co_layer_fwd.29} parent=0 // pred_fallthru
    _
  %v26 = vld [vmem:[#allocation2] sm:$0xff]
  %v27 = vld [vmem:[#allocation2 + $0x8] sm:$0xff]
  %v28 = vld [vmem:[#allocation2 + $0x10] sm:$0xff]
  %v29 = vld [vmem:[#allocation2 + $0x18] sm:$0xff]
  %v30 = vld [vmem:[%s0] sm:$0xff]
  %v31 = vld [vmem:[%s0 + $0x8] sm:$0xff]
  %v32 = vld [vmem:[%s0 + $0x10] sm:$0xff]
  %v33 = vld [vmem:[%s0 + $0x18] sm:$0xff]
  %v34 = vld [vmem:[%s1] sm:$0xff]
  %v35 = vld [vmem:[%s1 + $0x8] sm:$0xff]
  %v36 = vld [vmem:[%s1 + $0x10] sm:$0xff]
  %v37 = vld [vmem:[%s1 + $0x18] sm:$0xff]
  %vm38 = vcmask 261120
  %v40 = vsel %vm38, %v30, 0
  %v43 = vsel %vm38, %v31, 0
  %v46 = vsel %vm38, %v32, 0
  %v49 = vsel %vm38, %v33, 0
  %51 = vmatprep.subr.mxu0 0.0
  %52 = vmatpush1.msra.mxu0 0.0
  %53 = vmatprep.subr.mxu0 0.0
  %54 = vmatpush1.msra.mxu0 0.0
  %55 = vmatprep.subr.mxu0 0.0
  %56 = vmatpush1.msra.mxu0 0.0
  %57 = vmatprep.subr.mxu0 0.0
  %58 = vmatpush1.msra.mxu0 0.0
  %59 = vmatprep.subr.mxu0 0.0
  %60 = vmatpush1.msra.mxu0 0.0
  %61 = vmatprep.subr.mxu0 0.0
  %62 = vmatpush1.msra.mxu0 0.0
  %63 = vmatprep.subr.mxu0 0.0
  %64 = vmatpush1.msra.mxu0 0.0
  %65 = vmatprep.subr.mxu0 0.0
  %66 = vmatpush1.msra.mxu0 0.0
  %67 = vmatprep.subr.mxu0 0.0
  %68 = vmatpush1.msra.mxu0 0.0
  %69 = vmatprep.subr.mxu0 0.0
  %70 = vmatpush1.msra.mxu0 0.0
  %71 = vmatprep.subr.mxu0 0.0
  %72 = vmatpush1.msra.mxu0 0.0
  %73 = vmatprep.subr.mxu0 0.0
  %74 = vmatpush1.msra.mxu0 0.0
  %75 = vmatprep.subr.mxu0 0.0
  %76 = vmatpush1.msra.mxu0 %v37
  %77 = vmatprep.subr.mxu0 0.0
  %78 = vmatpush1.msra.mxu0 %v36
  %79 = vmatprep.subr.mxu0 0.0
  %80 = vmatpush1.msra.mxu0 %v35
  %81 = vmatprep.subr.mxu0 0.0
  %82 = vmatpush1.msra.mxu0 %v34
  %83 = vmatprep.subr.mxu0 0.0
  %84 = vmatpush2.msra.mxu0 0.0
  %85 = vmatprep.subr.mxu0 0.0
  %86 = vmatpush2.msra.mxu0 0.0
  %87 = vmatprep.subr.mxu0 0.0
  %88 = vmatpush2.msra.mxu0 0.0
  %89 = vmatprep.subr.mxu0 0.0
  %90 = vmatpush2.msra.mxu0 0.0
  %91 = vmatprep.subr.mxu0 0.0
  %92 = vmatpush2.msra.mxu0 0.0
  %93 = vmatprep.subr.mxu0 0.0
  %94 = vmatpush2.msra.mxu0 0.0
  %95 = vmatprep.subr.mxu0 0.0
  %96 = vmatpush2.msra.mxu0 0.0
  %97 = vmatprep.subr.mxu0 0.0
  %98 = vmatpush2.msra.mxu0 0.0
  %99 = vmatprep.subr.mxu0 0.0
  %100 = vmatpush2.msra.mxu0 0.0
  %101 = vmatprep.subr.mxu0 0.0
  %102 = vmatpush2.msra.mxu0 0.0
  %103 = vmatprep.subr.mxu0 0.0
  %104 = vmatpush2.msra.mxu0 0.0
  %105 = vmatprep.subr.mxu0 0.0
  %106 = vmatpush2.msra.mxu0 0.0
  %107 = vmatprep.subr.mxu0 0.0
  %108 = vmatpush2.msra.mxu0 0.0
  %109 = vmatprep.subr.mxu0 0.0
  %110 = vmatpush2.msra.mxu0 0.0
  %111 = vmatprep.subr.mxu0 0.0
  %112 = vmatpush2.msra.mxu0 0.0
  %113 = vmatprep.subr.mxu0 0.0
  %114 = vmatpush2.msra.mxu0 0.0
  %115 = vmatprep.mubr.f32.mxu0 0.0
  %116 = vmatmul.mubr.f32.gmra.mxu0 %v40
  %v117 = vpop.f32.mrf.mxu0
  %v118 = vadd.f32 0.0, %v117
  %v119 = vpop.f32.mrf.mxu0
  %120 = vmatprep.mubr.f32.mxu0 0.0
  %121 = vmatmul.mubr.f32.gmra.mxu0 %v43
  %v122 = vpop.f32.mrf.mxu0
  %v123 = vadd.f32 0.0, %v122
  %v124 = vpop.f32.mrf.mxu0
  %125 = vmatprep.mubr.f32.mxu0 0.0
  %126 = vmatmul.mubr.f32.gmra.mxu0 %v46
  %v127 = vpop.f32.mrf.mxu0
  %v128 = vadd.f32 0.0, %v127
  %v129 = vpop.f32.mrf.mxu0
  %130 = vmatprep.mubr.f32.mxu0 0.0
  %131 = vmatmul.mubr.f32.gmra.mxu0 %v49
  %v132 = vpop.f32.mrf.mxu0
  %v133 = vadd.f32 0.0, %v132
  %v134 = vpop.f32.mrf.mxu0
  %135 = vdwg.mxu0
  %v136 = vadd.f32 %v26, %v118
  %v137 = vadd.f32 %v27, %v123
  %v138 = vadd.f32 %v28, %v128
  %v139 = vadd.f32 %v29, %v133
  %140 = vst.msk [vmem:[#allocation2] sm:$0xff] %vm38, %v136
  %141 = vst.msk [vmem:[#allocation2 + $0x8] sm:$0xff] %vm38, %v137
  %142 = vst.msk [vmem:[#allocation2 + $0x10] sm:$0xff] %vm38, %v138
  %143 = vst.msk [vmem:[#allocation2 + $0x18] sm:$0xff] %vm38, %v139
  // Predicated region
  $region22: #{encoder_co_layer_fwd.29} parent=0 // pred_check
    %p144 = pneg %p17
  $region23: #{encoder_co_layer_fwd.29} parent=0 // pred_check_branch
    %146 = sbr.rel (%p144) target = $region25
  $region24: #{encoder_co_layer_fwd.29} parent=0 // pred_region
    %v147 = vld [vmem:[#allocation2] sm:$0xff]
    %v148 = vld [vmem:[#allocation2 + $0x8] sm:$0xff]
    %v149 = vld [vmem:[#allocation2 + $0x10] sm:$0xff]
    %v150 = vld [vmem:[#allocation2 + $0x18] sm:$0xff]
    %v151 = vld [vmem:[%s2] sm:$0x1]
    %v153 = vlaneseq
    %v154 = vshrl.u32 %v153, 7
    %v155 = vsub.s32 0, %v154
    %v156 = vrot.slane %v151, %v155
    %v158 = vadd.f32 %v147, %v156
    %v159 = vadd.f32 %v148, %v156
    %v160 = vadd.f32 %v149, %v156
    %v161 = vadd.f32 %v150, %v156
    %v162 = vld [vmem:[%s3] sm:$0xff]
    %v163 = vld [vmem:[%s3 + $0x8] sm:$0xff]
    %v164 = vld [vmem:[%s3 + $0x10] sm:$0xff]
    %v165 = vld [vmem:[%s3 + $0x18] sm:$0xff]
    %v166 = vadd.f32 %v158, %v162
    %v167 = vadd.f32 %v159, %v163
    %v168 = vadd.f32 %v160, %v164
    %v169 = vadd.f32 %v161, %v165
    %170 = vst.msk [vmem:[%s4] sm:$0xff] %vm38, %v166
    %171 = vst.msk [vmem:[%s4 + $0x8] sm:$0xff] %vm38, %v167
    %172 = vst.msk [vmem:[%s4 + $0x10] sm:$0xff] %vm38, %v168
    %173 = vst.msk [vmem:[%s4 + $0x18] sm:$0xff] %vm38, %v169
  $region25: #{encoder_co_layer_fwd.29} parent=0 // pred_fallthru
    _
  // Predicated region
  $region26: #{encoder_co_layer_fwd.29} parent=0 // pred_check
    _
  $region27: #{encoder_co_layer_fwd.29} parent=0 // pred_check_branch
    %175 = sbr.rel (0) target = $region29
  $region28: #{encoder_co_layer_fwd.29} parent=0 // pred_region
    _
  $region29: #{encoder_co_layer_fwd.29} parent=0 // pred_fallthru
    _
  // Predicated region
  $region30: #{encoder_co_layer_fwd.29} parent=0 // pred_check
    _
  $region31: #{encoder_co_layer_fwd.29} parent=0 // pred_check_branch
    %177 = sbr.rel (0) target = $region33
  $region32: #{encoder_co_layer_fwd.29} parent=0 // pred_region
    _
  $region33: #{encoder_co_layer_fwd.29} parent=0 // pred_fallthru
    _

// kernel: encoder_co_layer_fwd.34
$region0: #{encoder_co_layer_fwd.34}
  #allocation0 [shape = 'u32[]', space=smem, size = 0x4, offset = 0x4, fixed_abs, tag = 'smem constant byte address 0x4 - core index']
  #allocation1 [shape = 'u32[144,128]{1,0:T(1,128)}', space=vmem, size = 0x12000, scoped, tag = 'internal scratch']
  #allocation2 [shape = 'f32[32,48]{1,0:T(8,128)}', space=vmem, size = 0x4000, scoped, tag = 'scratch operand']
  %s0 = inlined_call_operand.vmem [shape: f32[32,32], index: 0, kind: input, shape index: {}]
  %s1 = inlined_call_operand.vmem [shape: f32[32,48], index: 1, kind: input, shape index: {}]
  %s2 = inlined_call_operand.vmem [shape: f32[1,48], index: 2, kind: input, shape index: {}]
  %s3 = inlined_call_operand.vmem [shape: f32[32,48], index: 3, kind: output, shape index: {}]
  %s4 = sld [smem:[#allocation0]]
  $region30: #{encoder_co_layer_fwd.34} parent=0
    _
  %s6 = ssub.s32 1, %s4
  %s7 = scalar_select 0, %s6, %s4
  // Predicated region
  $region2: #{encoder_co_layer_fwd.34} parent=0 // pred_check
    _
  $region3: #{encoder_co_layer_fwd.34} parent=0 // pred_check_branch
    %9 = sbr.rel (0) target = $region5
  $region4: #{encoder_co_layer_fwd.34} parent=0 // pred_region
    _
  $region5: #{encoder_co_layer_fwd.34} parent=0 // pred_fallthru
    _
  // Predicated region
  $region6: #{encoder_co_layer_fwd.34} parent=0 // pred_check
    _
  $region7: #{encoder_co_layer_fwd.34} parent=0 // pred_check_branch
    %11 = sbr.rel (0) target = $region9
  $region8: #{encoder_co_layer_fwd.34} parent=0 // pred_region
    _
  $region9: #{encoder_co_layer_fwd.34} parent=0 // pred_fallthru
    _
  // Predicated region
  $region10: #{encoder_co_layer_fwd.34} parent=0 // pred_check
    _
  $region11: #{encoder_co_layer_fwd.34} parent=0 // pred_check_branch
    %13 = sbr.rel (0) target = $region13
  $region12: #{encoder_co_layer_fwd.34} parent=0 // pred_region
    _
  $region13: #{encoder_co_layer_fwd.34} parent=0 // pred_fallthru
    _
  %p14 = scmp.eq.s32.totalorder 0, 0
  // Predicated region
  $region14: #{encoder_co_layer_fwd.34} parent=0 // pred_check
    %p15 = pneg %p14
  $region15: #{encoder_co_layer_fwd.34} parent=0 // pred_check_branch
    %17 = sbr.rel (%p15) target = $region17
  $region16: #{encoder_co_layer_fwd.34} parent=0 // pred_region
    %vm18 = vcmask 392192
    %19 = vst.msk [vmem:[#allocation2] sm:$0xff] %vm18, 0.0
    %20 = vst.msk [vmem:[#allocation2 + $0x8] sm:$0xff] %vm18, 0.0
    %21 = vst.msk [vmem:[#allocation2 + $0x10] sm:$0xff] %vm18, 0.0
    %22 = vst.msk [vmem:[#allocation2 + $0x18] sm:$0xff] %vm18, 0.0
  $region17: #{encoder_co_layer_fwd.34} parent=0 // pred_fallthru
    _
  %v23 = vld [vmem:[#allocation2] sm:$0xff]
  %v24 = vld [vmem:[#allocation2 + $0x8] sm:$0xff]
  %v25 = vld [vmem:[#allocation2 + $0x10] sm:$0xff]
  %v26 = vld [vmem:[#allocation2 + $0x18] sm:$0xff]
  %v27 = vld [vmem:[%s0] sm:$0xff]
  %v28 = vld [vmem:[%s0 + $0x8] sm:$0xff]
  %v29 = vld [vmem:[%s0 + $0x10] sm:$0xff]
  %v30 = vld [vmem:[%s0 + $0x18] sm:$0xff]
  %v31 = vld [vmem:[%s1] sm:$0xff]
  %v32 = vld [vmem:[%s1 + $0x8] sm:$0xff]
  %v33 = vld [vmem:[%s1 + $0x10] sm:$0xff]
  %v34 = vld [vmem:[%s1 + $0x18] sm:$0xff]
  %vm35 = vcmask 261120
  %v37 = vsel %vm35, %v27, 0
  %v40 = vsel %vm35, %v28, 0
  %v43 = vsel %vm35, %v29, 0
  %v46 = vsel %vm35, %v30, 0
  %48 = vmatprep.subr.mxu0 0.0
  %49 = vmatpush1.msra.mxu0 0.0
  %50 = vmatprep.subr.mxu0 0.0
  %51 = vmatpush1.msra.mxu0 0.0
  %52 = vmatprep.subr.mxu0 0.0
  %53 = vmatpush1.msra.mxu0 0.0
  %54 = vmatprep.subr.mxu0 0.0
  %55 = vmatpush1.msra.mxu0 0.0
  %56 = vmatprep.subr.mxu0 0.0
  %57 = vmatpush1.msra.mxu0 0.0
  %58 = vmatprep.subr.mxu0 0.0
  %59 = vmatpush1.msra.mxu0 0.0
  %60 = vmatprep.subr.mxu0 0.0
  %61 = vmatpush1.msra.mxu0 0.0
  %62 = vmatprep.subr.mxu0 0.0
  %63 = vmatpush1.msra.mxu0 0.0
  %64 = vmatprep.subr.mxu0 0.0
  %65 = vmatpush1.msra.mxu0 0.0
  %66 = vmatprep.subr.mxu0 0.0
  %67 = vmatpush1.msra.mxu0 0.0
  %68 = vmatprep.subr.mxu0 0.0
  %69 = vmatpush1.msra.mxu0 0.0
  %70 = vmatprep.subr.mxu0 0.0
  %71 = vmatpush1.msra.mxu0 0.0
  %72 = vmatprep.subr.mxu0 0.0
  %73 = vmatpush1.msra.mxu0 %v34
  %74 = vmatprep.subr.mxu0 0.0
  %75 = vmatpush1.msra.mxu0 %v33
  %76 = vmatprep.subr.mxu0 0.0
  %77 = vmatpush1.msra.mxu0 %v32
  %78 = vmatprep.subr.mxu0 0.0
  %79 = vmatpush1.msra.mxu0 %v31
  %80 = vmatprep.subr.mxu0 0.0
  %81 = vmatpush2.msra.mxu0 0.0
  %82 = vmatprep.subr.mxu0 0.0
  %83 = vmatpush2.msra.mxu0 0.0
  %84 = vmatprep.subr.mxu0 0.0
  %85 = vmatpush2.msra.mxu0 0.0
  %86 = vmatprep.subr.mxu0 0.0
  %87 = vmatpush2.msra.mxu0 0.0
  %88 = vmatprep.subr.mxu0 0.0
  %89 = vmatpush2.msra.mxu0 0.0
  %90 = vmatprep.subr.mxu0 0.0
  %91 = vmatpush2.msra.mxu0 0.0
  %92 = vmatprep.subr.mxu0 0.0
  %93 = vmatpush2.msra.mxu0 0.0
  %94 = vmatprep.subr.mxu0 0.0
  %95 = vmatpush2.msra.mxu0 0.0
  %96 = vmatprep.subr.mxu0 0.0
  %97 = vmatpush2.msra.mxu0 0.0
  %98 = vmatprep.subr.mxu0 0.0
  %99 = vmatpush2.msra.mxu0 0.0
  %100 = vmatprep.subr.mxu0 0.0
  %101 = vmatpush2.msra.mxu0 0.0
  %102 = vmatprep.subr.mxu0 0.0
  %103 = vmatpush2.msra.mxu0 0.0
  %104 = vmatprep.subr.mxu0 0.0
  %105 = vmatpush2.msra.mxu0 0.0
  %106 = vmatprep.subr.mxu0 0.0
  %107 = vmatpush2.msra.mxu0 0.0
  %108 = vmatprep.subr.mxu0 0.0
  %109 = vmatpush2.msra.mxu0 0.0
  %110 = vmatprep.subr.mxu0 0.0
  %111 = vmatpush2.msra.mxu0 0.0
  %112 = vmatprep.mubr.f32.mxu0 0.0
  %113 = vmatmul.mubr.f32.gmra.mxu0 %v37
  %v114 = vpop.f32.mrf.mxu0
  %v115 = vadd.f32 0.0, %v114
  %v116 = vpop.f32.mrf.mxu0
  %117 = vmatprep.mubr.f32.mxu0 0.0
  %118 = vmatmul.mubr.f32.gmra.mxu0 %v40
  %v119 = vpop.f32.mrf.mxu0
  %v120 = vadd.f32 0.0, %v119
  %v121 = vpop.f32.mrf.mxu0
  %122 = vmatprep.mubr.f32.mxu0 0.0
  %123 = vmatmul.mubr.f32.gmra.mxu0 %v43
  %v124 = vpop.f32.mrf.mxu0
  %v125 = vadd.f32 0.0, %v124
  %v126 = vpop.f32.mrf.mxu0
  %127 = vmatprep.mubr.f32.mxu0 0.0
  %128 = vmatmul.mubr.f32.gmra.mxu0 %v46
  %v129 = vpop.f32.mrf.mxu0
  %v130 = vadd.f32 0.0, %v129
  %v131 = vpop.f32.mrf.mxu0
  %132 = vdwg.mxu0
  %v133 = vadd.f32 %v23, %v115
  %v134 = vadd.f32 %v24, %v120
  %v135 = vadd.f32 %v25, %v125
  %v136 = vadd.f32 %v26, %v130
  %vm137 = vcmask 392192
  %138 = vst.msk [vmem:[#allocation2] sm:$0xff] %vm137, %v133
  %139 = vst.msk [vmem:[#allocation2 + $0x8] sm:$0xff] %vm137, %v134
  %140 = vst.msk [vmem:[#allocation2 + $0x10] sm:$0xff] %vm137, %v135
  %141 = vst.msk [vmem:[#allocation2 + $0x18] sm:$0xff] %vm137, %v136
  // Predicated region
  $region18: #{encoder_co_layer_fwd.34} parent=0 // pred_check
    %p142 = pneg %p14
  $region19: #{encoder_co_layer_fwd.34} parent=0 // pred_check_branch
    %144 = sbr.rel (%p142) target = $region21
  $region20: #{encoder_co_layer_fwd.34} parent=0 // pred_region
    %v145 = vld [vmem:[#allocation2] sm:$0xff]
    %v146 = vld [vmem:[#allocation2 + $0x8] sm:$0xff]
    %v147 = vld [vmem:[#allocation2 + $0x10] sm:$0xff]
    %v148 = vld [vmem:[#allocation2 + $0x18] sm:$0xff]
    %v149 = vld [vmem:[%s2] sm:$0x1]
    %v151 = vlaneseq
    %v152 = vshrl.u32 %v151, 7
    %v153 = vsub.s32 0, %v152
    %v154 = vrot.slane %v149, %v153
    %v156 = vadd.f32 %v145, %v154
    %v157 = vadd.f32 %v146, %v154
    %v158 = vadd.f32 %v147, %v154
    %v159 = vadd.f32 %v148, %v154
    %v160 = vmul.f32 %v156, %v156
    %v161 = vmul.f32 %v157, %v157
    %v162 = vmul.f32 %v158, %v158
    %v163 = vmul.f32 %v159, %v159
    %v164 = vmul.f32 %v156, %v160
    %v165 = vmul.f32 %v157, %v161
    %v166 = vmul.f32 %v158, %v162
    %v167 = vmul.f32 %v159, %v163
    %v168 = vmul.f32 %v164, 0.044715
    %v169 = vmul.f32 %v165, 0.044715
    %v170 = vmul.f32 %v166, 0.044715
    %v171 = vmul.f32 %v167, 0.044715
    %v172 = vadd.f32 %v156, %v168
    %v173 = vadd.f32 %v157, %v169
    %v174 = vadd.f32 %v158, %v170
    %v175 = vadd.f32 %v159, %v171
    %v176 = vmul.f32 %v172, 0.7978846
    %v177 = vmul.f32 %v173, 0.7978846
    %v178 = vmul.f32 %v174, 0.7978846
    %v179 = vmul.f32 %v175, 0.7978846
    %v180 = vtanh.pop %v176
    %v181 = vtanh.pop %v177
    %v182 = vtanh.pop %v178
    %v183 = vtanh.pop %v179
    %v184 = vadd.f32 %v180, 1.0
    %v185 = vadd.f32 %v181, 1.0
    %v186 = vadd.f32 %v182, 1.0
    %v187 = vadd.f32 %v183, 1.0
    %v188 = vmul.f32 %v184, 0.5
    %v189 = vmul.f32 %v185, 0.5
    %v190 = vmul.f32 %v186, 0.5
    %v191 = vmul.f32 %v187, 0.5
    %v192 = vmul.f32 %v156, %v188
    %v193 = vmul.f32 %v157, %v189
    %v194 = vmul.f32 %v158, %v190
    %v195 = vmul.f32 %v159, %v191
    %196 = vst.msk [vmem:[%s3] sm:$0xff] %vm137, %v192
    %197 = vst.msk [vmem:[%s3 + $0x8] sm:$0xff] %vm137, %v193
    %198 = vst.msk [vmem:[%s3 + $0x10] sm:$0xff] %vm137, %v194
    %199 = vst.msk [vmem:[%s3 + $0x18] sm:$0xff] %vm137, %v195
  $region21: #{encoder_co_layer_fwd.34} parent=0 // pred_fallthru
    _
  // Predicated region
  $region22: #{encoder_co_layer_fwd.34} parent=0 // pred_check
    _
  $region23: #{encoder_co_layer_fwd.34} parent=0 // pred_check_branch
    %201 = sbr.rel (0) target = $region25
  $region24: #{encoder_co_layer_fwd.34} parent=0 // pred_region
    _
  $region25: #{encoder_co_layer_fwd.34} parent=0 // pred_fallthru
    _
  // Predicated region
  $region26: #{encoder_co_layer_fwd.34} parent=0 // pred_check
    _
  $region27: #{encoder_co_layer_fwd.34} parent=0 // pred_check_branch
    %203 = sbr.rel (0) target = $region29
  $region28: #{encoder_co_layer_fwd.34} parent=0 // pred_region
    _
  $region29: #{encoder_co_layer_fwd.34} parent=0 // pred_fallthru
    _

// kernel: encoder_co_layer_fwd.35
$region0: #{encoder_co_layer_fwd.35}
  #allocation0 [shape = 'u32[]', space=smem, size = 0x4, offset = 0x4, fixed_abs, tag = 'smem constant byte address 0x4 - core index']
  #allocation1 [shape = 'u32[144,128]{1,0:T(1,128)}', space=vmem, size = 0x12000, scoped, tag = 'internal scratch']
  #allocation2 [shape = 'f32[32,32]{1,0:T(8,128)}', space=vmem, size = 0x4000, scoped, tag = 'scratch operand']
  %s0 = inlined_call_operand.vmem [shape: f32[32,48], index: 0, kind: input, shape index: {}]
  %s1 = inlined_call_operand.vmem [shape: f32[48,32], index: 1, kind: input, shape index: {}]
  %s2 = inlined_call_operand.vmem [shape: f32[1,32], index: 2, kind: input, shape index: {}]
  %s3 = inlined_call_operand.vmem [shape: f32[32,32], index: 3, kind: input, shape index: {}]
  %s4 = inlined_call_operand.hbm [shape: f32[32,32], index: 4, kind: output, shape index: {}]
  %s5 = sld [smem:[#allocation0]]
  $region34: #{encoder_co_layer_fwd.35} parent=0
    _
  %s7 = ssub.s32 1, %s5
  %s8 = scalar_select 0, %s7, %s5
  $region1: #{encoder_co_layer_fwd.35} parent=0
    #allocation3 [shape = 'u8[16384]{0}', space=vmem, size = 0x4000, scoped, tag = 'output window, operand 0, single buffered']
    #allocation4 [shape = 's32[1]{0}', space=sflag, size = 0x4, scoped, tag = 'scoped memory for encoder_co_layer_fwd.35']
    %9 = vsyncpa [#allocation4], 0
    // Predicated region
    $region2: #{encoder_co_layer_fwd.35} parent=1 // pred_check
      _
    $region3: #{encoder_co_layer_fwd.35} parent=1 // pred_check_branch
      %11 = sbr.rel (0) target = $region5
    $region4: #{encoder_co_layer_fwd.35} parent=1 // pred_region
      _
    $region5: #{encoder_co_layer_fwd.35} parent=1 // pred_fallthru
      _
    // Predicated region
    $region6: #{encoder_co_layer_fwd.35} parent=1 // pred_check
      _
    $region7: #{encoder_co_layer_fwd.35} parent=1 // pred_check_branch
      %13 = sbr.rel (0) target = $region9
    $region8: #{encoder_co_layer_fwd.35} parent=1 // pred_region
      _
    $region9: #{encoder_co_layer_fwd.35} parent=1 // pred_fallthru
      _
    // Predicated region
    $region10: #{encoder_co_layer_fwd.35} parent=1 // pred_check
      _
    $region11: #{encoder_co_layer_fwd.35} parent=1 // pred_check_branch
      %15 = sbr.rel (0) target = $region13
    $region12: #{encoder_co_layer_fwd.35} parent=1 // pred_region
      _
    $region13: #{encoder_co_layer_fwd.35} parent=1 // pred_fallthru
      _
    // Predicated region
    $region14: #{encoder_co_layer_fwd.35} parent=1 // pred_check
      _
    $region15: #{encoder_co_layer_fwd.35} parent=1 // pred_check_branch
      %17 = sbr.rel (0) target = $region17
    $region16: #{encoder_co_layer_fwd.35} parent=1 // pred_region
      _
    $region17: #{encoder_co_layer_fwd.35} parent=1 // pred_fallthru
      _
    %p18 = scmp.eq.s32.totalorder 0, 0
    // Predicated region
    $region18: #{encoder_co_layer_fwd.35} parent=1 // pred_check
      %p19 = pneg %p18
    $region19: #{encoder_co_layer_fwd.35} parent=1 // pred_check_branch
      %21 = sbr.rel (%p19) target = $region21
    $region20: #{encoder_co_layer_fwd.35} parent=1 // pred_region
      %vm22 = vcmask 261120
      %23 = vst.msk [vmem:[#allocation2] sm:$0xff] %vm22, 0.0
      %24 = vst.msk [vmem:[#allocation2 + $0x8] sm:$0xff] %vm22, 0.0
      %25 = vst.msk [vmem:[#allocation2 + $0x10] sm:$0xff] %vm22, 0.0
      %26 = vst.msk [vmem:[#allocation2 + $0x18] sm:$0xff] %vm22, 0.0
    $region21: #{encoder_co_layer_fwd.35} parent=1 // pred_fallthru
      _
    %v27 = vld [vmem:[#allocation2] sm:$0xff]
    %v28 = vld [vmem:[#allocation2 + $0x8] sm:$0xff]
    %v29 = vld [vmem:[#allocation2 + $0x10] sm:$0xff]
    %v30 = vld [vmem:[#allocation2 + $0x18] sm:$0xff]
    %v31 = vld [vmem:[%s0] sm:$0xff]
    %v32 = vld [vmem:[%s0 + $0x8] sm:$0xff]
    %v33 = vld [vmem:[%s0 + $0x10] sm:$0xff]
    %v34 = vld [vmem:[%s0 + $0x18] sm:$0xff]
    %v35 = vld [vmem:[%s1] sm:$0xff]
    %v36 = vld [vmem:[%s1 + $0x8] sm:$0xff]
    %v37 = vld [vmem:[%s1 + $0x10] sm:$0xff]
    %v38 = vld [vmem:[%s1 + $0x18] sm:$0xff]
    %v39 = vld [vmem:[%s1 + $0x20] sm:$0xff]
    %v40 = vld [vmem:[%s1 + $0x28] sm:$0xff]
    %vm41 = vcmask 392192
    %v43 = vsel %vm41, %v31, 0
    %v46 = vsel %vm41, %v32, 0
    %v49 = vsel %vm41, %v33, 0
    %v52 = vsel %vm41, %v34, 0
    %54 = vmatprep.subr.mxu0 0.0
    %55 = vmatpush1.msra.mxu0 0.0
    %56 = vmatprep.subr.mxu0 0.0
    %57 = vmatpush1.msra.mxu0 0.0
    %58 = vmatprep.subr.mxu0 0.0
    %59 = vmatpush1.msra.mxu0 0.0
    %60 = vmatprep.subr.mxu0 0.0
    %61 = vmatpush1.msra.mxu0 0.0
    %62 = vmatprep.subr.mxu0 0.0
    %63 = vmatpush1.msra.mxu0 0.0
    %64 = vmatprep.subr.mxu0 0.0
    %65 = vmatpush1.msra.mxu0 0.0
    %66 = vmatprep.subr.mxu0 0.0
    %67 = vmatpush1.msra.mxu0 0.0
    %68 = vmatprep.subr.mxu0 0.0
    %69 = vmatpush1.msra.mxu0 0.0
    %70 = vmatprep.subr.mxu0 0.0
    %71 = vmatpush1.msra.mxu0 0.0
    %72 = vmatprep.subr.mxu0 0.0
    %73 = vmatpush1.msra.mxu0 0.0
    %74 = vmatprep.subr.mxu0 0.0
    %75 = vmatpush1.msra.mxu0 %v40
    %76 = vmatprep.subr.mxu0 0.0
    %77 = vmatpush1.msra.mxu0 %v39
    %78 = vmatprep.subr.mxu0 0.0
    %79 = vmatpush1.msra.mxu0 %v38
    %80 = vmatprep.subr.mxu0 0.0
    %81 = vmatpush1.msra.mxu0 %v37
    %82 = vmatprep.subr.mxu0 0.0
    %83 = vmatpush1.msra.mxu0 %v36
    %84 = vmatprep.subr.mxu0 0.0
    %85 = vmatpush1.msra.mxu0 %v35
    %86 = vmatprep.subr.mxu0 0.0
    %87 = vmatpush2.msra.mxu0 0.0
    %88 = vmatprep.subr.mxu0 0.0
    %89 = vmatpush2.msra.mxu0 0.0
    %90 = vmatprep.subr.mxu0 0.0
    %91 = vmatpush2.msra.mxu0 0.0
    %92 = vmatprep.subr.mxu0 0.0
    %93 = vmatpush2.msra.mxu0 0.0
    %94 = vmatprep.subr.mxu0 0.0
    %95 = vmatpush2.msra.mxu0 0.0
    %96 = vmatprep.subr.mxu0 0.0
    %97 = vmatpush2.msra.mxu0 0.0
    %98 = vmatprep.subr.mxu0 0.0
    %99 = vmatpush2.msra.mxu0 0.0
    %100 = vmatprep.subr.mxu0 0.0
    %101 = vmatpush2.msra.mxu0 0.0
    %102 = vmatprep.subr.mxu0 0.0
    %103 = vmatpush2.msra.mxu0 0.0
    %104 = vmatprep.subr.mxu0 0.0
    %105 = vmatpush2.msra.mxu0 0.0
    %106 = vmatprep.subr.mxu0 0.0
    %107 = vmatpush2.msra.mxu0 0.0
    %108 = vmatprep.subr.mxu0 0.0
    %109 = vmatpush2.msra.mxu0 0.0
    %110 = vmatprep.subr.mxu0 0.0
    %111 = vmatpush2.msra.mxu0 0.0
    %112 = vmatprep.subr.mxu0 0.0
    %113 = vmatpush2.msra.mxu0 0.0
    %114 = vmatprep.subr.mxu0 0.0
    %115 = vmatpush2.msra.mxu0 0.0
    %116 = vmatprep.subr.mxu0 0.0
    %117 = vmatpush2.msra.mxu0 0.0
    %118 = vmatprep.mubr.f32.mxu0 0.0
    %119 = vmatmul.mubr.f32.gmra.mxu0 %v43
    %v120 = vpop.f32.mrf.mxu0
    %v121 = vadd.f32 0.0, %v120
    %v122 = vpop.f32.mrf.mxu0
    %123 = vmatprep.mubr.f32.mxu0 0.0
    %124 = vmatmul.mubr.f32.gmra.mxu0 %v46
    %v125 = vpop.f32.mrf.mxu0
    %v126 = vadd.f32 0.0, %v125
    %v127 = vpop.f32.mrf.mxu0
    %128 = vmatprep.mubr.f32.mxu0 0.0
    %129 = vmatmul.mubr.f32.gmra.mxu0 %v49
    %v130 = vpop.f32.mrf.mxu0
    %v131 = vadd.f32 0.0, %v130
    %v132 = vpop.f32.mrf.mxu0
    %133 = vmatprep.mubr.f32.mxu0 0.0
    %134 = vmatmul.mubr.f32.gmra.mxu0 %v52
    %v135 = vpop.f32.mrf.mxu0
    %v136 = vadd.f32 0.0, %v135
    %v137 = vpop.f32.mrf.mxu0
    %138 = vdwg.mxu0
    %v139 = vadd.f32 %v27, %v121
    %v140 = vadd.f32 %v28, %v126
    %v141 = vadd.f32 %v29, %v131
    %v142 = vadd.f32 %v30, %v136
    %vm143 = vcmask 261120
    %144 = vst.msk [vmem:[#allocation2] sm:$0xff] %vm143, %v139
    %145 = vst.msk [vmem:[#allocation2 + $0x8] sm:$0xff] %vm143, %v140
    %146 = vst.msk [vmem:[#allocation2 + $0x10] sm:$0xff] %vm143, %v141
    %147 = vst.msk [vmem:[#allocation2 + $0x18] sm:$0xff] %vm143, %v142
    // Predicated region
    $region22: #{encoder_co_layer_fwd.35} parent=1 // pred_check
      %p148 = pneg %p18
    $region23: #{encoder_co_layer_fwd.35} parent=1 // pred_check_branch
      %150 = sbr.rel (%p148) target = $region25
    $region24: #{encoder_co_layer_fwd.35} parent=1 // pred_region
      %v151 = vld [vmem:[#allocation2] sm:$0xff]
      %v152 = vld [vmem:[#allocation2 + $0x8] sm:$0xff]
      %v153 = vld [vmem:[#allocation2 + $0x10] sm:$0xff]
      %v154 = vld [vmem:[#allocation2 + $0x18] sm:$0xff]
      %v155 = vld [vmem:[%s2] sm:$0x1]
      %v157 = vlaneseq
      %v158 = vshrl.u32 %v157, 7
      %v159 = vsub.s32 0, %v158
      %v160 = vrot.slane %v155, %v159
      %v162 = vadd.f32 %v151, %v160
      %v163 = vadd.f32 %v152, %v160
      %v164 = vadd.f32 %v153, %v160
      %v165 = vadd.f32 %v154, %v160
      %v166 = vld [vmem:[%s3] sm:$0xff]
      %v167 = vld [vmem:[%s3 + $0x8] sm:$0xff]
      %v168 = vld [vmem:[%s3 + $0x10] sm:$0xff]
      %v169 = vld [vmem:[%s3 + $0x18] sm:$0xff]
      %v170 = vadd.f32 %v162, %v166
      %v171 = vadd.f32 %v163, %v167
      %v172 = vadd.f32 %v164, %v168
      %v173 = vadd.f32 %v165, %v169
      %174 = vst.msk [vmem:[#allocation3] sm:$0xff] %vm143, %v170
      %175 = vst.msk [vmem:[#allocation3 + $0x8] sm:$0xff] %vm143, %v171
      %176 = vst.msk [vmem:[#allocation3 + $0x10] sm:$0xff] %vm143, %v172
      %177 = vst.msk [vmem:[#allocation3 + $0x18] sm:$0xff] %vm143, %v173
    $region25: #{encoder_co_layer_fwd.35} parent=1 // pred_fallthru
      _
    // Predicated region
    $region26: #{encoder_co_layer_fwd.35} parent=1 // pred_check
      _
    $region27: #{encoder_co_layer_fwd.35} parent=1 // pred_check_branch
      %179 = sbr.rel (0) target = $region29
    $region28: #{encoder_co_layer_fwd.35} parent=1 // pred_region
      %s181 = ssub.s32 512, 512
      %182 = vsyncadd [#allocation4], %s181
      %s183 = sshll.u32 [#allocation3], 4
      %s184 = int_to_ptr.vmem [resolvable:$true] %s183
      %189 = dma.vmem_to_hbm [thread:$0]  %s184, 512, %s4, [#allocation4], 128, 128, 8
    $region29: #{encoder_co_layer_fwd.35} parent=1 // pred_fallthru
      _
    // Predicated region
    $region30: #{encoder_co_layer_fwd.35} parent=1 // pred_check
      _
    $region31: #{encoder_co_layer_fwd.35} parent=1 // pred_check_branch
      %191 = sbr.rel (0) target = $region33
    $region32: #{encoder_co_layer_fwd.35} parent=1 // pred_region
      %192 = dma.done [#allocation4], 512
    $region33: #{encoder_co_layer_fwd.35} parent=1 // pred_fallthru
      _
    %193 = vsyncpa [#allocation4], 1

// kernel: encoder_co_layer_fwd.28
$region0: #{encoder_co_layer_fwd.28}
  #allocation0 [shape = 'u32[]', space=smem, size = 0x4, offset = 0x4, fixed_abs, tag = 'smem constant byte address 0x4 - core index']
  #allocation1 [shape = 'u32[144,128]{1,0:T(1,128)}', space=vmem, size = 0x12000, scoped, tag = 'internal scratch']
  %s0 = inlined_call_operand.vmem [shape: f32[2,16,32], index: 0, kind: input, shape index: {}]
  %s1 = inlined_call_operand.vmem [shape: f32[2,8,32], index: 1, kind: input, shape index: {}]
  %s2 = inlined_call_operand.vmem [shape: f32[2,8,32], index: 2, kind: input, shape index: {}]
  %s3 = inlined_call_operand.vmem [shape: f32[2,2,16,8], index: 3, kind: input, shape index: {}]
  %s4 = inlined_call_operand.vmem [shape: f32[2,16,32], index: 4, kind: output, shape index: {}]
  %s5 = sld [smem:[#allocation0]]
  $region49: #{encoder_co_layer_fwd.28} parent=0
    _
  %s7 = ssub.s32 1, %s5
  %s8 = scalar_select 0, %s7, %s5
  loop: start=0, step=1, limit=4
  $region2: #{encoder_co_layer_fwd.28} parent=0 // loop_pre_header
    _
  $region3: #{encoder_co_layer_fwd.28} parent=0 // loop_header
    %s10 = sphi 0, %s14
    %p11 = scmp.ge.s32.totalorder %s10, 4
    %s20 = sphi 0, %s22
    %s23 = sphi 0, %s20
    %s24 = sphi 0, %s23
    %s40 = sphi 0, %s24
    %s46 = sphi 0, %s48
    %s49 = sphi 0, %s46
    %s50 = sphi 0, %s49
    %s66 = sphi 0, %s50
    %s72 = sphi 0, %s74
    %s75 = sphi 0, %s72
    %s76 = sphi 0, %s75
    %s92 = sphi 0, %s76
    %s98 = sphi 0, %s100
    %s101 = sphi 0, %s98
    %s102 = sphi 0, %s101
    %s118 = sphi 0, %s102
    %s124 = sphi 0, %s126
    %s127 = sphi 0, %s124
    %s128 = sphi 0, %s127
    %s144 = sphi 0, %s128
  $region4: #{encoder_co_layer_fwd.28} parent=0 // loop_header_branch
    %13 = sbr.rel (%p11) target = $region8
  $region5: #{encoder_co_layer_fwd.28} parent=0 // loop_body
    %s15 = ssub.s32 %s10, 1
    %s16 = ssub.s32 %s10, 2
    %s17 = sadd.s32 %s10, 1
    %s18 = ssub.s32 %s10, %s17
    %p19 = scmp.eq.s32.totalorder %s18, 0
    %s21 = sadd.s32 %s20, 1
    %s22 = scalar_select %p19, %s20, %s21
    %p25 = pneg %p19
    %p26 = scmp.eq.s32.totalorder %s10, 1
    %p27 = por %p25, %p26
    %p28 = scmp.ne.s32.totalorder %s20, %s23
    %p29 = scmp.eq.s32.totalorder %s10, 0
    %p30 = por %p28, %p29
    %p31 = scmp.ne.s32.totalorder %s20, %s23
    %p32 = scmp.eq.s32.totalorder %s15, 1
    %p33 = por %p31, %p32
    %p34 = scmp.ne.s32.totalorder %s23, %s24
    %p35 = scmp.eq.s32.totalorder %s15, 0
    %p36 = por %p34, %p35
    %p37 = scmp.ne.s32.totalorder %s23, %s24
    %p38 = scmp.eq.s32.totalorder %s16, 1
    %p39 = por %p37, %p38
    %p41 = scmp.ne.s32.totalorder %s24, %s40
    %p42 = scmp.eq.s32.totalorder %s16, 0
    %p43 = por %p41, %p42
    %s44 = ssub.s32 %s10, %s17
    %p45 = scmp.eq.s32.totalorder %s44, 0
    %s47 = sadd.s32 %s46, 1
    %s48 = scalar_select %p45, %s46, %s47
    %p51 = pneg %p45
    %p52 = scmp.eq.s32.totalorder %s10, 1
    %p53 = por %p51, %p52
    %p54 = scmp.ne.s32.totalorder %s46, %s49
    %p55 = scmp.eq.s32.totalorder %s10, 0
    %p56 = por %p54, %p55
    %p57 = scmp.ne.s32.totalorder %s46, %s49
    %p58 = scmp.eq.s32.totalorder %s15, 1
    %p59 = por %p57, %p58
    %p60 = scmp.ne.s32.totalorder %s49, %s50
    %p61 = scmp.eq.s32.totalorder %s15, 0
    %p62 = por %p60, %p61
    %p63 = scmp.ne.s32.totalorder %s49, %s50
    %p64 = scmp.eq.s32.totalorder %s16, 1
    %p65 = por %p63, %p64
    %p67 = scmp.ne.s32.totalorder %s50, %s66
    %p68 = scmp.eq.s32.totalorder %s16, 0
    %p69 = por %p67, %p68
    %s70 = ssub.s32 %s10, %s17
    %p71 = scmp.eq.s32.totalorder %s70, 0
    %s73 = sadd.s32 %s72, 1
    %s74 = scalar_select %p71, %s72, %s73
    %p77 = pneg %p71
    %p78 = scmp.eq.s32.totalorder %s10, 1
    %p79 = por %p77, %p78
    %p80 = scmp.ne.s32.totalorder %s72, %s75
    %p81 = scmp.eq.s32.totalorder %s10, 0
    %p82 = por %p80, %p81
    %p83 = scmp.ne.s32.totalorder %s72, %s75
    %p84 = scmp.eq.s32.totalorder %s15, 1
    %p85 = por %p83, %p84
    %p86 = scmp.ne.s32.totalorder %s75, %s76
    %p87 = scmp.eq.s32.totalorder %s15, 0
    %p88 = por %p86, %p87
    %p89 = scmp.ne.s32.totalorder %s75, %s76
    %p90 = scmp.eq.s32.totalorder %s16, 1
    %p91 = por %p89, %p90
    %p93 = scmp.ne.s32.totalorder %s76, %s92
    %p94 = scmp.eq.s32.totalorder %s16, 0
    %p95 = por %p93, %p94
    %s96 = ssub.s32 %s10, %s17
    %p97 = scmp.eq.s32.totalorder %s96, 0
    %s99 = sadd.s32 %s98, 1
    %s100 = scalar_select %p97, %s98, %s99
    %p103 = pneg %p97
    %p104 = scmp.eq.s32.totalorder %s10, 1
    %p105 = por %p103, %p104
    %p106 = scmp.ne.s32.totalorder %s98, %s101
    %p107 = scmp.eq.s32.totalorder %s10, 0
    %p108 = por %p106, %p107
    %p109 = scmp.ne.s32.totalorder %s98, %s101
    %p110 = scmp.eq.s32.totalorder %s15, 1
    %p111 = por %p109, %p110
    %p112 = scmp.ne.s32.totalorder %s101, %s102
    %p113 = scmp.eq.s32.totalorder %s15, 0
    %p114 = por %p112, %p113
    %p115 = scmp.ne.s32.totalorder %s101, %s102
    %p116 = scmp.eq.s32.totalorder %s16, 1
    %p117 = por %p115, %p116
    %p119 = scmp.ne.s32.totalorder %s102, %s118
    %p120 = scmp.eq.s32.totalorder %s16, 0
    %p121 = por %p119, %p120
    %s122 = ssub.s32 %s10, %s17
    %p123 = scmp.eq.s32.totalorder %s122, 0
    %s125 = sadd.s32 %s124, 1
    %s126 = scalar_select %p123, %s124, %s125
    %p129 = pneg %p123
    %p130 = scmp.eq.s32.totalorder %s10, 1
    %p131 = por %p129, %p130
    %p132 = scmp.ne.s32.totalorder %s124, %s127
    %p133 = scmp.eq.s32.totalorder %s10, 0
    %p134 = por %p132, %p133
    %p135 = scmp.ne.s32.totalorder %s124, %s127
    %p136 = scmp.eq.s32.totalorder %s15, 1
    %p137 = por %p135, %p136
    %p138 = scmp.ne.s32.totalorder %s127, %s128
    %p139 = scmp.eq.s32.totalorder %s15, 0
    %p140 = por %p138, %p139
    %p141 = scmp.ne.s32.totalorder %s127, %s128
    %p142 = scmp.eq.s32.totalorder %s16, 1
    %p143 = por %p141, %p142
    %p145 = scmp.ne.s32.totalorder %s128, %s144
    %p146 = scmp.eq.s32.totalorder %s16, 0
    %p147 = por %p145, %p146
    %p148 = scmp.le.s32.totalorder 1, %s10
    %p149 = scmp.lt.s32.totalorder %s10, 3
    %p150 = pnand %p148, %p149
    %p151 = pneg %p150
    // Predicated region
    $region9: #{encoder_co_layer_fwd.28} parent=5 // pred_check
      _
    $region10: #{encoder_co_layer_fwd.28} parent=5 // pred_check_branch
      %153 = sbr.rel (%p150) target = $region12
    $region11: #{encoder_co_layer_fwd.28} parent=5 // pred_region
      %s154 = ssub.s32 %s10, 1
    $region12: #{encoder_co_layer_fwd.28} parent=5 // pred_fallthru
      _
    %p155 = scmp.lt.s32.totalorder %s10, 2
    // Predicated region
    $region13: #{encoder_co_layer_fwd.28} parent=5 // pred_check
      %p156 = pneg %p155
    $region14: #{encoder_co_layer_fwd.28} parent=5 // pred_check_branch
      %158 = sbr.rel (%p156) target = $region16
    $region15: #{encoder_co_layer_fwd.28} parent=5 // pred_region
      // Predicated region
      $region17: #{encoder_co_layer_fwd.28} parent=15 // pred_check
        %p159 = pneg %p30
      $region18: #{encoder_co_layer_fwd.28} parent=15 // pred_check_branch
        %161 = sbr.rel (%p159) target = $region20
      $region19: #{encoder_co_layer_fwd.28} parent=15 // pred_region
        %p162 = scmp.lt.s32.totalorder %s10, 1
        %s163 = scalar_select %p162, %s10, 1
        %s164 = smul.addr %s163, 2
        %s165 = smul.addr %s164, 8
        %s166 = scalar_lea.vmem %s0, %s165
      $region20: #{encoder_co_layer_fwd.28} parent=15 // pred_fallthru
        _
      // Predicated region
      $region21: #{encoder_co_layer_fwd.28} parent=15 // pred_check
        %p167 = pneg %p56
      $region22: #{encoder_co_layer_fwd.28} parent=15 // pred_check_branch
        %169 = sbr.rel (%p167) target = $region24
      $region23: #{encoder_co_layer_fwd.28} parent=15 // pred_region
        %p170 = scmp.lt.s32.totalorder %s10, 1
        %s171 = scalar_select %p170, %s10, 1
        %s172 = smul.addr %s171, 8
        %s173 = scalar_lea.vmem %s1, %s172
      $region24: #{encoder_co_layer_fwd.28} parent=15 // pred_fallthru
        _
      // Predicated region
      $region25: #{encoder_co_layer_fwd.28} parent=15 // pred_check
        %p174 = pneg %p82
      $region26: #{encoder_co_layer_fwd.28} parent=15 // pred_check_branch
        %176 = sbr.rel (%p174) target = $region28
      $region27: #{encoder_co_layer_fwd.28} parent=15 // pred_region
        %p177 = scmp.lt.s32.totalorder %s10, 1
        %s178 = scalar_select %p177, %s10, 1
        %s179 = smul.addr %s178, 8
        %s180 = scalar_lea.vmem %s2, %s179
      $region28: #{encoder_co_layer_fwd.28} parent=15 // pred_fallthru
        _
      // Predicated region
      $region29: #{encoder_co_layer_fwd.28} parent=15 // pred_check
        %p181 = pneg %p108
      $region30: #{encoder_co_layer_fwd.28} parent=15 // pred_check_branch
        %183 = sbr.rel (%p181) target = $region32
      $region31: #{encoder_co_layer_fwd.28} parent=15 // pred_region
        %p184 = scmp.lt.s32.totalorder %s10, 1
        %s185 = scalar_select %p184, %s10, 1
        %s186 = smul.addr %s185, 4
        %s187 = smul.addr %s186, 8
        %s188 = scalar_lea.vmem %s3, %s187
      $region32: #{encoder_co_layer_fwd.28} parent=15 // pred_fallthru
        _
    $region16: #{encoder_co_layer_fwd.28} parent=5 // pred_fallthru
      _
    %p189 = scmp.le.s32.totalorder 1, %s10
    %p190 = scmp.lt.s32.totalorder %s10, 3
    %p191 = pnand %p189, %p190
    %p192 = pneg %p191
    // Predicated region
    $region33: #{encoder_co_layer_fwd.28} parent=5 // pred_check
      _
    $region34: #{encoder_co_layer_fwd.28} parent=5 // pred_check_branch
      %194 = sbr.rel (%p191) target = $region36
    $region35: #{encoder_co_layer_fwd.28} parent=5 // pred_region
      %s195 = ssub.s32 %s10, 1
      %p196 = scmp.lt.s32.totalorder %s15, 1
      %s197 = scalar_select %p196, %s15, 1
      %s198 = smul.addr %s197, 2
      %s199 = smul.addr %s198, 8
      %s200 = scalar_lea.vmem %s0, %s199
      %p201 = pneg %p36
      %p202 = pneg %p33
      %p203 = scmp.lt.s32.totalorder %s15, 1
      %s204 = scalar_select %p203, %s15, 1
      %s205 = smul.addr %s204, 8
      %s206 = scalar_lea.vmem %s1, %s205
      %p207 = pneg %p62
      %p208 = pneg %p59
      %p209 = scmp.lt.s32.totalorder %s15, 1
      %s210 = scalar_select %p209, %s15, 1
      %s211 = smul.addr %s210, 8
      %s212 = scalar_lea.vmem %s2, %s211
      %p213 = pneg %p88
      %p214 = pneg %p85
      %p215 = scmp.lt.s32.totalorder %s15, 1
      %s216 = scalar_select %p215, %s15, 1
      %s217 = smul.addr %s216, 4
      %s218 = smul.addr %s217, 8
      %s219 = scalar_lea.vmem %s3, %s218
      %p220 = pneg %p114
      %p221 = pneg %p111
      %p222 = pneg %p140
      %p223 = pneg %p137
      %p224 = scmp.lt.s32.totalorder %s15, 1
      %s225 = scalar_select %p224, %s15, 1
      %s226 = smul.addr %s225, 2
      %s227 = smul.addr %s226, 8
      %s228 = scalar_lea.vmem %s4, %s227
      %p229 = scmp.lt.s32.totalorder %s15, 1
      %s230 = scalar_select %p229, %s15, 1
      %s231 = smul.addr %s230, 2
      %s232 = smul.addr %s231, 8
      %s233 = scalar_lea.vmem %s0, %s232
      %p234 = scmp.lt.s32.totalorder %s15, 1
      %s235 = scalar_select %p234, %s15, 1
      %s236 = smul.addr %s235, 8
      %s237 = scalar_lea.vmem %s1, %s236
      %p238 = scmp.lt.s32.totalorder %s15, 1
      %s239 = scalar_select %p238, %s15, 1
      %s240 = smul.addr %s239, 8
      %s241 = scalar_lea.vmem %s2, %s240
      %p242 = scmp.lt.s32.totalorder %s15, 1
      %s243 = scalar_select %p242, %s15, 1
      %s244 = smul.addr %s243, 4
      %s245 = smul.addr %s244, 8
      %s246 = scalar_lea.vmem %s3, %s245
      %p247 = scmp.lt.s32.totalorder %s15, 1
      %s248 = scalar_select %p247, %s15, 1
      %s249 = smul.addr %s248, 2
      %s250 = smul.addr %s249, 8
      %s251 = scalar_lea.vmem %s4, %s250
      %v252 = vld [vmem:[%s233] sm:$0xff]
      %v253 = vld [vmem:[%s233 + $0x8] sm:$0xff]
      %v254 = vmul.f32 %v252, 0.25
      %v255 = vmul.f32 %v253, 0.25
      %v256 = vld [vmem:[%s237] sm:$0xff]
      %v257 = vld [vmem:[%s241] sm:$0xff]
      %v258 = vld [vmem:[%s246] sm:$0xff]
      %v259 = vld [vmem:[%s246 + $0x8] sm:$0xff]
      %v260 = vld [vmem:[%s246 + $0x10] sm:$0xff]
      %v261 = vld [vmem:[%s246 + $0x18] sm:$0xff]
      %vm262 = vcmask 130048
      %v264 = vsel %vm262, %v254, 0
      %v267 = vsel %vm262, %v255, 0
      %v270 = vsel %vm262, %v256, 0
      %272 = vmatprep.subr.mxu0 0.0
      %273 = vmatpush1.xpose.msra.mxu0 0.0
      %274 = vmatprep.subr.mxu0 0.0
      %275 = vmatpush1.xpose.msra.mxu0 0.0
      %276 = vmatprep.subr.mxu0 0.0
      %277 = vmatpush1.xpose.msra.mxu0 0.0
      %278 = vmatprep.subr.mxu0 0.0
      %279 = vmatpush1.xpose.msra.mxu0 0.0
      %280 = vmatprep.subr.mxu0 0.0
      %281 = vmatpush1.xpose.msra.mxu0 0.0
      %282 = vmatprep.subr.mxu0 0.0
      %283 = vmatpush1.xpose.msra.mxu0 0.0
      %284 = vmatprep.subr.mxu0 0.0
      %285 = vmatpush1.xpose.msra.mxu0 0.0
      %286 = vmatprep.subr.mxu0 0.0
      %287 = vmatpush1.xpose.msra.mxu0 0.0
      %288 = vmatprep.subr.mxu0 0.0
      %289 = vmatpush1.xpose.msra.mxu0 0.0
      %290 = vmatprep.subr.mxu0 0.0
      %291 = vmatpush1.xpose.msra.mxu0 0.0
      %292 = vmatprep.subr.mxu0 0.0
      %293 = vmatpush1.xpose.msra.mxu0 0.0
      %294 = vmatprep.subr.mxu0 0.0
      %295 = vmatpush1.xpose.msra.mxu0 0.0
      %296 = vmatprep.subr.mxu0 0.0
      %297 = vmatpush1.xpose.msra.mxu0 0.0
      %298 = vmatprep.subr.mxu0 0.0
      %299 = vmatpush1.xpose.msra.mxu0 0.0
      %300 = vmatprep.subr.mxu0 0.0
      %301 = vmatpush1.xpose.msra.mxu0 0.0
      %302 = vmatprep.subr.mxu0 0.0
      %303 = vmatpush1.xpose.msra.mxu0 %v270
      %304 = vmatprep.subr.mxu0 0.0
      %305 = vmatpush2.xpose.msra.mxu0 0.0
      %306 = vmatprep.subr.mxu0 0.0
      %307 = vmatpush2.xpose.msra.mxu0 0.0
      %308 = vmatprep.subr.mxu0 0.0
      %309 = vmatpush2.xpose.msra.mxu0 0.0
      %310 = vmatprep.subr.mxu0 0.0
      %311 = vmatpush2.xpose.msra.mxu0 0.0
      %312 = vmatprep.subr.mxu0 0.0
      %313 = vmatpush2.xpose.msra.mxu0 0.0
      %314 = vmatprep.subr.mxu0 0.0
      %315 = vmatpush2.xpose.msra.mxu0 0.0
      %316 = vmatprep.subr.mxu0 0.0
      %317 = vmatpush2.xpose.msra.mxu0 0.0
      %318 = vmatprep.subr.mxu0 0.0
      %319 = vmatpush2.xpose.msra.mxu0 0.0
      %320 = vmatprep.subr.mxu0 0.0
      %321 = vmatpush2.xpose.msra.mxu0 0.0
      %322 = vmatprep.subr.mxu0 0.0
      %323 = vmatpush2.xpose.msra.mxu0 0.0
      %324 = vmatprep.subr.mxu0 0.0
      %325 = vmatpush2.xpose.msra.mxu0 0.0
      %326 = vmatprep.subr.mxu0 0.0
      %327 = vmatpush2.xpose.msra.mxu0 0.0
      %328 = vmatprep.subr.mxu0 0.0
      %329 = vmatpush2.xpose.msra.mxu0 0.0
      %330 = vmatprep.subr.mxu0 0.0
      %331 = vmatpush2.xpose.msra.mxu0 0.0
      %332 = vmatprep.subr.mxu0 0.0
      %333 = vmatpush2.xpose.msra.mxu0 0.0
      %334 = vmatprep.subr.mxu0 0.0
      %335 = vmatpush2.xpose.msra.mxu0 0.0
      %336 = vmatprep.mubr.f32.mxu0 0.0
      %337 = vmatmul.mubr.f32.gmra.mxu0 %v264
      %v338 = vpop.f32.mrf.mxu0
      %v339 = vadd.f32 %v258, %v338
      %v340 = vpop.f32.mrf.mxu0
      %341 = vmatprep.mubr.f32.mxu0 0.0
      %342 = vmatmul.mubr.f32.gmra.mxu0 %v267
      %v343 = vpop.f32.mrf.mxu0
      %v344 = vadd.f32 %v259, %v343
      %v345 = vpop.f32.mrf.mxu0
      %346 = vdwg.mxu0
      %vm347 = vcmask 64512
      %v348 = vsel %vm347, %v339, -inf
      %349 = vmax.xlane.f32.xlu0 %v348
      %v350 = vpop.xlane.xlu0 %349
      %v351 = vsel %vm347, %v344, -inf
      %352 = vmax.xlane.f32.xlu0 %v351
      %v353 = vpop.xlane.xlu0 %352
      %v354 = vsub.f32 %v339, %v350
      %v355 = vsub.f32 %v344, %v353
      %v356 = vmul.f32 %v354, 1.442695
      %v357 = vpow.pop %v356
      %v358 = vmul.f32 %v355, 1.442695
      %v359 = vpow.pop %v358
      %v360 = vsel %vm347, %v357, 0.0
      %361 = vadd.xlane.f32.xlu0 %v360
      %v362 = vpop.xlane.xlu0 %361
      %v363 = vsel %vm347, %v359, 0.0
      %364 = vadd.xlane.f32.xlu0 %v363
      %v365 = vpop.xlane.xlu0 %364
      %v366 = vrcp.pop %v362
      %v367 = vrcp.pop %v365
      %v368 = vmul.f32 %v357, %v366
      %v369 = vmul.f32 %v359, %v367
      %v371 = vsel %vm347, %v368, 0
      %v374 = vsel %vm347, %v369, 0
      %376 = vmatprep.subr.mxu0 0.0
      %377 = vmatpush1.msra.mxu0 0.0
      %378 = vmatprep.subr.mxu0 0.0
      %379 = vmatpush1.msra.mxu0 0.0
      %380 = vmatprep.subr.mxu0 0.0
      %381 = vmatpush1.msra.mxu0 0.0
      %382 = vmatprep.subr.mxu0 0.0
      %383 = vmatpush1.msra.mxu0 0.0
      %384 = vmatprep.subr.mxu0 0.0
      %385 = vmatpush1.msra.mxu0 0.0
      %386 = vmatprep.subr.mxu0 0.0
      %387 = vmatpush1.msra.mxu0 0.0
      %388 = vmatprep.subr.mxu0 0.0
      %389 = vmatpush1.msra.mxu0 0.0
      %390 = vmatprep.subr.mxu0 0.0
      %391 = vmatpush1.msra.mxu0 0.0
      %392 = vmatprep.subr.mxu0 0.0
      %393 = vmatpush1.msra.mxu0 0.0
      %394 = vmatprep.subr.mxu0 0.0
      %395 = vmatpush1.msra.mxu0 0.0
      %396 = vmatprep.subr.mxu0 0.0
      %397 = vmatpush1.msra.mxu0 0.0
      %398 = vmatprep.subr.mxu0 0.0
      %399 = vmatpush1.msra.mxu0 0.0
      %400 = vmatprep.subr.mxu0 0.0
      %401 = vmatpush1.msra.mxu0 0.0
      %402 = vmatprep.subr.mxu0 0.0
      %403 = vmatpush1.msra.mxu0 0.0
      %404 = vmatprep.subr.mxu0 0.0
      %405 = vmatpush1.msra.mxu0 0.0
      %406 = vmatprep.subr.mxu0 0.0
      %407 = vmatpush1.msra.mxu0 %v257
      %408 = vmatprep.subr.mxu0 0.0
      %409 = vmatpush2.msra.mxu0 0.0
      %410 = vmatprep.subr.mxu0 0.0
      %411 = vmatpush2.msra.mxu0 0.0
      %412 = vmatprep.subr.mxu0 0.0
      %413 = vmatpush2.msra.mxu0 0.0
      %414 = vmatprep.subr.mxu0 0.0
      %415 = vmatpush2.msra.mxu0 0.0
      %416 = vmatprep.subr.mxu0 0.0
      %417 = vmatpush2.msra.mxu0 0.0
      %418 = vmatprep.subr.mxu0 0.0
      %419 = vmatpush2.msra.mxu0 0.0
      %420 = vmatprep.subr.mxu0 0.0
      %421 = vmatpush2.msra.mxu0 0.0
      %422 = vmatprep.subr.mxu0 0.0
      %423 = vmatpush2.msra.mxu0 0.0
      %424 = vmatprep.subr.mxu0 0.0
      %425 = vmatpush2.msra.mxu0 0.0
      %426 = vmatprep.subr.mxu0 0.0
      %427 = vmatpush2.msra.mxu0 0.0
      %428 = vmatprep.subr.mxu0 0.0
      %429 = vmatpush2.msra.mxu0 0.0
      %430 = vmatprep.subr.mxu0 0.0
      %431 = vmatpush2.msra.mxu0 0.0
      %432 = vmatprep.subr.mxu0 0.0
      %433 = vmatpush2.msra.mxu0 0.0
      %434 = vmatprep.subr.mxu0 0.0
      %435 = vmatpush2.msra.mxu0 0.0
      %436 = vmatprep.subr.mxu0 0.0
      %437 = vmatpush2.msra.mxu0 0.0
      %438 = vmatprep.subr.mxu0 0.0
      %439 = vmatpush2.msra.mxu0 0.0
      %440 = vmatprep.mubr.f32.mxu0 0.0
      %441 = vmatmul.mubr.f32.gmra.mxu0 %v371
      %v442 = vpop.f32.mrf.mxu0
      %v443 = vadd.f32 0.0, %v442
      %v444 = vpop.f32.mrf.mxu0
      %445 = vmatprep.mubr.f32.mxu0 0.0
      %446 = vmatmul.mubr.f32.gmra.mxu0 %v374
      %v447 = vpop.f32.mrf.mxu0
      %v448 = vadd.f32 0.0, %v447
      %v449 = vpop.f32.mrf.mxu0
      %450 = vdwg.mxu0
      %451 = vrot.lane.b32.xlu0 %v254, 112
      %v452 = vpop.permute.xlu0 %451
      %453 = vrot.lane.b32.xlu0 %v255, 112
      %v454 = vpop.permute.xlu0 %453
      %455 = vrot.lane.b32.xlu0 %v256, 112
      %v456 = vpop.permute.xlu0 %455
      %v457 = vsel %vm262, %v452, 0
      %v459 = vsel %vm262, %v454, 0
      %v461 = vsel %vm262, %v456, 0
      %463 = vmatprep.subr.mxu0 0.0
      %464 = vmatpush1.xpose.msra.mxu0 0.0
      %465 = vmatprep.subr.mxu0 0.0
      %466 = vmatpush1.xpose.msra.mxu0 0.0
      %467 = vmatprep.subr.mxu0 0.0
      %468 = vmatpush1.xpose.msra.mxu0 0.0
      %469 = vmatprep.subr.mxu0 0.0
      %470 = vmatpush1.xpose.msra.mxu0 0.0
      %471 = vmatprep.subr.mxu0 0.0
      %472 = vmatpush1.xpose.msra.mxu0 0.0
      %473 = vmatprep.subr.mxu0 0.0
      %474 = vmatpush1.xpose.msra.mxu0 0.0
      %475 = vmatprep.subr.mxu0 0.0
      %476 = vmatpush1.xpose.msra.mxu0 0.0
      %477 = vmatprep.subr.mxu0 0.0
      %478 = vmatpush1.xpose.msra.mxu0 0.0
      %479 = vmatprep.subr.mxu0 0.0
      %480 = vmatpush1.xpose.msra.mxu0 0.0
      %481 = vmatprep.subr.mxu0 0.0
      %482 = vmatpush1.xpose.msra.mxu0 0.0
      %483 = vmatprep.subr.mxu0 0.0
      %484 = vmatpush1.xpose.msra.mxu0 0.0
      %485 = vmatprep.subr.mxu0 0.0
      %486 = vmatpush1.xpose.msra.mxu0 0.0
      %487 = vmatprep.subr.mxu0 0.0
      %488 = vmatpush1.xpose.msra.mxu0 0.0
      %489 = vmatprep.subr.mxu0 0.0
      %490 = vmatpush1.xpose.msra.mxu0 0.0
      %491 = vmatprep.subr.mxu0 0.0
      %492 = vmatpush1.xpose.msra.mxu0 0.0
      %493 = vmatprep.subr.mxu0 0.0
      %494 = vmatpush1.xpose.msra.mxu0 %v461
      %495 = vmatprep.subr.mxu0 0.0
      %496 = vmatpush2.xpose.msra.mxu0 0.0
      %497 = vmatprep.subr.mxu0 0.0
      %498 = vmatpush2.xpose.msra.mxu0 0.0
      %499 = vmatprep.subr.mxu0 0.0
      %500 = vmatpush2.xpose.msra.mxu0 0.0
      %501 = vmatprep.subr.mxu0 0.0
      %502 = vmatpush2.xpose.msra.mxu0 0.0
      %503 = vmatprep.subr.mxu0 0.0
      %504 = vmatpush2.xpose.msra.mxu0 0.0
      %505 = vmatprep.subr.mxu0 0.0
      %506 = vmatpush2.xpose.msra.mxu0 0.0
      %507 = vmatprep.subr.mxu0 0.0
      %508 = vmatpush2.xpose.msra.mxu0 0.0
      %509 = vmatprep.subr.mxu0 0.0
      %510 = vmatpush2.xpose.msra.mxu0 0.0
      %511 = vmatprep.subr.mxu0 0.0
      %512 = vmatpush2.xpose.msra.mxu0 0.0
      %513 = vmatprep.subr.mxu0 0.0
      %514 = vmatpush2.xpose.msra.mxu0 0.0
      %515 = vmatprep.subr.mxu0 0.0
      %516 = vmatpush2.xpose.msra.mxu0 0.0
      %517 = vmatprep.subr.mxu0 0.0
      %518 = vmatpush2.xpose.msra.mxu0 0.0
      %519 = vmatprep.subr.mxu0 0.0
      %520 = vmatpush2.xpose.msra.mxu0 0.0
      %521 = vmatprep.subr.mxu0 0.0
      %522 = vmatpush2.xpose.msra.mxu0 0.0
      %523 = vmatprep.subr.mxu0 0.0
      %524 = vmatpush2.xpose.msra.mxu0 0.0
      %525 = vmatprep.subr.mxu0 0.0
      %526 = vmatpush2.xpose.msra.mxu0 0.0
      %527 = vmatprep.mubr.f32.mxu0 0.0
      %528 = vmatmul.mubr.f32.gmra.mxu0 %v457
      %v529 = vpop.f32.mrf.mxu0
      %v530 = vadd.f32 %v260, %v529
      %v531 = vpop.f32.mrf.mxu0
      %532 = vmatprep.mubr.f32.mxu0 0.0
      %533 = vmatmul.mubr.f32.gmra.mxu0 %v459
      %v534 = vpop.f32.mrf.mxu0
      %v535 = vadd.f32 %v261, %v534
      %v536 = vpop.f32.mrf.mxu0
      %537 = vdwg.mxu0
      %v538 = vsel %vm347, %v530, -inf
      %539 = vmax.xlane.f32.xlu0 %v538
      %v540 = vpop.xlane.xlu0 %539
      %v541 = vsel %vm347, %v535, -inf
      %542 = vmax.xlane.f32.xlu0 %v541
      %v543 = vpop.xlane.xlu0 %542
      %v544 = vsub.f32 %v530, %v540
      %v545 = vsub.f32 %v535, %v543
      %v546 = vmul.f32 %v544, 1.442695
      %v547 = vpow.pop %v546
      %v548 = vmul.f32 %v545, 1.442695
      %v549 = vpow.pop %v548
      %v550 = vsel %vm347, %v547, 0.0
      %551 = vadd.xlane.f32.xlu0 %v550
      %v552 = vpop.xlane.xlu0 %551
      %v553 = vsel %vm347, %v549, 0.0
      %554 = vadd.xlane.f32.xlu0 %v553
      %v555 = vpop.xlane.xlu0 %554
      %v556 = vrcp.pop %v552
      %v557 = vrcp.pop %v555
      %v558 = vmul.f32 %v547, %v556
      %v559 = vmul.f32 %v549, %v557
      %561 = vrot.lane.b32.xlu0 %v257, 112
      %v562 = vpop.permute.xlu0 %561
      %v565 = vsel %vm347, %v558, 0
      %v568 = vsel %vm347, %v559, 0
      %570 = vmatprep.subr.mxu0 0.0
      %571 = vmatpush1.msra.mxu0 0.0
      %572 = vmatprep.subr.mxu0 0.0
      %573 = vmatpush1.msra.mxu0 0.0
      %574 = vmatprep.subr.mxu0 0.0
      %575 = vmatpush1.msra.mxu0 0.0
      %576 = vmatprep.subr.mxu0 0.0
      %577 = vmatpush1.msra.mxu0 0.0
      %578 = vmatprep.subr.mxu0 0.0
      %579 = vmatpush1.msra.mxu0 0.0
      %580 = vmatprep.subr.mxu0 0.0
      %581 = vmatpush1.msra.mxu0 0.0
      %582 = vmatprep.subr.mxu0 0.0
      %583 = vmatpush1.msra.mxu0 0.0
      %584 = vmatprep.subr.mxu0 0.0
      %585 = vmatpush1.msra.mxu0 0.0
      %586 = vmatprep.subr.mxu0 0.0
      %587 = vmatpush1.msra.mxu0 0.0
      %588 = vmatprep.subr.mxu0 0.0
      %589 = vmatpush1.msra.mxu0 0.0
      %590 = vmatprep.subr.mxu0 0.0
      %591 = vmatpush1.msra.mxu0 0.0
      %592 = vmatprep.subr.mxu0 0.0
      %593 = vmatpush1.msra.mxu0 0.0
      %594 = vmatprep.subr.mxu0 0.0
      %595 = vmatpush1.msra.mxu0 0.0
      %596 = vmatprep.subr.mxu0 0.0
      %597 = vmatpush1.msra.mxu0 0.0
      %598 = vmatprep.subr.mxu0 0.0
      %599 = vmatpush1.msra.mxu0 0.0
      %600 = vmatprep.subr.mxu0 0.0
      %601 = vmatpush1.msra.mxu0 %v562
      %602 = vmatprep.subr.mxu0 0.0
      %603 = vmatpush2.msra.mxu0 0.0
      %604 = vmatprep.subr.mxu0 0.0
      %605 = vmatpush2.msra.mxu0 0.0
      %606 = vmatprep.subr.mxu0 0.0
      %607 = vmatpush2.msra.mxu0 0.0
      %608 = vmatprep.subr.mxu0 0.0
      %609 = vmatpush2.msra.mxu0 0.0
      %610 = vmatprep.subr.mxu0 0.0
      %611 = vmatpush2.msra.mxu0 0.0
      %612 = vmatprep.subr.mxu0 0.0
      %613 = vmatpush2.msra.mxu0 0.0
      %614 = vmatprep.subr.mxu0 0.0
      %615 = vmatpush2.msra.mxu0 0.0
      %616 = vmatprep.subr.mxu0 0.0
      %617 = vmatpush2.msra.mxu0 0.0
      %618 = vmatprep.subr.mxu0 0.0
      %619 = vmatpush2.msra.mxu0 0.0
      %620 = vmatprep.subr.mxu0 0.0
      %621 = vmatpush2.msra.mxu0 0.0
      %622 = vmatprep.subr.mxu0 0.0
      %623 = vmatpush2.msra.mxu0 0.0
      %624 = vmatprep.subr.mxu0 0.0
      %625 = vmatpush2.msra.mxu0 0.0
      %626 = vmatprep.subr.mxu0 0.0
      %627 = vmatpush2.msra.mxu0 0.0
      %628 = vmatprep.subr.mxu0 0.0
      %629 = vmatpush2.msra.mxu0 0.0
      %630 = vmatprep.subr.mxu0 0.0
      %631 = vmatpush2.msra.mxu0 0.0
      %632 = vmatprep.subr.mxu0 0.0
      %633 = vmatpush2.msra.mxu0 0.0
      %634 = vmatprep.mubr.f32.mxu0 0.0
      %635 = vmatmul.mubr.f32.gmra.mxu0 %v565
      %v636 = vpop.f32.mrf.mxu0
      %v637 = vadd.f32 0.0, %v636
      %v638 = vpop.f32.mrf.mxu0
      %639 = vmatprep.mubr.f32.mxu0 0.0
      %640 = vmatmul.mubr.f32.gmra.mxu0 %v568
      %v641 = vpop.f32.mrf.mxu0
      %v642 = vadd.f32 0.0, %v641
      %v643 = vpop.f32.mrf.mxu0
      %644 = vdwg.mxu0
      %647 = vrot.lane.b32.xlu0 %v637, 16
      %v648 = vpop.permute.xlu0 %647
      %649 = vrot.lane.b32.xlu0 %v642, 16
      %v650 = vpop.permute.xlu0 %649
      %v653 = vsel %vm262, %v443, %v648
      %v654 = vsel %vm262, %v448, %v650
      %vm655 = vcmask 261120
      %656 = vst.msk [vmem:[%s251] sm:$0xff] %vm655, %v653
      %657 = vst.msk [vmem:[%s251 + $0x8] sm:$0xff] %vm655, %v654
      %p658 = scmp.lt.s32.totalorder %s15, 1
      %s659 = scalar_select %p658, %s15, 1
      %s660 = smul.addr %s659, 2
      %s661 = smul.addr %s660, 8
      %s662 = scalar_lea.vmem %s4, %s661
      // Predicated region
      $region37: #{encoder_co_layer_fwd.28} parent=35 // pred_check
        %p663 = pneg %p137
      $region38: #{encoder_co_layer_fwd.28} parent=35 // pred_check_branch
        %665 = sbr.rel (%p663) target = $region40
      $region39: #{encoder_co_layer_fwd.28} parent=35 // pred_region
        _
      $region40: #{encoder_co_layer_fwd.28} parent=35 // pred_fallthru
        _
    $region36: #{encoder_co_layer_fwd.28} parent=5 // pred_fallthru
      _
    %p666 = scmp.le.s32.totalorder 2, %s10
    // Predicated region
    $region41: #{encoder_co_layer_fwd.28} parent=5 // pred_check
      %p667 = pneg %p666
    $region42: #{encoder_co_layer_fwd.28} parent=5 // pred_check_branch
      %669 = sbr.rel (%p667) target = $region44
    $region43: #{encoder_co_layer_fwd.28} parent=5 // pred_region
      %s670 = ssub.s32 %s10, 2
      // Predicated region
      $region45: #{encoder_co_layer_fwd.28} parent=43 // pred_check
        %p671 = pneg %p143
      $region46: #{encoder_co_layer_fwd.28} parent=43 // pred_check_branch
        %673 = sbr.rel (%p671) target = $region48
      $region47: #{encoder_co_layer_fwd.28} parent=43 // pred_region
        %p674 = scmp.lt.s32.totalorder %s16, 1
        %s675 = scalar_select %p674, %s16, 1
        %s676 = smul.addr %s675, 2
        %s677 = smul.addr %s676, 8
        %s678 = scalar_lea.vmem %s4, %s677
      $region48: #{encoder_co_layer_fwd.28} parent=43 // pred_fallthru
        _
    $region44: #{encoder_co_layer_fwd.28} parent=5 // pred_fallthru
      _
  $region6: #{encoder_co_layer_fwd.28} parent=0 // loop_footer
    %s14 = sadd.s32 1, %s10
  $region7: #{encoder_co_layer_fwd.28} parent=0 // loop_footer_branch
    %9 = sbr.rel target = $region3
  $region8: #{encoder_co_layer_fwd.28} parent=0 // loop_exit
    _

</llo_original>
